<compile_context>
chip_gen: v7x
topology: tpu7x:2x2x1
jax: 0.10.0
libtpu: 0.0.40
codegen_flags: <defaults>
</compile_context>

<pallas_src>
import math

import jax
import jax.numpy as jnp
from jax.experimental import pallas as pl
from jax.experimental.pallas import tpu as pltpu

# ----- config consistent with the VAE module defaults, scaled down -----
SEQ_LEN = 8        # sequence_length
N_FEATURES = 4     # number_of_features
HIDDEN = 32        # hidden_size
DEPTH = 2          # hidden_layer_depth (kernel is written for depth 2)
LATENT = 20        # latent_length
BATCH = 8          # batch_size
PACK = 64          # lane-padded width of the packed (mean|logvar|latent) output


# ----------------------------- kernel helpers --------------------------------
def _gates_to_hc(gates, c_prev):
    """PyTorch LSTM gate order i, f, g, o.  `gates` has its g columns pre-scaled
    by 2 at pack time, so tanh(g_orig) == 2*sigmoid(gates_g) - 1: only one
    full-width transcendental pass per cell."""
    H = c_prev.shape[-1]
    sg = jax.nn.sigmoid(gates)           # single (B,4H) EUP pass
    i = sg[:, 0:H]
    f = sg[:, H:2 * H]
    g = 2.0 * sg[:, 2 * H:3 * H] - 1.0   # tanh via sigmoid (VPU only)
    o = sg[:, 3 * H:4 * H]
    c_new = f * c_prev + i * g
    h_new = o * jnp.tanh(c_new)          # narrow (B,H) tanh
    return h_new, c_new


# ------------------------------ fused VAE kernel ------------------------------
def vae_fused_kernel(x_ref, eps_ref,
                     e_wih0_ref, e_whh0_ref, e_b0_ref,
                     e_w1_ref, e_b1_ref,
                     wmv_ref, bmv_ref,
                     wl2h_ref, bl2h_ref,
                     d_whh0_ref, d_b0_ref,
                     d_w1_ref, d_b1_ref,
                     wh2o_ref, bh2o_ref,
                     xdec_ref, packed_ref,
                     dec_h_scratch):
    f32 = jnp.float32
    H, T, L = HIDDEN, SEQ_LEN, LATENT
    TB, F = x_ref.shape
    B = TB // T

    # ----------------- Encoder: 2-layer LSTM over time -----------------
    # Layer-0 input projection hoisted out of the recurrence (one MXU push).
    xproj = (jnp.dot(x_ref[...], e_wih0_ref[...], preferred_element_type=f32)
             + e_b0_ref[...])                                   # (T*B, 4H)

    z = jnp.zeros((B, H), f32)
    h0, c0, h1, c1 = z, z, z, z
    for t in range(T):                        # fully unrolled (T is static)
        g0 = xproj[t * B:(t + 1) * B, :] + jnp.dot(
            h0, e_whh0_ref[...], preferred_element_type=f32)
        h0, c0 = _gates_to_hc(g0, c0)
        # layer 1: single dot on lane-concat [h0 | h1] against merged [W_ih1; W_hh1]
        h01 = jnp.concatenate([h0, h1], axis=1)                 # (B, 2H)
        g1 = (jnp.dot(h01, e_w1_ref[...], preferred_element_type=f32)
              + e_b1_ref[...])
        h1, c1 = _gates_to_hc(g1, c1)
        # dropout_rate = 0 -> no inter-layer dropout
    h_end = h1                                # h_end[-1, :, :]

    # ----------------- Lambda: merged mean|logvar head + reparam -----------------
    mlv = (jnp.dot(h_end, wmv_ref[...], preferred_element_type=f32)
           + bmv_ref[...])                                      # (B, 2L)
    mean = mlv[:, 0:L]
    logvar = mlv[:, L:2 * L]
    std = jnp.exp(0.5 * logvar)
    latent = eps_ref[...] * std + mean        # training-mode sampling
    # one lane-dense packed store: [mean | logvar | latent | pad] -> (B, 64)
    packed_ref[...] = jnp.concatenate(
        [mlv, latent, jnp.zeros((B, PACK - 3 * L), f32)], axis=1)

    # ------------- Decoder: latent_to_hidden -> 2-layer LSTM -> output head -------------
    h_state = (jnp.dot(latent, wl2h_ref[...], preferred_element_type=f32)
               + bl2h_ref[...])               # (B, H)
    dh0, dh1 = h_state, h_state               # h_0 = stack([h_state] * depth)
    dc0, dc1 = z, z                           # c_0 = zeros
    for t in range(T):                        # fully unrolled
        # decoder inputs are zeros(T, B, 1): the layer-0 W_ih term is exactly 0.
        g0 = (jnp.dot(dh0, d_whh0_ref[...], preferred_element_type=f32)
              + d_b0_ref[...])
        dh0, dc0 = _gates_to_hc(g0, dc0)
        dh01 = jnp.concatenate([dh0, dh1], axis=1)              # (B, 2H)
        g1 = (jnp.dot(dh01, d_w1_ref[...], preferred_element_type=f32)
              + d_b1_ref[...])
        dh1, dc1 = _gates_to_hc(g1, dc1)
        dec_h_scratch[t * B:(t + 1) * B, :] = dh1               # static, 8-row aligned

    xdec_ref[...] = (jnp.dot(dec_h_scratch[...], wh2o_ref[...],
                             preferred_element_type=f32)
                     + bh2o_ref[...])         # single (T*B,F) output store


# ------------------------------- full forward ---------------------------------
@jax.jit
def vae_forward(x, eps, params):
    """x: (T, B, F) sequence-major, eps: (B, L).

    Returns (x_decoded, latent, latent_mean, latent_logvar)."""
    T, B, F = x.shape
    L = LATENT
    x2 = x.reshape(T * B, F)                  # free reshape outside the kernel
    out_shapes = (
        jax.ShapeDtypeStruct((T * B, F), jnp.float32),
        jax.ShapeDtypeStruct((B, PACK), jnp.float32),
    )
    xdec, packed = pl.pallas_call(
        vae_fused_kernel,
        out_shape=out_shapes,
        scratch_shapes=[pltpu.VMEM((T * B, HIDDEN), jnp.float32)],
    )(x2, eps, *params)
    mean = packed[:, 0:L]
    logvar = packed[:, L:2 * L]
    latent = packed[:, 2 * L:3 * L]
    return xdec.reshape(T, B, F), latent, mean, logvar


# ------------------------------ parameter init --------------------------------
def _uniform(key, shape, scale):
    return jax.random.uniform(key, shape, jnp.float32, minval=-scale, maxval=scale)


def init_raw_params(key):
    """Raw weights in PyTorch nn.LSTM / nn.Linear layout (reference + pack source)."""
    H, F, L = HIDDEN, N_FEATURES, LATENT
    s = 1.0 / math.sqrt(H)
    sl = 1.0 / math.sqrt(L)
    ks = iter(jax.random.split(key, 32))

    def u(shape, scale=s):
        return _uniform(next(ks), shape, scale)

    return {
        # encoder nn.LSTM(F, H, num_layers=2)
        "e_w_ih0": u((4 * H, F)), "e_w_hh0": u((4 * H, H)),
        "e_b_ih0": u((4 * H,)), "e_b_hh0": u((4 * H,)),
        "e_w_ih1": u((4 * H, H)), "e_w_hh1": u((4 * H, H)),
        "e_b_ih1": u((4 * H,)), "e_b_hh1": u((4 * H,)),
        # Lambda: hidden_to_mean / hidden_to_logvar
        "w_mean": u((L, H)), "b_mean": u((L,)),
        "w_logv": u((L, H)), "b_logv": u((L,)),
        # decoder latent_to_hidden
        "w_l2h": u((H, L), sl), "b_l2h": u((H,), sl),
        # decoder nn.LSTM(1, H, num_layers=2)
        "d_w_ih0": u((4 * H, 1)), "d_w_hh0": u((4 * H, H)),
        "d_b_ih0": u((4 * H,)), "d_b_hh0": u((4 * H,)),
        "d_w_ih1": u((4 * H, H)), "d_w_hh1": u((4 * H, H)),
        "d_b_ih1": u((4 * H,)), "d_b_hh1": u((4 * H,)),
        # hidden_to_output
        "w_h2o": u((F, H)), "b_h2o": u((F,)),
    }


def pack_params(raw):
    """Kernel layout: (in,out) transposes, b_ih+b_hh fused, layer-1 W_ih/W_hh merged
    along the contraction dim, mean|logvar heads merged, decoder layer-0 W_ih dropped
    (its input is identically zero), and the g-gate columns of every LSTM weight/bias
    pre-scaled by 2 (tanh-via-sigmoid).  Apply the same transform to real checkpoints."""
    H, L, F = HIDDEN, LATENT, N_FEATURES

    def g2(w):                                 # w: (rows, 4H)
        return w.at[:, 2 * H:3 * H].multiply(2.0)

    e_wih0 = g2(raw["e_w_ih0"].T)
    e_whh0 = g2(raw["e_w_hh0"].T)
    e_b0 = g2((raw["e_b_ih0"] + raw["e_b_hh0"]).reshape(1, 4 * H))
    e_w1 = g2(jnp.concatenate([raw["e_w_ih1"].T, raw["e_w_hh1"].T], axis=0))
    e_b1 = g2((raw["e_b_ih1"] + raw["e_b_hh1"]).reshape(1, 4 * H))

    wmv = jnp.concatenate([raw["w_mean"].T, raw["w_logv"].T], axis=1)
    bmv = jnp.concatenate([raw["b_mean"], raw["b_logv"]]).reshape(1, 2 * L)

    wl2h = raw["w_l2h"].T
    bl2h = raw["b_l2h"].reshape(1, H)

    d_whh0 = g2(raw["d_w_hh0"].T)
    d_b0 = g2((raw["d_b_ih0"] + raw["d_b_hh0"]).reshape(1, 4 * H))
    d_w1 = g2(jnp.concatenate([raw["d_w_ih1"].T, raw["d_w_hh1"].T], axis=0))
    d_b1 = g2((raw["d_b_ih1"] + raw["d_b_hh1"]).reshape(1, 4 * H))

    wh2o = raw["w_h2o"].T
    bh2o = raw["b_h2o"].reshape(1, F)

    return (e_wih0, e_whh0, e_b0, e_w1, e_b1,
            wmv, bmv, wl2h, bl2h,
            d_whh0, d_b0, d_w1, d_b1,
            wh2o, bh2o)


# ------------------------- pure-JAX reference (parity check) -------------------------
def _lstm_cell_ref(x_t, h, c, w_ih, w_hh, b_ih, b_hh):
    H = h.shape[-1]
    gates = x_t @ w_ih.T + h @ w_hh.T + b_ih + b_hh
    i = jax.nn.sigmoid(gates[:, 0:H])
    f = jax.nn.sigmoid(gates[:, H:2 * H])
    g = jnp.tanh(gates[:, 2 * H:3 * H])
    o = jax.nn.sigmoid(gates[:, 3 * H:4 * H])
    c = f * c + i * g
    h = o * jnp.tanh(c)
    return h, c


def vae_reference(x, eps, raw):
    """Standard LSTM / Linear math on the RAW PyTorch-layout weights."""
    T, B, F = x.shape
    H = HIDDEN
    z = jnp.zeros((B, H), jnp.float32)
    h0 = c0 = h1 = c1 = z
    for t in range(T):
        h0, c0 = _lstm_cell_ref(x[t], h0, c0, raw["e_w_ih0"], raw["e_w_hh0"],
                                raw["e_b_ih0"], raw["e_b_hh0"])
        h1, c1 = _lstm_cell_ref(h0, h1, c1, raw["e_w_ih1"], raw["e_w_hh1"],
                                raw["e_b_ih1"], raw["e_b_hh1"])
    h_end = h1
    mean = h_end @ raw["w_mean"].T + raw["b_mean"]
    logvar = h_end @ raw["w_logv"].T + raw["b_logv"]
    latent = eps * jnp.exp(0.5 * logvar) + mean
    h_state = latent @ raw["w_l2h"].T + raw["b_l2h"]
    dh0 = dh1 = h_state
    dc0 = dc1 = z
    dec_in = jnp.zeros((B, 1), jnp.float32)
    outs = []
    for t in range(T):
        dh0, dc0 = _lstm_cell_ref(dec_in, dh0, dc0, raw["d_w_ih0"], raw["d_w_hh0"],
                                  raw["d_b_ih0"], raw["d_b_hh0"])
        dh1, dc1 = _lstm_cell_ref(dh0, dh1, dc1, raw["d_w_ih1"], raw["d_w_hh1"],
                                  raw["d_b_ih1"], raw["d_b_hh1"])
        outs.append(dh1 @ raw["w_h2o"].T + raw["b_h2o"])
    return jnp.stack(outs, axis=0), latent, mean, logvar


if __name__ == "__main__":
    key = jax.random.PRNGKey(0)
    k_param, k_x, k_eps = jax.random.split(key, 3)

    raw = init_raw_params(k_param)
    params = pack_params(raw)
    x = jax.random.normal(k_x, (SEQ_LEN, BATCH, N_FEATURES), jnp.float32)
    eps = jax.random.normal(k_eps, (BATCH, LATENT), jnp.float32)

    x_dec, latent, mean, logvar = jax.block_until_ready(
        vae_forward(x, eps, params))

    assert x_dec.shape == (SEQ_LEN, BATCH, N_FEATURES)
    assert latent.shape == (BATCH, LATENT)
    assert mean.shape == (BATCH, LATENT)
    assert logvar.shape == (BATCH, LATENT)

    r_xdec, r_latent, r_mean, r_logvar = vae_reference(x, eps, raw)
    for got, want in ((x_dec, r_xdec), (latent, r_latent),
                      (mean, r_mean), (logvar, r_logvar)):
        assert bool(jnp.all(jnp.isfinite(got)))
        assert float(jnp.max(jnp.abs(got - want))) < 2e-3

    print("KERNEL_OK")
</pallas_src>

<mosaic_0001>
module attributes {stable_mosaic.version = 11 : i64} {
  func.func @vae_fused_kernel(%arg0: memref<64x4xf32, #tpu.memory_space<vmem>>, %arg1: memref<8x20xf32, #tpu.memory_space<vmem>>, %arg2: memref<4x128xf32, #tpu.memory_space<vmem>>, %arg3: memref<32x128xf32, #tpu.memory_space<vmem>>, %arg4: memref<1x128xf32, #tpu.memory_space<vmem>>, %arg5: memref<64x128xf32, #tpu.memory_space<vmem>>, %arg6: memref<1x128xf32, #tpu.memory_space<vmem>>, %arg7: memref<32x40xf32, #tpu.memory_space<vmem>>, %arg8: memref<1x40xf32, #tpu.memory_space<vmem>>, %arg9: memref<20x32xf32, #tpu.memory_space<vmem>>, %arg10: memref<1x32xf32, #tpu.memory_space<vmem>>, %arg11: memref<32x128xf32, #tpu.memory_space<vmem>>, %arg12: memref<1x128xf32, #tpu.memory_space<vmem>>, %arg13: memref<64x128xf32, #tpu.memory_space<vmem>>, %arg14: memref<1x128xf32, #tpu.memory_space<vmem>>, %arg15: memref<32x4xf32, #tpu.memory_space<vmem>>, %arg16: memref<1x4xf32, #tpu.memory_space<vmem>>, %arg17: memref<64x4xf32, #tpu.memory_space<vmem>>, %arg18: memref<8x64xf32, #tpu.memory_space<vmem>>, %arg19: memref<64x32xf32, #tpu.memory_space<vmem>>) attributes {dimension_semantics = [], scalar_prefetch = 0 : i64, scratch_operands = 1 : i64, tpu.core_type = #tpu.core_type<tc>} {
    %c0 = arith.constant 0 : index
    %c0_0 = arith.constant 0 : index
    %0 = vector.load %arg0[%c0, %c0_0] : memref<64x4xf32, #tpu.memory_space<vmem>>, vector<64x4xf32>
    %c0_1 = arith.constant 0 : index
    %c0_2 = arith.constant 0 : index
    %1 = vector.load %arg2[%c0_1, %c0_2] : memref<4x128xf32, #tpu.memory_space<vmem>>, vector<4x128xf32>
    %cst = arith.constant dense<0.000000e+00> : vector<64x128xf32>
    %2 = tpu.matmul %0, %1, %cst {dimension_numbers = #tpu.dot_dimension_numbers<[1], [0], [0], [1], [0, 0, 1, 1], [], []>} : vector<64x4xf32>, vector<4x128xf32>, vector<64x128xf32> -> vector<64x128xf32>
    %c0_3 = arith.constant 0 : index
    %c0_4 = arith.constant 0 : index
    %3 = vector.load %arg4[%c0_3, %c0_4] : memref<1x128xf32, #tpu.memory_space<vmem>>, vector<1x128xf32>
    %4 = vector.broadcast %3 : vector<1x128xf32> to vector<64x128xf32>
    %5 = arith.addf %2, %4 : vector<64x128xf32>
    %cst_5 = arith.constant 0.000000e+00 : f32
    %6 = vector.broadcast %cst_5 : f32 to vector<8x32xf32>
    %7 = vector.extract_strided_slice %5 {offsets = [0, 0], sizes = [8, 128], strides = [1, 1]} : vector<64x128xf32> to vector<8x128xf32>
    %c0_6 = arith.constant 0 : index
    %c0_7 = arith.constant 0 : index
    %8 = vector.load %arg3[%c0_6, %c0_7] : memref<32x128xf32, #tpu.memory_space<vmem>>, vector<32x128xf32>
    %cst_8 = arith.constant dense<0.000000e+00> : vector<8x128xf32>
    %9 = tpu.matmul %6, %8, %cst_8 {dimension_numbers = #tpu.dot_dimension_numbers<[1], [0], [0], [1], [0, 0, 1, 1], [], []>} : vector<8x32xf32>, vector<32x128xf32>, vector<8x128xf32> -> vector<8x128xf32>
    %10 = arith.addf %7, %9 : vector<8x128xf32>
    %11 = arith.negf %10 : vector<8x128xf32>
    %12 = math.exp %11 : vector<8x128xf32>
    %cst_9 = arith.constant 1.000000e+00 : f32
    %13 = vector.broadcast %cst_9 : f32 to vector<8x128xf32>
    %14 = arith.addf %13, %12 : vector<8x128xf32>
    %15 = arith.divf %13, %14 : vector<8x128xf32>
    %16 = vector.extract_strided_slice %15 {offsets = [0, 0], sizes = [8, 32], strides = [1, 1]} : vector<8x128xf32> to vector<8x32xf32>
    %17 = vector.extract_strided_slice %15 {offsets = [0, 32], sizes = [8, 32], strides = [1, 1]} : vector<8x128xf32> to vector<8x32xf32>
    %18 = vector.extract_strided_slice %15 {offsets = [0, 64], sizes = [8, 32], strides = [1, 1]} : vector<8x128xf32> to vector<8x32xf32>
    %cst_10 = arith.constant 2.000000e+00 : f32
    %19 = vector.broadcast %cst_10 : f32 to vector<8x32xf32>
    %20 = arith.mulf %19, %18 : vector<8x32xf32>
    %cst_11 = arith.constant 1.000000e+00 : f32
    %21 = vector.broadcast %cst_11 : f32 to vector<8x32xf32>
    %22 = arith.subf %20, %21 : vector<8x32xf32>
    %23 = vector.extract_strided_slice %15 {offsets = [0, 96], sizes = [8, 32], strides = [1, 1]} : vector<8x128xf32> to vector<8x32xf32>
    %24 = arith.mulf %17, %6 : vector<8x32xf32>
    %25 = arith.mulf %16, %22 : vector<8x32xf32>
    %26 = arith.addf %24, %25 : vector<8x32xf32>
    %27 = math.tanh %26 : vector<8x32xf32>
    %28 = arith.mulf %23, %27 : vector<8x32xf32>
    %29 = tpu.concatenate %28, %6 in 1 : vector<8x32xf32>, vector<8x32xf32> -> vector<8x64xf32>
    %c0_12 = arith.constant 0 : index
    %c0_13 = arith.constant 0 : index
    %30 = vector.load %arg5[%c0_12, %c0_13] : memref<64x128xf32, #tpu.memory_space<vmem>>, vector<64x128xf32>
    %cst_14 = arith.constant dense<0.000000e+00> : vector<8x128xf32>
    %31 = tpu.matmul %29, %30, %cst_14 {dimension_numbers = #tpu.dot_dimension_numbers<[1], [0], [0], [1], [0, 0, 1, 1], [], []>} : vector<8x64xf32>, vector<64x128xf32>, vector<8x128xf32> -> vector<8x128xf32>
    %c0_15 = arith.constant 0 : index
    %c0_16 = arith.constant 0 : index
    %32 = vector.load %arg6[%c0_15, %c0_16] : memref<1x128xf32, #tpu.memory_space<vmem>>, vector<1x128xf32>
    %33 = vector.broadcast %32 : vector<1x128xf32> to vector<8x128xf32>
    %34 = arith.addf %31, %33 : vector<8x128xf32>
    %35 = arith.negf %34 : vector<8x128xf32>
    %36 = math.exp %35 : vector<8x128xf32>
    %cst_17 = arith.constant 1.000000e+00 : f32
    %37 = vector.broadcast %cst_17 : f32 to vector<8x128xf32>
    %38 = arith.addf %37, %36 : vector<8x128xf32>
    %39 = arith.divf %37, %38 : vector<8x128xf32>
    %40 = vector.extract_strided_slice %39 {offsets = [0, 0], sizes = [8, 32], strides = [1, 1]} : vector<8x128xf32> to vector<8x32xf32>
    %41 = vector.extract_strided_slice %39 {offsets = [0, 32], sizes = [8, 32], strides = [1, 1]} : vector<8x128xf32> to vector<8x32xf32>
    %42 = vector.extract_strided_slice %39 {offsets = [0, 64], sizes = [8, 32], strides = [1, 1]} : vector<8x128xf32> to vector<8x32xf32>
    %cst_18 = arith.constant 2.000000e+00 : f32
    %43 = vector.broadcast %cst_18 : f32 to vector<8x32xf32>
    %44 = arith.mulf %43, %42 : vector<8x32xf32>
    %cst_19 = arith.constant 1.000000e+00 : f32
    %45 = vector.broadcast %cst_19 : f32 to vector<8x32xf32>
    %46 = arith.subf %44, %45 : vector<8x32xf32>
    %47 = vector.extract_strided_slice %39 {offsets = [0, 96], sizes = [8, 32], strides = [1, 1]} : vector<8x128xf32> to vector<8x32xf32>
    %48 = arith.mulf %41, %6 : vector<8x32xf32>
    %49 = arith.mulf %40, %46 : vector<8x32xf32>
    %50 = arith.addf %48, %49 : vector<8x32xf32>
    %51 = math.tanh %50 : vector<8x32xf32>
    %52 = arith.mulf %47, %51 : vector<8x32xf32>
    %53 = vector.extract_strided_slice %5 {offsets = [8, 0], sizes = [8, 128], strides = [1, 1]} : vector<64x128xf32> to vector<8x128xf32>
    %c0_20 = arith.constant 0 : index
    %c0_21 = arith.constant 0 : index
    %54 = vector.load %arg3[%c0_20, %c0_21] : memref<32x128xf32, #tpu.memory_space<vmem>>, vector<32x128xf32>
    %cst_22 = arith.constant dense<0.000000e+00> : vector<8x128xf32>
    %55 = tpu.matmul %28, %54, %cst_22 {dimension_numbers = #tpu.dot_dimension_numbers<[1], [0], [0], [1], [0, 0, 1, 1], [], []>} : vector<8x32xf32>, vector<32x128xf32>, vector<8x128xf32> -> vector<8x128xf32>
    %56 = arith.addf %53, %55 : vector<8x128xf32>
    %57 = arith.negf %56 : vector<8x128xf32>
    %58 = math.exp %57 : vector<8x128xf32>
    %cst_23 = arith.constant 1.000000e+00 : f32
    %59 = vector.broadcast %cst_23 : f32 to vector<8x128xf32>
    %60 = arith.addf %59, %58 : vector<8x128xf32>
    %61 = arith.divf %59, %60 : vector<8x128xf32>
    %62 = vector.extract_strided_slice %61 {offsets = [0, 0], sizes = [8, 32], strides = [1, 1]} : vector<8x128xf32> to vector<8x32xf32>
    %63 = vector.extract_strided_slice %61 {offsets = [0, 32], sizes = [8, 32], strides = [1, 1]} : vector<8x128xf32> to vector<8x32xf32>
    %64 = vector.extract_strided_slice %61 {offsets = [0, 64], sizes = [8, 32], strides = [1, 1]} : vector<8x128xf32> to vector<8x32xf32>
    %cst_24 = arith.constant 2.000000e+00 : f32
    %65 = vector.broadcast %cst_24 : f32 to vector<8x32xf32>
    %66 = arith.mulf %65, %64 : vector<8x32xf32>
    %cst_25 = arith.constant 1.000000e+00 : f32
    %67 = vector.broadcast %cst_25 : f32 to vector<8x32xf32>
    %68 = arith.subf %66, %67 : vector<8x32xf32>
    %69 = vector.extract_strided_slice %61 {offsets = [0, 96], sizes = [8, 32], strides = [1, 1]} : vector<8x128xf32> to vector<8x32xf32>
    %70 = arith.mulf %63, %26 : vector<8x32xf32>
    %71 = arith.mulf %62, %68 : vector<8x32xf32>
    %72 = arith.addf %70, %71 : vector<8x32xf32>
    %73 = math.tanh %72 : vector<8x32xf32>
    %74 = arith.mulf %69, %73 : vector<8x32xf32>
    %75 = tpu.concatenate %74, %52 in 1 : vector<8x32xf32>, vector<8x32xf32> -> vector<8x64xf32>
    %c0_26 = arith.constant 0 : index
    %c0_27 = arith.constant 0 : index
    %76 = vector.load %arg5[%c0_26, %c0_27] : memref<64x128xf32, #tpu.memory_space<vmem>>, vector<64x128xf32>
    %cst_28 = arith.constant dense<0.000000e+00> : vector<8x128xf32>
    %77 = tpu.matmul %75, %76, %cst_28 {dimension_numbers = #tpu.dot_dimension_numbers<[1], [0], [0], [1], [0, 0, 1, 1], [], []>} : vector<8x64xf32>, vector<64x128xf32>, vector<8x128xf32> -> vector<8x128xf32>
    %c0_29 = arith.constant 0 : index
    %c0_30 = arith.constant 0 : index
    %78 = vector.load %arg6[%c0_29, %c0_30] : memref<1x128xf32, #tpu.memory_space<vmem>>, vector<1x128xf32>
    %79 = vector.broadcast %78 : vector<1x128xf32> to vector<8x128xf32>
    %80 = arith.addf %77, %79 : vector<8x128xf32>
    %81 = arith.negf %80 : vector<8x128xf32>
    %82 = math.exp %81 : vector<8x128xf32>
    %cst_31 = arith.constant 1.000000e+00 : f32
    %83 = vector.broadcast %cst_31 : f32 to vector<8x128xf32>
    %84 = arith.addf %83, %82 : vector<8x128xf32>
    %85 = arith.divf %83, %84 : vector<8x128xf32>
    %86 = vector.extract_strided_slice %85 {offsets = [0, 0], sizes = [8, 32], strides = [1, 1]} : vector<8x128xf32> to vector<8x32xf32>
    %87 = vector.extract_strided_slice %85 {offsets = [0, 32], sizes = [8, 32], strides = [1, 1]} : vector<8x128xf32> to vector<8x32xf32>
    %88 = vector.extract_strided_slice %85 {offsets = [0, 64], sizes = [8, 32], strides = [1, 1]} : vector<8x128xf32> to vector<8x32xf32>
    %cst_32 = arith.constant 2.000000e+00 : f32
    %89 = vector.broadcast %cst_32 : f32 to vector<8x32xf32>
    %90 = arith.mulf %89, %88 : vector<8x32xf32>
    %cst_33 = arith.constant 1.000000e+00 : f32
    %91 = vector.broadcast %cst_33 : f32 to vector<8x32xf32>
    %92 = arith.subf %90, %91 : vector<8x32xf32>
    %93 = vector.extract_strided_slice %85 {offsets = [0, 96], sizes = [8, 32], strides = [1, 1]} : vector<8x128xf32> to vector<8x32xf32>
    %94 = arith.mulf %87, %50 : vector<8x32xf32>
    %95 = arith.mulf %86, %92 : vector<8x32xf32>
    %96 = arith.addf %94, %95 : vector<8x32xf32>
    %97 = math.tanh %96 : vector<8x32xf32>
    %98 = arith.mulf %93, %97 : vector<8x32xf32>
    %99 = vector.extract_strided_slice %5 {offsets = [16, 0], sizes = [8, 128], strides = [1, 1]} : vector<64x128xf32> to vector<8x128xf32>
    %c0_34 = arith.constant 0 : index
    %c0_35 = arith.constant 0 : index
    %100 = vector.load %arg3[%c0_34, %c0_35] : memref<32x128xf32, #tpu.memory_space<vmem>>, vector<32x128xf32>
    %cst_36 = arith.constant dense<0.000000e+00> : vector<8x128xf32>
    %101 = tpu.matmul %74, %100, %cst_36 {dimension_numbers = #tpu.dot_dimension_numbers<[1], [0], [0], [1], [0, 0, 1, 1], [], []>} : vector<8x32xf32>, vector<32x128xf32>, vector<8x128xf32> -> vector<8x128xf32>
    %102 = arith.addf %99, %101 : vector<8x128xf32>
    %103 = arith.negf %102 : vector<8x128xf32>
    %104 = math.exp %103 : vector<8x128xf32>
    %cst_37 = arith.constant 1.000000e+00 : f32
    %105 = vector.broadcast %cst_37 : f32 to vector<8x128xf32>
    %106 = arith.addf %105, %104 : vector<8x128xf32>
    %107 = arith.divf %105, %106 : vector<8x128xf32>
    %108 = vector.extract_strided_slice %107 {offsets = [0, 0], sizes = [8, 32], strides = [1, 1]} : vector<8x128xf32> to vector<8x32xf32>
    %109 = vector.extract_strided_slice %107 {offsets = [0, 32], sizes = [8, 32], strides = [1, 1]} : vector<8x128xf32> to vector<8x32xf32>
    %110 = vector.extract_strided_slice %107 {offsets = [0, 64], sizes = [8, 32], strides = [1, 1]} : vector<8x128xf32> to vector<8x32xf32>
    %cst_38 = arith.constant 2.000000e+00 : f32
    %111 = vector.broadcast %cst_38 : f32 to vector<8x32xf32>
    %112 = arith.mulf %111, %110 : vector<8x32xf32>
    %cst_39 = arith.constant 1.000000e+00 : f32
    %113 = vector.broadcast %cst_39 : f32 to vector<8x32xf32>
    %114 = arith.subf %112, %113 : vector<8x32xf32>
    %115 = vector.extract_strided_slice %107 {offsets = [0, 96], sizes = [8, 32], strides = [1, 1]} : vector<8x128xf32> to vector<8x32xf32>
    %116 = arith.mulf %109, %72 : vector<8x32xf32>
    %117 = arith.mulf %108, %114 : vector<8x32xf32>
    %118 = arith.addf %116, %117 : vector<8x32xf32>
    %119 = math.tanh %118 : vector<8x32xf32>
    %120 = arith.mulf %115, %119 : vector<8x32xf32>
    %121 = tpu.concatenate %120, %98 in 1 : vector<8x32xf32>, vector<8x32xf32> -> vector<8x64xf32>
    %c0_40 = arith.constant 0 : index
    %c0_41 = arith.constant 0 : index
    %122 = vector.load %arg5[%c0_40, %c0_41] : memref<64x128xf32, #tpu.memory_space<vmem>>, vector<64x128xf32>
    %cst_42 = arith.constant dense<0.000000e+00> : vector<8x128xf32>
    %123 = tpu.matmul %121, %122, %cst_42 {dimension_numbers = #tpu.dot_dimension_numbers<[1], [0], [0], [1], [0, 0, 1, 1], [], []>} : vector<8x64xf32>, vector<64x128xf32>, vector<8x128xf32> -> vector<8x128xf32>
    %c0_43 = arith.constant 0 : index
    %c0_44 = arith.constant 0 : index
    %124 = vector.load %arg6[%c0_43, %c0_44] : memref<1x128xf32, #tpu.memory_space<vmem>>, vector<1x128xf32>
    %125 = vector.broadcast %124 : vector<1x128xf32> to vector<8x128xf32>
    %126 = arith.addf %123, %125 : vector<8x128xf32>
    %127 = arith.negf %126 : vector<8x128xf32>
    %128 = math.exp %127 : vector<8x128xf32>
    %cst_45 = arith.constant 1.000000e+00 : f32
    %129 = vector.broadcast %cst_45 : f32 to vector<8x128xf32>
    %130 = arith.addf %129, %128 : vector<8x128xf32>
    %131 = arith.divf %129, %130 : vector<8x128xf32>
    %132 = vector.extract_strided_slice %131 {offsets = [0, 0], sizes = [8, 32], strides = [1, 1]} : vector<8x128xf32> to vector<8x32xf32>
    %133 = vector.extract_strided_slice %131 {offsets = [0, 32], sizes = [8, 32], strides = [1, 1]} : vector<8x128xf32> to vector<8x32xf32>
    %134 = vector.extract_strided_slice %131 {offsets = [0, 64], sizes = [8, 32], strides = [1, 1]} : vector<8x128xf32> to vector<8x32xf32>
    %cst_46 = arith.constant 2.000000e+00 : f32
    %135 = vector.broadcast %cst_46 : f32 to vector<8x32xf32>
    %136 = arith.mulf %135, %134 : vector<8x32xf32>
    %cst_47 = arith.constant 1.000000e+00 : f32
    %137 = vector.broadcast %cst_47 : f32 to vector<8x32xf32>
    %138 = arith.subf %136, %137 : vector<8x32xf32>
    %139 = vector.extract_strided_slice %131 {offsets = [0, 96], sizes = [8, 32], strides = [1, 1]} : vector<8x128xf32> to vector<8x32xf32>
    %140 = arith.mulf %133, %96 : vector<8x32xf32>
    %141 = arith.mulf %132, %138 : vector<8x32xf32>
    %142 = arith.addf %140, %141 : vector<8x32xf32>
    %143 = math.tanh %142 : vector<8x32xf32>
    %144 = arith.mulf %139, %143 : vector<8x32xf32>
    %145 = vector.extract_strided_slice %5 {offsets = [24, 0], sizes = [8, 128], strides = [1, 1]} : vector<64x128xf32> to vector<8x128xf32>
    %c0_48 = arith.constant 0 : index
    %c0_49 = arith.constant 0 : index
    %146 = vector.load %arg3[%c0_48, %c0_49] : memref<32x128xf32, #tpu.memory_space<vmem>>, vector<32x128xf32>
    %cst_50 = arith.constant dense<0.000000e+00> : vector<8x128xf32>
    %147 = tpu.matmul %120, %146, %cst_50 {dimension_numbers = #tpu.dot_dimension_numbers<[1], [0], [0], [1], [0, 0, 1, 1], [], []>} : vector<8x32xf32>, vector<32x128xf32>, vector<8x128xf32> -> vector<8x128xf32>
    %148 = arith.addf %145, %147 : vector<8x128xf32>
    %149 = arith.negf %148 : vector<8x128xf32>
    %150 = math.exp %149 : vector<8x128xf32>
    %cst_51 = arith.constant 1.000000e+00 : f32
    %151 = vector.broadcast %cst_51 : f32 to vector<8x128xf32>
    %152 = arith.addf %151, %150 : vector<8x128xf32>
    %153 = arith.divf %151, %152 : vector<8x128xf32>
    %154 = vector.extract_strided_slice %153 {offsets = [0, 0], sizes = [8, 32], strides = [1, 1]} : vector<8x128xf32> to vector<8x32xf32>
    %155 = vector.extract_strided_slice %153 {offsets = [0, 32], sizes = [8, 32], strides = [1, 1]} : vector<8x128xf32> to vector<8x32xf32>
    %156 = vector.extract_strided_slice %153 {offsets = [0, 64], sizes = [8, 32], strides = [1, 1]} : vector<8x128xf32> to vector<8x32xf32>
    %cst_52 = arith.constant 2.000000e+00 : f32
    %157 = vector.broadcast %cst_52 : f32 to vector<8x32xf32>
    %158 = arith.mulf %157, %156 : vector<8x32xf32>
    %cst_53 = arith.constant 1.000000e+00 : f32
    %159 = vector.broadcast %cst_53 : f32 to vector<8x32xf32>
    %160 = arith.subf %158, %159 : vector<8x32xf32>
    %161 = vector.extract_strided_slice %153 {offsets = [0, 96], sizes = [8, 32], strides = [1, 1]} : vector<8x128xf32> to vector<8x32xf32>
    %162 = arith.mulf %155, %118 : vector<8x32xf32>
    %163 = arith.mulf %154, %160 : vector<8x32xf32>
    %164 = arith.addf %162, %163 : vector<8x32xf32>
    %165 = math.tanh %164 : vector<8x32xf32>
    %166 = arith.mulf %161, %165 : vector<8x32xf32>
    %167 = tpu.concatenate %166, %144 in 1 : vector<8x32xf32>, vector<8x32xf32> -> vector<8x64xf32>
    %c0_54 = arith.constant 0 : index
    %c0_55 = arith.constant 0 : index
    %168 = vector.load %arg5[%c0_54, %c0_55] : memref<64x128xf32, #tpu.memory_space<vmem>>, vector<64x128xf32>
    %cst_56 = arith.constant dense<0.000000e+00> : vector<8x128xf32>
    %169 = tpu.matmul %167, %168, %cst_56 {dimension_numbers = #tpu.dot_dimension_numbers<[1], [0], [0], [1], [0, 0, 1, 1], [], []>} : vector<8x64xf32>, vector<64x128xf32>, vector<8x128xf32> -> vector<8x128xf32>
    %c0_57 = arith.constant 0 : index
    %c0_58 = arith.constant 0 : index
    %170 = vector.load %arg6[%c0_57, %c0_58] : memref<1x128xf32, #tpu.memory_space<vmem>>, vector<1x128xf32>
    %171 = vector.broadcast %170 : vector<1x128xf32> to vector<8x128xf32>
    %172 = arith.addf %169, %171 : vector<8x128xf32>
    %173 = arith.negf %172 : vector<8x128xf32>
    %174 = math.exp %173 : vector<8x128xf32>
    %cst_59 = arith.constant 1.000000e+00 : f32
    %175 = vector.broadcast %cst_59 : f32 to vector<8x128xf32>
    %176 = arith.addf %175, %174 : vector<8x128xf32>
    %177 = arith.divf %175, %176 : vector<8x128xf32>
    %178 = vector.extract_strided_slice %177 {offsets = [0, 0], sizes = [8, 32], strides = [1, 1]} : vector<8x128xf32> to vector<8x32xf32>
    %179 = vector.extract_strided_slice %177 {offsets = [0, 32], sizes = [8, 32], strides = [1, 1]} : vector<8x128xf32> to vector<8x32xf32>
    %180 = vector.extract_strided_slice %177 {offsets = [0, 64], sizes = [8, 32], strides = [1, 1]} : vector<8x128xf32> to vector<8x32xf32>
    %cst_60 = arith.constant 2.000000e+00 : f32
    %181 = vector.broadcast %cst_60 : f32 to vector<8x32xf32>
    %182 = arith.mulf %181, %180 : vector<8x32xf32>
    %cst_61 = arith.constant 1.000000e+00 : f32
    %183 = vector.broadcast %cst_61 : f32 to vector<8x32xf32>
    %184 = arith.subf %182, %183 : vector<8x32xf32>
    %185 = vector.extract_strided_slice %177 {offsets = [0, 96], sizes = [8, 32], strides = [1, 1]} : vector<8x128xf32> to vector<8x32xf32>
    %186 = arith.mulf %179, %142 : vector<8x32xf32>
    %187 = arith.mulf %178, %184 : vector<8x32xf32>
    %188 = arith.addf %186, %187 : vector<8x32xf32>
    %189 = math.tanh %188 : vector<8x32xf32>
    %190 = arith.mulf %185, %189 : vector<8x32xf32>
    %191 = vector.extract_strided_slice %5 {offsets = [32, 0], sizes = [8, 128], strides = [1, 1]} : vector<64x128xf32> to vector<8x128xf32>
    %c0_62 = arith.constant 0 : index
    %c0_63 = arith.constant 0 : index
    %192 = vector.load %arg3[%c0_62, %c0_63] : memref<32x128xf32, #tpu.memory_space<vmem>>, vector<32x128xf32>
    %cst_64 = arith.constant dense<0.000000e+00> : vector<8x128xf32>
    %193 = tpu.matmul %166, %192, %cst_64 {dimension_numbers = #tpu.dot_dimension_numbers<[1], [0], [0], [1], [0, 0, 1, 1], [], []>} : vector<8x32xf32>, vector<32x128xf32>, vector<8x128xf32> -> vector<8x128xf32>
    %194 = arith.addf %191, %193 : vector<8x128xf32>
    %195 = arith.negf %194 : vector<8x128xf32>
    %196 = math.exp %195 : vector<8x128xf32>
    %cst_65 = arith.constant 1.000000e+00 : f32
    %197 = vector.broadcast %cst_65 : f32 to vector<8x128xf32>
    %198 = arith.addf %197, %196 : vector<8x128xf32>
    %199 = arith.divf %197, %198 : vector<8x128xf32>
    %200 = vector.extract_strided_slice %199 {offsets = [0, 0], sizes = [8, 32], strides = [1, 1]} : vector<8x128xf32> to vector<8x32xf32>
    %201 = vector.extract_strided_slice %199 {offsets = [0, 32], sizes = [8, 32], strides = [1, 1]} : vector<8x128xf32> to vector<8x32xf32>
    %202 = vector.extract_strided_slice %199 {offsets = [0, 64], sizes = [8, 32], strides = [1, 1]} : vector<8x128xf32> to vector<8x32xf32>
    %cst_66 = arith.constant 2.000000e+00 : f32
    %203 = vector.broadcast %cst_66 : f32 to vector<8x32xf32>
    %204 = arith.mulf %203, %202 : vector<8x32xf32>
    %cst_67 = arith.constant 1.000000e+00 : f32
    %205 = vector.broadcast %cst_67 : f32 to vector<8x32xf32>
    %206 = arith.subf %204, %205 : vector<8x32xf32>
    %207 = vector.extract_strided_slice %199 {offsets = [0, 96], sizes = [8, 32], strides = [1, 1]} : vector<8x128xf32> to vector<8x32xf32>
    %208 = arith.mulf %201, %164 : vector<8x32xf32>
    %209 = arith.mulf %200, %206 : vector<8x32xf32>
    %210 = arith.addf %208, %209 : vector<8x32xf32>
    %211 = math.tanh %210 : vector<8x32xf32>
    %212 = arith.mulf %207, %211 : vector<8x32xf32>
    %213 = tpu.concatenate %212, %190 in 1 : vector<8x32xf32>, vector<8x32xf32> -> vector<8x64xf32>
    %c0_68 = arith.constant 0 : index
    %c0_69 = arith.constant 0 : index
    %214 = vector.load %arg5[%c0_68, %c0_69] : memref<64x128xf32, #tpu.memory_space<vmem>>, vector<64x128xf32>
    %cst_70 = arith.constant dense<0.000000e+00> : vector<8x128xf32>
    %215 = tpu.matmul %213, %214, %cst_70 {dimension_numbers = #tpu.dot_dimension_numbers<[1], [0], [0], [1], [0, 0, 1, 1], [], []>} : vector<8x64xf32>, vector<64x128xf32>, vector<8x128xf32> -> vector<8x128xf32>
    %c0_71 = arith.constant 0 : index
    %c0_72 = arith.constant 0 : index
    %216 = vector.load %arg6[%c0_71, %c0_72] : memref<1x128xf32, #tpu.memory_space<vmem>>, vector<1x128xf32>
    %217 = vector.broadcast %216 : vector<1x128xf32> to vector<8x128xf32>
    %218 = arith.addf %215, %217 : vector<8x128xf32>
    %219 = arith.negf %218 : vector<8x128xf32>
    %220 = math.exp %219 : vector<8x128xf32>
    %cst_73 = arith.constant 1.000000e+00 : f32
    %221 = vector.broadcast %cst_73 : f32 to vector<8x128xf32>
    %222 = arith.addf %221, %220 : vector<8x128xf32>
    %223 = arith.divf %221, %222 : vector<8x128xf32>
    %224 = vector.extract_strided_slice %223 {offsets = [0, 0], sizes = [8, 32], strides = [1, 1]} : vector<8x128xf32> to vector<8x32xf32>
    %225 = vector.extract_strided_slice %223 {offsets = [0, 32], sizes = [8, 32], strides = [1, 1]} : vector<8x128xf32> to vector<8x32xf32>
    %226 = vector.extract_strided_slice %223 {offsets = [0, 64], sizes = [8, 32], strides = [1, 1]} : vector<8x128xf32> to vector<8x32xf32>
    %cst_74 = arith.constant 2.000000e+00 : f32
    %227 = vector.broadcast %cst_74 : f32 to vector<8x32xf32>
    %228 = arith.mulf %227, %226 : vector<8x32xf32>
    %cst_75 = arith.constant 1.000000e+00 : f32
    %229 = vector.broadcast %cst_75 : f32 to vector<8x32xf32>
    %230 = arith.subf %228, %229 : vector<8x32xf32>
    %231 = vector.extract_strided_slice %223 {offsets = [0, 96], sizes = [8, 32], strides = [1, 1]} : vector<8x128xf32> to vector<8x32xf32>
    %232 = arith.mulf %225, %188 : vector<8x32xf32>
    %233 = arith.mulf %224, %230 : vector<8x32xf32>
    %234 = arith.addf %232, %233 : vector<8x32xf32>
    %235 = math.tanh %234 : vector<8x32xf32>
    %236 = arith.mulf %231, %235 : vector<8x32xf32>
    %237 = vector.extract_strided_slice %5 {offsets = [40, 0], sizes = [8, 128], strides = [1, 1]} : vector<64x128xf32> to vector<8x128xf32>
    %c0_76 = arith.constant 0 : index
    %c0_77 = arith.constant 0 : index
    %238 = vector.load %arg3[%c0_76, %c0_77] : memref<32x128xf32, #tpu.memory_space<vmem>>, vector<32x128xf32>
    %cst_78 = arith.constant dense<0.000000e+00> : vector<8x128xf32>
    %239 = tpu.matmul %212, %238, %cst_78 {dimension_numbers = #tpu.dot_dimension_numbers<[1], [0], [0], [1], [0, 0, 1, 1], [], []>} : vector<8x32xf32>, vector<32x128xf32>, vector<8x128xf32> -> vector<8x128xf32>
    %240 = arith.addf %237, %239 : vector<8x128xf32>
    %241 = arith.negf %240 : vector<8x128xf32>
    %242 = math.exp %241 : vector<8x128xf32>
    %cst_79 = arith.constant 1.000000e+00 : f32
    %243 = vector.broadcast %cst_79 : f32 to vector<8x128xf32>
    %244 = arith.addf %243, %242 : vector<8x128xf32>
    %245 = arith.divf %243, %244 : vector<8x128xf32>
    %246 = vector.extract_strided_slice %245 {offsets = [0, 0], sizes = [8, 32], strides = [1, 1]} : vector<8x128xf32> to vector<8x32xf32>
    %247 = vector.extract_strided_slice %245 {offsets = [0, 32], sizes = [8, 32], strides = [1, 1]} : vector<8x128xf32> to vector<8x32xf32>
    %248 = vector.extract_strided_slice %245 {offsets = [0, 64], sizes = [8, 32], strides = [1, 1]} : vector<8x128xf32> to vector<8x32xf32>
    %cst_80 = arith.constant 2.000000e+00 : f32
    %249 = vector.broadcast %cst_80 : f32 to vector<8x32xf32>
    %250 = arith.mulf %249, %248 : vector<8x32xf32>
    %cst_81 = arith.constant 1.000000e+00 : f32
    %251 = vector.broadcast %cst_81 : f32 to vector<8x32xf32>
    %252 = arith.subf %250, %251 : vector<8x32xf32>
    %253 = vector.extract_strided_slice %245 {offsets = [0, 96], sizes = [8, 32], strides = [1, 1]} : vector<8x128xf32> to vector<8x32xf32>
    %254 = arith.mulf %247, %210 : vector<8x32xf32>
    %255 = arith.mulf %246, %252 : vector<8x32xf32>
    %256 = arith.addf %254, %255 : vector<8x32xf32>
    %257 = math.tanh %256 : vector<8x32xf32>
    %258 = arith.mulf %253, %257 : vector<8x32xf32>
    %259 = tpu.concatenate %258, %236 in 1 : vector<8x32xf32>, vector<8x32xf32> -> vector<8x64xf32>
    %c0_82 = arith.constant 0 : index
    %c0_83 = arith.constant 0 : index
    %260 = vector.load %arg5[%c0_82, %c0_83] : memref<64x128xf32, #tpu.memory_space<vmem>>, vector<64x128xf32>
    %cst_84 = arith.constant dense<0.000000e+00> : vector<8x128xf32>
    %261 = tpu.matmul %259, %260, %cst_84 {dimension_numbers = #tpu.dot_dimension_numbers<[1], [0], [0], [1], [0, 0, 1, 1], [], []>} : vector<8x64xf32>, vector<64x128xf32>, vector<8x128xf32> -> vector<8x128xf32>
    %c0_85 = arith.constant 0 : index
    %c0_86 = arith.constant 0 : index
    %262 = vector.load %arg6[%c0_85, %c0_86] : memref<1x128xf32, #tpu.memory_space<vmem>>, vector<1x128xf32>
    %263 = vector.broadcast %262 : vector<1x128xf32> to vector<8x128xf32>
    %264 = arith.addf %261, %263 : vector<8x128xf32>
    %265 = arith.negf %264 : vector<8x128xf32>
    %266 = math.exp %265 : vector<8x128xf32>
    %cst_87 = arith.constant 1.000000e+00 : f32
    %267 = vector.broadcast %cst_87 : f32 to vector<8x128xf32>
    %268 = arith.addf %267, %266 : vector<8x128xf32>
    %269 = arith.divf %267, %268 : vector<8x128xf32>
    %270 = vector.extract_strided_slice %269 {offsets = [0, 0], sizes = [8, 32], strides = [1, 1]} : vector<8x128xf32> to vector<8x32xf32>
    %271 = vector.extract_strided_slice %269 {offsets = [0, 32], sizes = [8, 32], strides = [1, 1]} : vector<8x128xf32> to vector<8x32xf32>
    %272 = vector.extract_strided_slice %269 {offsets = [0, 64], sizes = [8, 32], strides = [1, 1]} : vector<8x128xf32> to vector<8x32xf32>
    %cst_88 = arith.constant 2.000000e+00 : f32
    %273 = vector.broadcast %cst_88 : f32 to vector<8x32xf32>
    %274 = arith.mulf %273, %272 : vector<8x32xf32>
    %cst_89 = arith.constant 1.000000e+00 : f32
    %275 = vector.broadcast %cst_89 : f32 to vector<8x32xf32>
    %276 = arith.subf %274, %275 : vector<8x32xf32>
    %277 = vector.extract_strided_slice %269 {offsets = [0, 96], sizes = [8, 32], strides = [1, 1]} : vector<8x128xf32> to vector<8x32xf32>
    %278 = arith.mulf %271, %234 : vector<8x32xf32>
    %279 = arith.mulf %270, %276 : vector<8x32xf32>
    %280 = arith.addf %278, %279 : vector<8x32xf32>
    %281 = math.tanh %280 : vector<8x32xf32>
    %282 = arith.mulf %277, %281 : vector<8x32xf32>
    %283 = vector.extract_strided_slice %5 {offsets = [48, 0], sizes = [8, 128], strides = [1, 1]} : vector<64x128xf32> to vector<8x128xf32>
    %c0_90 = arith.constant 0 : index
    %c0_91 = arith.constant 0 : index
    %284 = vector.load %arg3[%c0_90, %c0_91] : memref<32x128xf32, #tpu.memory_space<vmem>>, vector<32x128xf32>
    %cst_92 = arith.constant dense<0.000000e+00> : vector<8x128xf32>
    %285 = tpu.matmul %258, %284, %cst_92 {dimension_numbers = #tpu.dot_dimension_numbers<[1], [0], [0], [1], [0, 0, 1, 1], [], []>} : vector<8x32xf32>, vector<32x128xf32>, vector<8x128xf32> -> vector<8x128xf32>
    %286 = arith.addf %283, %285 : vector<8x128xf32>
    %287 = arith.negf %286 : vector<8x128xf32>
    %288 = math.exp %287 : vector<8x128xf32>
    %cst_93 = arith.constant 1.000000e+00 : f32
    %289 = vector.broadcast %cst_93 : f32 to vector<8x128xf32>
    %290 = arith.addf %289, %288 : vector<8x128xf32>
    %291 = arith.divf %289, %290 : vector<8x128xf32>
    %292 = vector.extract_strided_slice %291 {offsets = [0, 0], sizes = [8, 32], strides = [1, 1]} : vector<8x128xf32> to vector<8x32xf32>
    %293 = vector.extract_strided_slice %291 {offsets = [0, 32], sizes = [8, 32], strides = [1, 1]} : vector<8x128xf32> to vector<8x32xf32>
    %294 = vector.extract_strided_slice %291 {offsets = [0, 64], sizes = [8, 32], strides = [1, 1]} : vector<8x128xf32> to vector<8x32xf32>
    %cst_94 = arith.constant 2.000000e+00 : f32
    %295 = vector.broadcast %cst_94 : f32 to vector<8x32xf32>
    %296 = arith.mulf %295, %294 : vector<8x32xf32>
    %cst_95 = arith.constant 1.000000e+00 : f32
    %297 = vector.broadcast %cst_95 : f32 to vector<8x32xf32>
    %298 = arith.subf %296, %297 : vector<8x32xf32>
    %299 = vector.extract_strided_slice %291 {offsets = [0, 96], sizes = [8, 32], strides = [1, 1]} : vector<8x128xf32> to vector<8x32xf32>
    %300 = arith.mulf %293, %256 : vector<8x32xf32>
    %301 = arith.mulf %292, %298 : vector<8x32xf32>
    %302 = arith.addf %300, %301 : vector<8x32xf32>
    %303 = math.tanh %302 : vector<8x32xf32>
    %304 = arith.mulf %299, %303 : vector<8x32xf32>
    %305 = tpu.concatenate %304, %282 in 1 : vector<8x32xf32>, vector<8x32xf32> -> vector<8x64xf32>
    %c0_96 = arith.constant 0 : index
    %c0_97 = arith.constant 0 : index
    %306 = vector.load %arg5[%c0_96, %c0_97] : memref<64x128xf32, #tpu.memory_space<vmem>>, vector<64x128xf32>
    %cst_98 = arith.constant dense<0.000000e+00> : vector<8x128xf32>
    %307 = tpu.matmul %305, %306, %cst_98 {dimension_numbers = #tpu.dot_dimension_numbers<[1], [0], [0], [1], [0, 0, 1, 1], [], []>} : vector<8x64xf32>, vector<64x128xf32>, vector<8x128xf32> -> vector<8x128xf32>
    %c0_99 = arith.constant 0 : index
    %c0_100 = arith.constant 0 : index
    %308 = vector.load %arg6[%c0_99, %c0_100] : memref<1x128xf32, #tpu.memory_space<vmem>>, vector<1x128xf32>
    %309 = vector.broadcast %308 : vector<1x128xf32> to vector<8x128xf32>
    %310 = arith.addf %307, %309 : vector<8x128xf32>
    %311 = arith.negf %310 : vector<8x128xf32>
    %312 = math.exp %311 : vector<8x128xf32>
    %cst_101 = arith.constant 1.000000e+00 : f32
    %313 = vector.broadcast %cst_101 : f32 to vector<8x128xf32>
    %314 = arith.addf %313, %312 : vector<8x128xf32>
    %315 = arith.divf %313, %314 : vector<8x128xf32>
    %316 = vector.extract_strided_slice %315 {offsets = [0, 0], sizes = [8, 32], strides = [1, 1]} : vector<8x128xf32> to vector<8x32xf32>
    %317 = vector.extract_strided_slice %315 {offsets = [0, 32], sizes = [8, 32], strides = [1, 1]} : vector<8x128xf32> to vector<8x32xf32>
    %318 = vector.extract_strided_slice %315 {offsets = [0, 64], sizes = [8, 32], strides = [1, 1]} : vector<8x128xf32> to vector<8x32xf32>
    %cst_102 = arith.constant 2.000000e+00 : f32
    %319 = vector.broadcast %cst_102 : f32 to vector<8x32xf32>
    %320 = arith.mulf %319, %318 : vector<8x32xf32>
    %cst_103 = arith.constant 1.000000e+00 : f32
    %321 = vector.broadcast %cst_103 : f32 to vector<8x32xf32>
    %322 = arith.subf %320, %321 : vector<8x32xf32>
    %323 = vector.extract_strided_slice %315 {offsets = [0, 96], sizes = [8, 32], strides = [1, 1]} : vector<8x128xf32> to vector<8x32xf32>
    %324 = arith.mulf %317, %280 : vector<8x32xf32>
    %325 = arith.mulf %316, %322 : vector<8x32xf32>
    %326 = arith.addf %324, %325 : vector<8x32xf32>
    %327 = math.tanh %326 : vector<8x32xf32>
    %328 = arith.mulf %323, %327 : vector<8x32xf32>
    %329 = vector.extract_strided_slice %5 {offsets = [56, 0], sizes = [8, 128], strides = [1, 1]} : vector<64x128xf32> to vector<8x128xf32>
    %c0_104 = arith.constant 0 : index
    %c0_105 = arith.constant 0 : index
    %330 = vector.load %arg3[%c0_104, %c0_105] : memref<32x128xf32, #tpu.memory_space<vmem>>, vector<32x128xf32>
    %cst_106 = arith.constant dense<0.000000e+00> : vector<8x128xf32>
    %331 = tpu.matmul %304, %330, %cst_106 {dimension_numbers = #tpu.dot_dimension_numbers<[1], [0], [0], [1], [0, 0, 1, 1], [], []>} : vector<8x32xf32>, vector<32x128xf32>, vector<8x128xf32> -> vector<8x128xf32>
    %332 = arith.addf %329, %331 : vector<8x128xf32>
    %333 = arith.negf %332 : vector<8x128xf32>
    %334 = math.exp %333 : vector<8x128xf32>
    %cst_107 = arith.constant 1.000000e+00 : f32
    %335 = vector.broadcast %cst_107 : f32 to vector<8x128xf32>
    %336 = arith.addf %335, %334 : vector<8x128xf32>
    %337 = arith.divf %335, %336 : vector<8x128xf32>
    %338 = vector.extract_strided_slice %337 {offsets = [0, 0], sizes = [8, 32], strides = [1, 1]} : vector<8x128xf32> to vector<8x32xf32>
    %339 = vector.extract_strided_slice %337 {offsets = [0, 32], sizes = [8, 32], strides = [1, 1]} : vector<8x128xf32> to vector<8x32xf32>
    %340 = vector.extract_strided_slice %337 {offsets = [0, 64], sizes = [8, 32], strides = [1, 1]} : vector<8x128xf32> to vector<8x32xf32>
    %cst_108 = arith.constant 2.000000e+00 : f32
    %341 = vector.broadcast %cst_108 : f32 to vector<8x32xf32>
    %342 = arith.mulf %341, %340 : vector<8x32xf32>
    %cst_109 = arith.constant 1.000000e+00 : f32
    %343 = vector.broadcast %cst_109 : f32 to vector<8x32xf32>
    %344 = arith.subf %342, %343 : vector<8x32xf32>
    %345 = vector.extract_strided_slice %337 {offsets = [0, 96], sizes = [8, 32], strides = [1, 1]} : vector<8x128xf32> to vector<8x32xf32>
    %346 = arith.mulf %339, %302 : vector<8x32xf32>
    %347 = arith.mulf %338, %344 : vector<8x32xf32>
    %348 = arith.addf %346, %347 : vector<8x32xf32>
    %349 = math.tanh %348 : vector<8x32xf32>
    %350 = arith.mulf %345, %349 : vector<8x32xf32>
    %351 = tpu.concatenate %350, %328 in 1 : vector<8x32xf32>, vector<8x32xf32> -> vector<8x64xf32>
    %c0_110 = arith.constant 0 : index
    %c0_111 = arith.constant 0 : index
    %352 = vector.load %arg5[%c0_110, %c0_111] : memref<64x128xf32, #tpu.memory_space<vmem>>, vector<64x128xf32>
    %cst_112 = arith.constant dense<0.000000e+00> : vector<8x128xf32>
    %353 = tpu.matmul %351, %352, %cst_112 {dimension_numbers = #tpu.dot_dimension_numbers<[1], [0], [0], [1], [0, 0, 1, 1], [], []>} : vector<8x64xf32>, vector<64x128xf32>, vector<8x128xf32> -> vector<8x128xf32>
    %c0_113 = arith.constant 0 : index
    %c0_114 = arith.constant 0 : index
    %354 = vector.load %arg6[%c0_113, %c0_114] : memref<1x128xf32, #tpu.memory_space<vmem>>, vector<1x128xf32>
    %355 = vector.broadcast %354 : vector<1x128xf32> to vector<8x128xf32>
    %356 = arith.addf %353, %355 : vector<8x128xf32>
    %357 = arith.negf %356 : vector<8x128xf32>
    %358 = math.exp %357 : vector<8x128xf32>
    %cst_115 = arith.constant 1.000000e+00 : f32
    %359 = vector.broadcast %cst_115 : f32 to vector<8x128xf32>
    %360 = arith.addf %359, %358 : vector<8x128xf32>
    %361 = arith.divf %359, %360 : vector<8x128xf32>
    %362 = vector.extract_strided_slice %361 {offsets = [0, 0], sizes = [8, 32], strides = [1, 1]} : vector<8x128xf32> to vector<8x32xf32>
    %363 = vector.extract_strided_slice %361 {offsets = [0, 32], sizes = [8, 32], strides = [1, 1]} : vector<8x128xf32> to vector<8x32xf32>
    %364 = vector.extract_strided_slice %361 {offsets = [0, 64], sizes = [8, 32], strides = [1, 1]} : vector<8x128xf32> to vector<8x32xf32>
    %cst_116 = arith.constant 2.000000e+00 : f32
    %365 = vector.broadcast %cst_116 : f32 to vector<8x32xf32>
    %366 = arith.mulf %365, %364 : vector<8x32xf32>
    %cst_117 = arith.constant 1.000000e+00 : f32
    %367 = vector.broadcast %cst_117 : f32 to vector<8x32xf32>
    %368 = arith.subf %366, %367 : vector<8x32xf32>
    %369 = vector.extract_strided_slice %361 {offsets = [0, 96], sizes = [8, 32], strides = [1, 1]} : vector<8x128xf32> to vector<8x32xf32>
    %370 = arith.mulf %363, %326 : vector<8x32xf32>
    %371 = arith.mulf %362, %368 : vector<8x32xf32>
    %372 = arith.addf %370, %371 : vector<8x32xf32>
    %373 = math.tanh %372 : vector<8x32xf32>
    %374 = arith.mulf %369, %373 : vector<8x32xf32>
    %c0_118 = arith.constant 0 : index
    %c0_119 = arith.constant 0 : index
    %375 = vector.load %arg7[%c0_118, %c0_119] : memref<32x40xf32, #tpu.memory_space<vmem>>, vector<32x40xf32>
    %cst_120 = arith.constant dense<0.000000e+00> : vector<8x40xf32>
    %376 = tpu.matmul %374, %375, %cst_120 {dimension_numbers = #tpu.dot_dimension_numbers<[1], [0], [0], [1], [0, 0, 1, 1], [], []>} : vector<8x32xf32>, vector<32x40xf32>, vector<8x40xf32> -> vector<8x40xf32>
    %c0_121 = arith.constant 0 : index
    %c0_122 = arith.constant 0 : index
    %377 = vector.load %arg8[%c0_121, %c0_122] : memref<1x40xf32, #tpu.memory_space<vmem>>, vector<1x40xf32>
    %378 = vector.broadcast %377 : vector<1x40xf32> to vector<8x40xf32>
    %379 = arith.addf %376, %378 : vector<8x40xf32>
    %380 = vector.extract_strided_slice %379 {offsets = [0, 0], sizes = [8, 20], strides = [1, 1]} : vector<8x40xf32> to vector<8x20xf32>
    %381 = vector.extract_strided_slice %379 {offsets = [0, 20], sizes = [8, 20], strides = [1, 1]} : vector<8x40xf32> to vector<8x20xf32>
    %cst_123 = arith.constant 5.000000e-01 : f32
    %382 = vector.broadcast %cst_123 : f32 to vector<8x20xf32>
    %383 = arith.mulf %382, %381 : vector<8x20xf32>
    %384 = math.exp %383 : vector<8x20xf32>
    %c0_124 = arith.constant 0 : index
    %c0_125 = arith.constant 0 : index
    %385 = vector.load %arg1[%c0_124, %c0_125] : memref<8x20xf32, #tpu.memory_space<vmem>>, vector<8x20xf32>
    %386 = arith.mulf %385, %384 : vector<8x20xf32>
    %387 = arith.addf %386, %380 : vector<8x20xf32>
    %cst_126 = arith.constant 0.000000e+00 : f32
    %388 = vector.broadcast %cst_126 : f32 to vector<8x4xf32>
    %389 = tpu.concatenate %379, %387, %388 in 1 : vector<8x40xf32>, vector<8x20xf32>, vector<8x4xf32> -> vector<8x64xf32>
    %c0_127 = arith.constant 0 : index
    %c0_128 = arith.constant 0 : index
    %390 = vector.load %arg18[%c0_127, %c0_128] : memref<8x64xf32, #tpu.memory_space<vmem>>, vector<8x64xf32>
    tpu.vector_store %arg18[%c0_127, %c0_128], %389 {strides = array<i32>} : memref<8x64xf32, #tpu.memory_space<vmem>>, vector<8x64xf32>,
    %c0_129 = arith.constant 0 : index
    %c0_130 = arith.constant 0 : index
    %391 = vector.load %arg9[%c0_129, %c0_130] : memref<20x32xf32, #tpu.memory_space<vmem>>, vector<20x32xf32>
    %cst_131 = arith.constant dense<0.000000e+00> : vector<8x32xf32>
    %392 = tpu.matmul %387, %391, %cst_131 {dimension_numbers = #tpu.dot_dimension_numbers<[1], [0], [0], [1], [0, 0, 1, 1], [], []>} : vector<8x20xf32>, vector<20x32xf32>, vector<8x32xf32> -> vector<8x32xf32>
    %c0_132 = arith.constant 0 : index
    %c0_133 = arith.constant 0 : index
    %393 = vector.load %arg10[%c0_132, %c0_133] : memref<1x32xf32, #tpu.memory_space<vmem>>, vector<1x32xf32>
    %394 = vector.broadcast %393 : vector<1x32xf32> to vector<8x32xf32>
    %395 = arith.addf %392, %394 : vector<8x32xf32>
    %c0_134 = arith.constant 0 : index
    %c0_135 = arith.constant 0 : index
    %396 = vector.load %arg11[%c0_134, %c0_135] : memref<32x128xf32, #tpu.memory_space<vmem>>, vector<32x128xf32>
    %cst_136 = arith.constant dense<0.000000e+00> : vector<8x128xf32>
    %397 = tpu.matmul %395, %396, %cst_136 {dimension_numbers = #tpu.dot_dimension_numbers<[1], [0], [0], [1], [0, 0, 1, 1], [], []>} : vector<8x32xf32>, vector<32x128xf32>, vector<8x128xf32> -> vector<8x128xf32>
    %c0_137 = arith.constant 0 : index
    %c0_138 = arith.constant 0 : index
    %398 = vector.load %arg12[%c0_137, %c0_138] : memref<1x128xf32, #tpu.memory_space<vmem>>, vector<1x128xf32>
    %399 = vector.broadcast %398 : vector<1x128xf32> to vector<8x128xf32>
    %400 = arith.addf %397, %399 : vector<8x128xf32>
    %401 = arith.negf %400 : vector<8x128xf32>
    %402 = math.exp %401 : vector<8x128xf32>
    %cst_139 = arith.constant 1.000000e+00 : f32
    %403 = vector.broadcast %cst_139 : f32 to vector<8x128xf32>
    %404 = arith.addf %403, %402 : vector<8x128xf32>
    %405 = arith.divf %403, %404 : vector<8x128xf32>
    %406 = vector.extract_strided_slice %405 {offsets = [0, 0], sizes = [8, 32], strides = [1, 1]} : vector<8x128xf32> to vector<8x32xf32>
    %407 = vector.extract_strided_slice %405 {offsets = [0, 32], sizes = [8, 32], strides = [1, 1]} : vector<8x128xf32> to vector<8x32xf32>
    %408 = vector.extract_strided_slice %405 {offsets = [0, 64], sizes = [8, 32], strides = [1, 1]} : vector<8x128xf32> to vector<8x32xf32>
    %cst_140 = arith.constant 2.000000e+00 : f32
    %409 = vector.broadcast %cst_140 : f32 to vector<8x32xf32>
    %410 = arith.mulf %409, %408 : vector<8x32xf32>
    %cst_141 = arith.constant 1.000000e+00 : f32
    %411 = vector.broadcast %cst_141 : f32 to vector<8x32xf32>
    %412 = arith.subf %410, %411 : vector<8x32xf32>
    %413 = vector.extract_strided_slice %405 {offsets = [0, 96], sizes = [8, 32], strides = [1, 1]} : vector<8x128xf32> to vector<8x32xf32>
    %414 = arith.mulf %407, %6 : vector<8x32xf32>
    %415 = arith.mulf %406, %412 : vector<8x32xf32>
    %416 = arith.addf %414, %415 : vector<8x32xf32>
    %417 = math.tanh %416 : vector<8x32xf32>
    %418 = arith.mulf %413, %417 : vector<8x32xf32>
    %419 = tpu.concatenate %418, %395 in 1 : vector<8x32xf32>, vector<8x32xf32> -> vector<8x64xf32>
    %c0_142 = arith.constant 0 : index
    %c0_143 = arith.constant 0 : index
    %420 = vector.load %arg13[%c0_142, %c0_143] : memref<64x128xf32, #tpu.memory_space<vmem>>, vector<64x128xf32>
    %cst_144 = arith.constant dense<0.000000e+00> : vector<8x128xf32>
    %421 = tpu.matmul %419, %420, %cst_144 {dimension_numbers = #tpu.dot_dimension_numbers<[1], [0], [0], [1], [0, 0, 1, 1], [], []>} : vector<8x64xf32>, vector<64x128xf32>, vector<8x128xf32> -> vector<8x128xf32>
    %c0_145 = arith.constant 0 : index
    %c0_146 = arith.constant 0 : index
    %422 = vector.load %arg14[%c0_145, %c0_146] : memref<1x128xf32, #tpu.memory_space<vmem>>, vector<1x128xf32>
    %423 = vector.broadcast %422 : vector<1x128xf32> to vector<8x128xf32>
    %424 = arith.addf %421, %423 : vector<8x128xf32>
    %425 = arith.negf %424 : vector<8x128xf32>
    %426 = math.exp %425 : vector<8x128xf32>
    %cst_147 = arith.constant 1.000000e+00 : f32
    %427 = vector.broadcast %cst_147 : f32 to vector<8x128xf32>
    %428 = arith.addf %427, %426 : vector<8x128xf32>
    %429 = arith.divf %427, %428 : vector<8x128xf32>
    %430 = vector.extract_strided_slice %429 {offsets = [0, 0], sizes = [8, 32], strides = [1, 1]} : vector<8x128xf32> to vector<8x32xf32>
    %431 = vector.extract_strided_slice %429 {offsets = [0, 32], sizes = [8, 32], strides = [1, 1]} : vector<8x128xf32> to vector<8x32xf32>
    %432 = vector.extract_strided_slice %429 {offsets = [0, 64], sizes = [8, 32], strides = [1, 1]} : vector<8x128xf32> to vector<8x32xf32>
    %cst_148 = arith.constant 2.000000e+00 : f32
    %433 = vector.broadcast %cst_148 : f32 to vector<8x32xf32>
    %434 = arith.mulf %433, %432 : vector<8x32xf32>
    %cst_149 = arith.constant 1.000000e+00 : f32
    %435 = vector.broadcast %cst_149 : f32 to vector<8x32xf32>
    %436 = arith.subf %434, %435 : vector<8x32xf32>
    %437 = vector.extract_strided_slice %429 {offsets = [0, 96], sizes = [8, 32], strides = [1, 1]} : vector<8x128xf32> to vector<8x32xf32>
    %438 = arith.mulf %431, %6 : vector<8x32xf32>
    %439 = arith.mulf %430, %436 : vector<8x32xf32>
    %440 = arith.addf %438, %439 : vector<8x32xf32>
    %441 = math.tanh %440 : vector<8x32xf32>
    %442 = arith.mulf %437, %441 : vector<8x32xf32>
    %c0_150 = arith.constant 0 : index
    %c0_151 = arith.constant 0 : index
    %443 = vector.load %arg19[%c0_150, %c0_151] : memref<64x32xf32, #tpu.memory_space<vmem>>, vector<8x32xf32>
    tpu.vector_store %arg19[%c0_150, %c0_151], %442 {strides = array<i32>} : memref<64x32xf32, #tpu.memory_space<vmem>>, vector<8x32xf32>,
    %c0_152 = arith.constant 0 : index
    %c0_153 = arith.constant 0 : index
    %444 = vector.load %arg11[%c0_152, %c0_153] : memref<32x128xf32, #tpu.memory_space<vmem>>, vector<32x128xf32>
    %cst_154 = arith.constant dense<0.000000e+00> : vector<8x128xf32>
    %445 = tpu.matmul %418, %444, %cst_154 {dimension_numbers = #tpu.dot_dimension_numbers<[1], [0], [0], [1], [0, 0, 1, 1], [], []>} : vector<8x32xf32>, vector<32x128xf32>, vector<8x128xf32> -> vector<8x128xf32>
    %c0_155 = arith.constant 0 : index
    %c0_156 = arith.constant 0 : index
    %446 = vector.load %arg12[%c0_155, %c0_156] : memref<1x128xf32, #tpu.memory_space<vmem>>, vector<1x128xf32>
    %447 = vector.broadcast %446 : vector<1x128xf32> to vector<8x128xf32>
    %448 = arith.addf %445, %447 : vector<8x128xf32>
    %449 = arith.negf %448 : vector<8x128xf32>
    %450 = math.exp %449 : vector<8x128xf32>
    %cst_157 = arith.constant 1.000000e+00 : f32
    %451 = vector.broadcast %cst_157 : f32 to vector<8x128xf32>
    %452 = arith.addf %451, %450 : vector<8x128xf32>
    %453 = arith.divf %451, %452 : vector<8x128xf32>
    %454 = vector.extract_strided_slice %453 {offsets = [0, 0], sizes = [8, 32], strides = [1, 1]} : vector<8x128xf32> to vector<8x32xf32>
    %455 = vector.extract_strided_slice %453 {offsets = [0, 32], sizes = [8, 32], strides = [1, 1]} : vector<8x128xf32> to vector<8x32xf32>
    %456 = vector.extract_strided_slice %453 {offsets = [0, 64], sizes = [8, 32], strides = [1, 1]} : vector<8x128xf32> to vector<8x32xf32>
    %cst_158 = arith.constant 2.000000e+00 : f32
    %457 = vector.broadcast %cst_158 : f32 to vector<8x32xf32>
    %458 = arith.mulf %457, %456 : vector<8x32xf32>
    %cst_159 = arith.constant 1.000000e+00 : f32
    %459 = vector.broadcast %cst_159 : f32 to vector<8x32xf32>
    %460 = arith.subf %458, %459 : vector<8x32xf32>
    %461 = vector.extract_strided_slice %453 {offsets = [0, 96], sizes = [8, 32], strides = [1, 1]} : vector<8x128xf32> to vector<8x32xf32>
    %462 = arith.mulf %455, %416 : vector<8x32xf32>
    %463 = arith.mulf %454, %460 : vector<8x32xf32>
    %464 = arith.addf %462, %463 : vector<8x32xf32>
    %465 = math.tanh %464 : vector<8x32xf32>
    %466 = arith.mulf %461, %465 : vector<8x32xf32>
    %467 = tpu.concatenate %466, %442 in 1 : vector<8x32xf32>, vector<8x32xf32> -> vector<8x64xf32>
    %c0_160 = arith.constant 0 : index
    %c0_161 = arith.constant 0 : index
    %468 = vector.load %arg13[%c0_160, %c0_161] : memref<64x128xf32, #tpu.memory_space<vmem>>, vector<64x128xf32>
    %cst_162 = arith.constant dense<0.000000e+00> : vector<8x128xf32>
    %469 = tpu.matmul %467, %468, %cst_162 {dimension_numbers = #tpu.dot_dimension_numbers<[1], [0], [0], [1], [0, 0, 1, 1], [], []>} : vector<8x64xf32>, vector<64x128xf32>, vector<8x128xf32> -> vector<8x128xf32>
    %c0_163 = arith.constant 0 : index
    %c0_164 = arith.constant 0 : index
    %470 = vector.load %arg14[%c0_163, %c0_164] : memref<1x128xf32, #tpu.memory_space<vmem>>, vector<1x128xf32>
    %471 = vector.broadcast %470 : vector<1x128xf32> to vector<8x128xf32>
    %472 = arith.addf %469, %471 : vector<8x128xf32>
    %473 = arith.negf %472 : vector<8x128xf32>
    %474 = math.exp %473 : vector<8x128xf32>
    %cst_165 = arith.constant 1.000000e+00 : f32
    %475 = vector.broadcast %cst_165 : f32 to vector<8x128xf32>
    %476 = arith.addf %475, %474 : vector<8x128xf32>
    %477 = arith.divf %475, %476 : vector<8x128xf32>
    %478 = vector.extract_strided_slice %477 {offsets = [0, 0], sizes = [8, 32], strides = [1, 1]} : vector<8x128xf32> to vector<8x32xf32>
    %479 = vector.extract_strided_slice %477 {offsets = [0, 32], sizes = [8, 32], strides = [1, 1]} : vector<8x128xf32> to vector<8x32xf32>
    %480 = vector.extract_strided_slice %477 {offsets = [0, 64], sizes = [8, 32], strides = [1, 1]} : vector<8x128xf32> to vector<8x32xf32>
    %cst_166 = arith.constant 2.000000e+00 : f32
    %481 = vector.broadcast %cst_166 : f32 to vector<8x32xf32>
    %482 = arith.mulf %481, %480 : vector<8x32xf32>
    %cst_167 = arith.constant 1.000000e+00 : f32
    %483 = vector.broadcast %cst_167 : f32 to vector<8x32xf32>
    %484 = arith.subf %482, %483 : vector<8x32xf32>
    %485 = vector.extract_strided_slice %477 {offsets = [0, 96], sizes = [8, 32], strides = [1, 1]} : vector<8x128xf32> to vector<8x32xf32>
    %486 = arith.mulf %479, %440 : vector<8x32xf32>
    %487 = arith.mulf %478, %484 : vector<8x32xf32>
    %488 = arith.addf %486, %487 : vector<8x32xf32>
    %489 = math.tanh %488 : vector<8x32xf32>
    %490 = arith.mulf %485, %489 : vector<8x32xf32>
    %c8 = arith.constant 8 : index
    %c0_168 = arith.constant 0 : index
    %491 = vector.load %arg19[%c8, %c0_168] : memref<64x32xf32, #tpu.memory_space<vmem>>, vector<8x32xf32>
    tpu.vector_store %arg19[%c8, %c0_168], %490 {strides = array<i32>} : memref<64x32xf32, #tpu.memory_space<vmem>>, vector<8x32xf32>,
    %c0_169 = arith.constant 0 : index
    %c0_170 = arith.constant 0 : index
    %492 = vector.load %arg11[%c0_169, %c0_170] : memref<32x128xf32, #tpu.memory_space<vmem>>, vector<32x128xf32>
    %cst_171 = arith.constant dense<0.000000e+00> : vector<8x128xf32>
    %493 = tpu.matmul %466, %492, %cst_171 {dimension_numbers = #tpu.dot_dimension_numbers<[1], [0], [0], [1], [0, 0, 1, 1], [], []>} : vector<8x32xf32>, vector<32x128xf32>, vector<8x128xf32> -> vector<8x128xf32>
    %c0_172 = arith.constant 0 : index
    %c0_173 = arith.constant 0 : index
    %494 = vector.load %arg12[%c0_172, %c0_173] : memref<1x128xf32, #tpu.memory_space<vmem>>, vector<1x128xf32>
    %495 = vector.broadcast %494 : vector<1x128xf32> to vector<8x128xf32>
    %496 = arith.addf %493, %495 : vector<8x128xf32>
    %497 = arith.negf %496 : vector<8x128xf32>
    %498 = math.exp %497 : vector<8x128xf32>
    %cst_174 = arith.constant 1.000000e+00 : f32
    %499 = vector.broadcast %cst_174 : f32 to vector<8x128xf32>
    %500 = arith.addf %499, %498 : vector<8x128xf32>
    %501 = arith.divf %499, %500 : vector<8x128xf32>
    %502 = vector.extract_strided_slice %501 {offsets = [0, 0], sizes = [8, 32], strides = [1, 1]} : vector<8x128xf32> to vector<8x32xf32>
    %503 = vector.extract_strided_slice %501 {offsets = [0, 32], sizes = [8, 32], strides = [1, 1]} : vector<8x128xf32> to vector<8x32xf32>
    %504 = vector.extract_strided_slice %501 {offsets = [0, 64], sizes = [8, 32], strides = [1, 1]} : vector<8x128xf32> to vector<8x32xf32>
    %cst_175 = arith.constant 2.000000e+00 : f32
    %505 = vector.broadcast %cst_175 : f32 to vector<8x32xf32>
    %506 = arith.mulf %505, %504 : vector<8x32xf32>
    %cst_176 = arith.constant 1.000000e+00 : f32
    %507 = vector.broadcast %cst_176 : f32 to vector<8x32xf32>
    %508 = arith.subf %506, %507 : vector<8x32xf32>
    %509 = vector.extract_strided_slice %501 {offsets = [0, 96], sizes = [8, 32], strides = [1, 1]} : vector<8x128xf32> to vector<8x32xf32>
    %510 = arith.mulf %503, %464 : vector<8x32xf32>
    %511 = arith.mulf %502, %508 : vector<8x32xf32>
    %512 = arith.addf %510, %511 : vector<8x32xf32>
    %513 = math.tanh %512 : vector<8x32xf32>
    %514 = arith.mulf %509, %513 : vector<8x32xf32>
    %515 = tpu.concatenate %514, %490 in 1 : vector<8x32xf32>, vector<8x32xf32> -> vector<8x64xf32>
    %c0_177 = arith.constant 0 : index
    %c0_178 = arith.constant 0 : index
    %516 = vector.load %arg13[%c0_177, %c0_178] : memref<64x128xf32, #tpu.memory_space<vmem>>, vector<64x128xf32>
    %cst_179 = arith.constant dense<0.000000e+00> : vector<8x128xf32>
    %517 = tpu.matmul %515, %516, %cst_179 {dimension_numbers = #tpu.dot_dimension_numbers<[1], [0], [0], [1], [0, 0, 1, 1], [], []>} : vector<8x64xf32>, vector<64x128xf32>, vector<8x128xf32> -> vector<8x128xf32>
    %c0_180 = arith.constant 0 : index
    %c0_181 = arith.constant 0 : index
    %518 = vector.load %arg14[%c0_180, %c0_181] : memref<1x128xf32, #tpu.memory_space<vmem>>, vector<1x128xf32>
    %519 = vector.broadcast %518 : vector<1x128xf32> to vector<8x128xf32>
    %520 = arith.addf %517, %519 : vector<8x128xf32>
    %521 = arith.negf %520 : vector<8x128xf32>
    %522 = math.exp %521 : vector<8x128xf32>
    %cst_182 = arith.constant 1.000000e+00 : f32
    %523 = vector.broadcast %cst_182 : f32 to vector<8x128xf32>
    %524 = arith.addf %523, %522 : vector<8x128xf32>
    %525 = arith.divf %523, %524 : vector<8x128xf32>
    %526 = vector.extract_strided_slice %525 {offsets = [0, 0], sizes = [8, 32], strides = [1, 1]} : vector<8x128xf32> to vector<8x32xf32>
    %527 = vector.extract_strided_slice %525 {offsets = [0, 32], sizes = [8, 32], strides = [1, 1]} : vector<8x128xf32> to vector<8x32xf32>
    %528 = vector.extract_strided_slice %525 {offsets = [0, 64], sizes = [8, 32], strides = [1, 1]} : vector<8x128xf32> to vector<8x32xf32>
    %cst_183 = arith.constant 2.000000e+00 : f32
    %529 = vector.broadcast %cst_183 : f32 to vector<8x32xf32>
    %530 = arith.mulf %529, %528 : vector<8x32xf32>
    %cst_184 = arith.constant 1.000000e+00 : f32
    %531 = vector.broadcast %cst_184 : f32 to vector<8x32xf32>
    %532 = arith.subf %530, %531 : vector<8x32xf32>
    %533 = vector.extract_strided_slice %525 {offsets = [0, 96], sizes = [8, 32], strides = [1, 1]} : vector<8x128xf32> to vector<8x32xf32>
    %534 = arith.mulf %527, %488 : vector<8x32xf32>
    %535 = arith.mulf %526, %532 : vector<8x32xf32>
    %536 = arith.addf %534, %535 : vector<8x32xf32>
    %537 = math.tanh %536 : vector<8x32xf32>
    %538 = arith.mulf %533, %537 : vector<8x32xf32>
    %c16 = arith.constant 16 : index
    %c0_185 = arith.constant 0 : index
    %539 = vector.load %arg19[%c16, %c0_185] : memref<64x32xf32, #tpu.memory_space<vmem>>, vector<8x32xf32>
    tpu.vector_store %arg19[%c16, %c0_185], %538 {strides = array<i32>} : memref<64x32xf32, #tpu.memory_space<vmem>>, vector<8x32xf32>,
    %c0_186 = arith.constant 0 : index
    %c0_187 = arith.constant 0 : index
    %540 = vector.load %arg11[%c0_186, %c0_187] : memref<32x128xf32, #tpu.memory_space<vmem>>, vector<32x128xf32>
    %cst_188 = arith.constant dense<0.000000e+00> : vector<8x128xf32>
    %541 = tpu.matmul %514, %540, %cst_188 {dimension_numbers = #tpu.dot_dimension_numbers<[1], [0], [0], [1], [0, 0, 1, 1], [], []>} : vector<8x32xf32>, vector<32x128xf32>, vector<8x128xf32> -> vector<8x128xf32>
    %c0_189 = arith.constant 0 : index
    %c0_190 = arith.constant 0 : index
    %542 = vector.load %arg12[%c0_189, %c0_190] : memref<1x128xf32, #tpu.memory_space<vmem>>, vector<1x128xf32>
    %543 = vector.broadcast %542 : vector<1x128xf32> to vector<8x128xf32>
    %544 = arith.addf %541, %543 : vector<8x128xf32>
    %545 = arith.negf %544 : vector<8x128xf32>
    %546 = math.exp %545 : vector<8x128xf32>
    %cst_191 = arith.constant 1.000000e+00 : f32
    %547 = vector.broadcast %cst_191 : f32 to vector<8x128xf32>
    %548 = arith.addf %547, %546 : vector<8x128xf32>
    %549 = arith.divf %547, %548 : vector<8x128xf32>
    %550 = vector.extract_strided_slice %549 {offsets = [0, 0], sizes = [8, 32], strides = [1, 1]} : vector<8x128xf32> to vector<8x32xf32>
    %551 = vector.extract_strided_slice %549 {offsets = [0, 32], sizes = [8, 32], strides = [1, 1]} : vector<8x128xf32> to vector<8x32xf32>
    %552 = vector.extract_strided_slice %549 {offsets = [0, 64], sizes = [8, 32], strides = [1, 1]} : vector<8x128xf32> to vector<8x32xf32>
    %cst_192 = arith.constant 2.000000e+00 : f32
    %553 = vector.broadcast %cst_192 : f32 to vector<8x32xf32>
    %554 = arith.mulf %553, %552 : vector<8x32xf32>
    %cst_193 = arith.constant 1.000000e+00 : f32
    %555 = vector.broadcast %cst_193 : f32 to vector<8x32xf32>
    %556 = arith.subf %554, %555 : vector<8x32xf32>
    %557 = vector.extract_strided_slice %549 {offsets = [0, 96], sizes = [8, 32], strides = [1, 1]} : vector<8x128xf32> to vector<8x32xf32>
    %558 = arith.mulf %551, %512 : vector<8x32xf32>
    %559 = arith.mulf %550, %556 : vector<8x32xf32>
    %560 = arith.addf %558, %559 : vector<8x32xf32>
    %561 = math.tanh %560 : vector<8x32xf32>
    %562 = arith.mulf %557, %561 : vector<8x32xf32>
    %563 = tpu.concatenate %562, %538 in 1 : vector<8x32xf32>, vector<8x32xf32> -> vector<8x64xf32>
    %c0_194 = arith.constant 0 : index
    %c0_195 = arith.constant 0 : index
    %564 = vector.load %arg13[%c0_194, %c0_195] : memref<64x128xf32, #tpu.memory_space<vmem>>, vector<64x128xf32>
    %cst_196 = arith.constant dense<0.000000e+00> : vector<8x128xf32>
    %565 = tpu.matmul %563, %564, %cst_196 {dimension_numbers = #tpu.dot_dimension_numbers<[1], [0], [0], [1], [0, 0, 1, 1], [], []>} : vector<8x64xf32>, vector<64x128xf32>, vector<8x128xf32> -> vector<8x128xf32>
    %c0_197 = arith.constant 0 : index
    %c0_198 = arith.constant 0 : index
    %566 = vector.load %arg14[%c0_197, %c0_198] : memref<1x128xf32, #tpu.memory_space<vmem>>, vector<1x128xf32>
    %567 = vector.broadcast %566 : vector<1x128xf32> to vector<8x128xf32>
    %568 = arith.addf %565, %567 : vector<8x128xf32>
    %569 = arith.negf %568 : vector<8x128xf32>
    %570 = math.exp %569 : vector<8x128xf32>
    %cst_199 = arith.constant 1.000000e+00 : f32
    %571 = vector.broadcast %cst_199 : f32 to vector<8x128xf32>
    %572 = arith.addf %571, %570 : vector<8x128xf32>
    %573 = arith.divf %571, %572 : vector<8x128xf32>
    %574 = vector.extract_strided_slice %573 {offsets = [0, 0], sizes = [8, 32], strides = [1, 1]} : vector<8x128xf32> to vector<8x32xf32>
    %575 = vector.extract_strided_slice %573 {offsets = [0, 32], sizes = [8, 32], strides = [1, 1]} : vector<8x128xf32> to vector<8x32xf32>
    %576 = vector.extract_strided_slice %573 {offsets = [0, 64], sizes = [8, 32], strides = [1, 1]} : vector<8x128xf32> to vector<8x32xf32>
    %cst_200 = arith.constant 2.000000e+00 : f32
    %577 = vector.broadcast %cst_200 : f32 to vector<8x32xf32>
    %578 = arith.mulf %577, %576 : vector<8x32xf32>
    %cst_201 = arith.constant 1.000000e+00 : f32
    %579 = vector.broadcast %cst_201 : f32 to vector<8x32xf32>
    %580 = arith.subf %578, %579 : vector<8x32xf32>
    %581 = vector.extract_strided_slice %573 {offsets = [0, 96], sizes = [8, 32], strides = [1, 1]} : vector<8x128xf32> to vector<8x32xf32>
    %582 = arith.mulf %575, %536 : vector<8x32xf32>
    %583 = arith.mulf %574, %580 : vector<8x32xf32>
    %584 = arith.addf %582, %583 : vector<8x32xf32>
    %585 = math.tanh %584 : vector<8x32xf32>
    %586 = arith.mulf %581, %585 : vector<8x32xf32>
    %c24 = arith.constant 24 : index
    %c0_202 = arith.constant 0 : index
    %587 = vector.load %arg19[%c24, %c0_202] : memref<64x32xf32, #tpu.memory_space<vmem>>, vector<8x32xf32>
    tpu.vector_store %arg19[%c24, %c0_202], %586 {strides = array<i32>} : memref<64x32xf32, #tpu.memory_space<vmem>>, vector<8x32xf32>,
    %c0_203 = arith.constant 0 : index
    %c0_204 = arith.constant 0 : index
    %588 = vector.load %arg11[%c0_203, %c0_204] : memref<32x128xf32, #tpu.memory_space<vmem>>, vector<32x128xf32>
    %cst_205 = arith.constant dense<0.000000e+00> : vector<8x128xf32>
    %589 = tpu.matmul %562, %588, %cst_205 {dimension_numbers = #tpu.dot_dimension_numbers<[1], [0], [0], [1], [0, 0, 1, 1], [], []>} : vector<8x32xf32>, vector<32x128xf32>, vector<8x128xf32> -> vector<8x128xf32>
    %c0_206 = arith.constant 0 : index
    %c0_207 = arith.constant 0 : index
    %590 = vector.load %arg12[%c0_206, %c0_207] : memref<1x128xf32, #tpu.memory_space<vmem>>, vector<1x128xf32>
    %591 = vector.broadcast %590 : vector<1x128xf32> to vector<8x128xf32>
    %592 = arith.addf %589, %591 : vector<8x128xf32>
    %593 = arith.negf %592 : vector<8x128xf32>
    %594 = math.exp %593 : vector<8x128xf32>
    %cst_208 = arith.constant 1.000000e+00 : f32
    %595 = vector.broadcast %cst_208 : f32 to vector<8x128xf32>
    %596 = arith.addf %595, %594 : vector<8x128xf32>
    %597 = arith.divf %595, %596 : vector<8x128xf32>
    %598 = vector.extract_strided_slice %597 {offsets = [0, 0], sizes = [8, 32], strides = [1, 1]} : vector<8x128xf32> to vector<8x32xf32>
    %599 = vector.extract_strided_slice %597 {offsets = [0, 32], sizes = [8, 32], strides = [1, 1]} : vector<8x128xf32> to vector<8x32xf32>
    %600 = vector.extract_strided_slice %597 {offsets = [0, 64], sizes = [8, 32], strides = [1, 1]} : vector<8x128xf32> to vector<8x32xf32>
    %cst_209 = arith.constant 2.000000e+00 : f32
    %601 = vector.broadcast %cst_209 : f32 to vector<8x32xf32>
    %602 = arith.mulf %601, %600 : vector<8x32xf32>
    %cst_210 = arith.constant 1.000000e+00 : f32
    %603 = vector.broadcast %cst_210 : f32 to vector<8x32xf32>
    %604 = arith.subf %602, %603 : vector<8x32xf32>
    %605 = vector.extract_strided_slice %597 {offsets = [0, 96], sizes = [8, 32], strides = [1, 1]} : vector<8x128xf32> to vector<8x32xf32>
    %606 = arith.mulf %599, %560 : vector<8x32xf32>
    %607 = arith.mulf %598, %604 : vector<8x32xf32>
    %608 = arith.addf %606, %607 : vector<8x32xf32>
    %609 = math.tanh %608 : vector<8x32xf32>
    %610 = arith.mulf %605, %609 : vector<8x32xf32>
    %611 = tpu.concatenate %610, %586 in 1 : vector<8x32xf32>, vector<8x32xf32> -> vector<8x64xf32>
    %c0_211 = arith.constant 0 : index
    %c0_212 = arith.constant 0 : index
    %612 = vector.load %arg13[%c0_211, %c0_212] : memref<64x128xf32, #tpu.memory_space<vmem>>, vector<64x128xf32>
    %cst_213 = arith.constant dense<0.000000e+00> : vector<8x128xf32>
    %613 = tpu.matmul %611, %612, %cst_213 {dimension_numbers = #tpu.dot_dimension_numbers<[1], [0], [0], [1], [0, 0, 1, 1], [], []>} : vector<8x64xf32>, vector<64x128xf32>, vector<8x128xf32> -> vector<8x128xf32>
    %c0_214 = arith.constant 0 : index
    %c0_215 = arith.constant 0 : index
    %614 = vector.load %arg14[%c0_214, %c0_215] : memref<1x128xf32, #tpu.memory_space<vmem>>, vector<1x128xf32>
    %615 = vector.broadcast %614 : vector<1x128xf32> to vector<8x128xf32>
    %616 = arith.addf %613, %615 : vector<8x128xf32>
    %617 = arith.negf %616 : vector<8x128xf32>
    %618 = math.exp %617 : vector<8x128xf32>
    %cst_216 = arith.constant 1.000000e+00 : f32
    %619 = vector.broadcast %cst_216 : f32 to vector<8x128xf32>
    %620 = arith.addf %619, %618 : vector<8x128xf32>
    %621 = arith.divf %619, %620 : vector<8x128xf32>
    %622 = vector.extract_strided_slice %621 {offsets = [0, 0], sizes = [8, 32], strides = [1, 1]} : vector<8x128xf32> to vector<8x32xf32>
    %623 = vector.extract_strided_slice %621 {offsets = [0, 32], sizes = [8, 32], strides = [1, 1]} : vector<8x128xf32> to vector<8x32xf32>
    %624 = vector.extract_strided_slice %621 {offsets = [0, 64], sizes = [8, 32], strides = [1, 1]} : vector<8x128xf32> to vector<8x32xf32>
    %cst_217 = arith.constant 2.000000e+00 : f32
    %625 = vector.broadcast %cst_217 : f32 to vector<8x32xf32>
    %626 = arith.mulf %625, %624 : vector<8x32xf32>
    %cst_218 = arith.constant 1.000000e+00 : f32
    %627 = vector.broadcast %cst_218 : f32 to vector<8x32xf32>
    %628 = arith.subf %626, %627 : vector<8x32xf32>
    %629 = vector.extract_strided_slice %621 {offsets = [0, 96], sizes = [8, 32], strides = [1, 1]} : vector<8x128xf32> to vector<8x32xf32>
    %630 = arith.mulf %623, %584 : vector<8x32xf32>
    %631 = arith.mulf %622, %628 : vector<8x32xf32>
    %632 = arith.addf %630, %631 : vector<8x32xf32>
    %633 = math.tanh %632 : vector<8x32xf32>
    %634 = arith.mulf %629, %633 : vector<8x32xf32>
    %c32 = arith.constant 32 : index
    %c0_219 = arith.constant 0 : index
    %635 = vector.load %arg19[%c32, %c0_219] : memref<64x32xf32, #tpu.memory_space<vmem>>, vector<8x32xf32>
    tpu.vector_store %arg19[%c32, %c0_219], %634 {strides = array<i32>} : memref<64x32xf32, #tpu.memory_space<vmem>>, vector<8x32xf32>,
    %c0_220 = arith.constant 0 : index
    %c0_221 = arith.constant 0 : index
    %636 = vector.load %arg11[%c0_220, %c0_221] : memref<32x128xf32, #tpu.memory_space<vmem>>, vector<32x128xf32>
    %cst_222 = arith.constant dense<0.000000e+00> : vector<8x128xf32>
    %637 = tpu.matmul %610, %636, %cst_222 {dimension_numbers = #tpu.dot_dimension_numbers<[1], [0], [0], [1], [0, 0, 1, 1], [], []>} : vector<8x32xf32>, vector<32x128xf32>, vector<8x128xf32> -> vector<8x128xf32>
    %c0_223 = arith.constant 0 : index
    %c0_224 = arith.constant 0 : index
    %638 = vector.load %arg12[%c0_223, %c0_224] : memref<1x128xf32, #tpu.memory_space<vmem>>, vector<1x128xf32>
    %639 = vector.broadcast %638 : vector<1x128xf32> to vector<8x128xf32>
    %640 = arith.addf %637, %639 : vector<8x128xf32>
    %641 = arith.negf %640 : vector<8x128xf32>
    %642 = math.exp %641 : vector<8x128xf32>
    %cst_225 = arith.constant 1.000000e+00 : f32
    %643 = vector.broadcast %cst_225 : f32 to vector<8x128xf32>
    %644 = arith.addf %643, %642 : vector<8x128xf32>
    %645 = arith.divf %643, %644 : vector<8x128xf32>
    %646 = vector.extract_strided_slice %645 {offsets = [0, 0], sizes = [8, 32], strides = [1, 1]} : vector<8x128xf32> to vector<8x32xf32>
    %647 = vector.extract_strided_slice %645 {offsets = [0, 32], sizes = [8, 32], strides = [1, 1]} : vector<8x128xf32> to vector<8x32xf32>
    %648 = vector.extract_strided_slice %645 {offsets = [0, 64], sizes = [8, 32], strides = [1, 1]} : vector<8x128xf32> to vector<8x32xf32>
    %cst_226 = arith.constant 2.000000e+00 : f32
    %649 = vector.broadcast %cst_226 : f32 to vector<8x32xf32>
    %650 = arith.mulf %649, %648 : vector<8x32xf32>
    %cst_227 = arith.constant 1.000000e+00 : f32
    %651 = vector.broadcast %cst_227 : f32 to vector<8x32xf32>
    %652 = arith.subf %650, %651 : vector<8x32xf32>
    %653 = vector.extract_strided_slice %645 {offsets = [0, 96], sizes = [8, 32], strides = [1, 1]} : vector<8x128xf32> to vector<8x32xf32>
    %654 = arith.mulf %647, %608 : vector<8x32xf32>
    %655 = arith.mulf %646, %652 : vector<8x32xf32>
    %656 = arith.addf %654, %655 : vector<8x32xf32>
    %657 = math.tanh %656 : vector<8x32xf32>
    %658 = arith.mulf %653, %657 : vector<8x32xf32>
    %659 = tpu.concatenate %658, %634 in 1 : vector<8x32xf32>, vector<8x32xf32> -> vector<8x64xf32>
    %c0_228 = arith.constant 0 : index
    %c0_229 = arith.constant 0 : index
    %660 = vector.load %arg13[%c0_228, %c0_229] : memref<64x128xf32, #tpu.memory_space<vmem>>, vector<64x128xf32>
    %cst_230 = arith.constant dense<0.000000e+00> : vector<8x128xf32>
    %661 = tpu.matmul %659, %660, %cst_230 {dimension_numbers = #tpu.dot_dimension_numbers<[1], [0], [0], [1], [0, 0, 1, 1], [], []>} : vector<8x64xf32>, vector<64x128xf32>, vector<8x128xf32> -> vector<8x128xf32>
    %c0_231 = arith.constant 0 : index
    %c0_232 = arith.constant 0 : index
    %662 = vector.load %arg14[%c0_231, %c0_232] : memref<1x128xf32, #tpu.memory_space<vmem>>, vector<1x128xf32>
    %663 = vector.broadcast %662 : vector<1x128xf32> to vector<8x128xf32>
    %664 = arith.addf %661, %663 : vector<8x128xf32>
    %665 = arith.negf %664 : vector<8x128xf32>
    %666 = math.exp %665 : vector<8x128xf32>
    %cst_233 = arith.constant 1.000000e+00 : f32
    %667 = vector.broadcast %cst_233 : f32 to vector<8x128xf32>
    %668 = arith.addf %667, %666 : vector<8x128xf32>
    %669 = arith.divf %667, %668 : vector<8x128xf32>
    %670 = vector.extract_strided_slice %669 {offsets = [0, 0], sizes = [8, 32], strides = [1, 1]} : vector<8x128xf32> to vector<8x32xf32>
    %671 = vector.extract_strided_slice %669 {offsets = [0, 32], sizes = [8, 32], strides = [1, 1]} : vector<8x128xf32> to vector<8x32xf32>
    %672 = vector.extract_strided_slice %669 {offsets = [0, 64], sizes = [8, 32], strides = [1, 1]} : vector<8x128xf32> to vector<8x32xf32>
    %cst_234 = arith.constant 2.000000e+00 : f32
    %673 = vector.broadcast %cst_234 : f32 to vector<8x32xf32>
    %674 = arith.mulf %673, %672 : vector<8x32xf32>
    %cst_235 = arith.constant 1.000000e+00 : f32
    %675 = vector.broadcast %cst_235 : f32 to vector<8x32xf32>
    %676 = arith.subf %674, %675 : vector<8x32xf32>
    %677 = vector.extract_strided_slice %669 {offsets = [0, 96], sizes = [8, 32], strides = [1, 1]} : vector<8x128xf32> to vector<8x32xf32>
    %678 = arith.mulf %671, %632 : vector<8x32xf32>
    %679 = arith.mulf %670, %676 : vector<8x32xf32>
    %680 = arith.addf %678, %679 : vector<8x32xf32>
    %681 = math.tanh %680 : vector<8x32xf32>
    %682 = arith.mulf %677, %681 : vector<8x32xf32>
    %c40 = arith.constant 40 : index
    %c0_236 = arith.constant 0 : index
    %683 = vector.load %arg19[%c40, %c0_236] : memref<64x32xf32, #tpu.memory_space<vmem>>, vector<8x32xf32>
    tpu.vector_store %arg19[%c40, %c0_236], %682 {strides = array<i32>} : memref<64x32xf32, #tpu.memory_space<vmem>>, vector<8x32xf32>,
    %c0_237 = arith.constant 0 : index
    %c0_238 = arith.constant 0 : index
    %684 = vector.load %arg11[%c0_237, %c0_238] : memref<32x128xf32, #tpu.memory_space<vmem>>, vector<32x128xf32>
    %cst_239 = arith.constant dense<0.000000e+00> : vector<8x128xf32>
    %685 = tpu.matmul %658, %684, %cst_239 {dimension_numbers = #tpu.dot_dimension_numbers<[1], [0], [0], [1], [0, 0, 1, 1], [], []>} : vector<8x32xf32>, vector<32x128xf32>, vector<8x128xf32> -> vector<8x128xf32>
    %c0_240 = arith.constant 0 : index
    %c0_241 = arith.constant 0 : index
    %686 = vector.load %arg12[%c0_240, %c0_241] : memref<1x128xf32, #tpu.memory_space<vmem>>, vector<1x128xf32>
    %687 = vector.broadcast %686 : vector<1x128xf32> to vector<8x128xf32>
    %688 = arith.addf %685, %687 : vector<8x128xf32>
    %689 = arith.negf %688 : vector<8x128xf32>
    %690 = math.exp %689 : vector<8x128xf32>
    %cst_242 = arith.constant 1.000000e+00 : f32
    %691 = vector.broadcast %cst_242 : f32 to vector<8x128xf32>
    %692 = arith.addf %691, %690 : vector<8x128xf32>
    %693 = arith.divf %691, %692 : vector<8x128xf32>
    %694 = vector.extract_strided_slice %693 {offsets = [0, 0], sizes = [8, 32], strides = [1, 1]} : vector<8x128xf32> to vector<8x32xf32>
    %695 = vector.extract_strided_slice %693 {offsets = [0, 32], sizes = [8, 32], strides = [1, 1]} : vector<8x128xf32> to vector<8x32xf32>
    %696 = vector.extract_strided_slice %693 {offsets = [0, 64], sizes = [8, 32], strides = [1, 1]} : vector<8x128xf32> to vector<8x32xf32>
    %cst_243 = arith.constant 2.000000e+00 : f32
    %697 = vector.broadcast %cst_243 : f32 to vector<8x32xf32>
    %698 = arith.mulf %697, %696 : vector<8x32xf32>
    %cst_244 = arith.constant 1.000000e+00 : f32
    %699 = vector.broadcast %cst_244 : f32 to vector<8x32xf32>
    %700 = arith.subf %698, %699 : vector<8x32xf32>
    %701 = vector.extract_strided_slice %693 {offsets = [0, 96], sizes = [8, 32], strides = [1, 1]} : vector<8x128xf32> to vector<8x32xf32>
    %702 = arith.mulf %695, %656 : vector<8x32xf32>
    %703 = arith.mulf %694, %700 : vector<8x32xf32>
    %704 = arith.addf %702, %703 : vector<8x32xf32>
    %705 = math.tanh %704 : vector<8x32xf32>
    %706 = arith.mulf %701, %705 : vector<8x32xf32>
    %707 = tpu.concatenate %706, %682 in 1 : vector<8x32xf32>, vector<8x32xf32> -> vector<8x64xf32>
    %c0_245 = arith.constant 0 : index
    %c0_246 = arith.constant 0 : index
    %708 = vector.load %arg13[%c0_245, %c0_246] : memref<64x128xf32, #tpu.memory_space<vmem>>, vector<64x128xf32>
    %cst_247 = arith.constant dense<0.000000e+00> : vector<8x128xf32>
    %709 = tpu.matmul %707, %708, %cst_247 {dimension_numbers = #tpu.dot_dimension_numbers<[1], [0], [0], [1], [0, 0, 1, 1], [], []>} : vector<8x64xf32>, vector<64x128xf32>, vector<8x128xf32> -> vector<8x128xf32>
    %c0_248 = arith.constant 0 : index
    %c0_249 = arith.constant 0 : index
    %710 = vector.load %arg14[%c0_248, %c0_249] : memref<1x128xf32, #tpu.memory_space<vmem>>, vector<1x128xf32>
    %711 = vector.broadcast %710 : vector<1x128xf32> to vector<8x128xf32>
    %712 = arith.addf %709, %711 : vector<8x128xf32>
    %713 = arith.negf %712 : vector<8x128xf32>
    %714 = math.exp %713 : vector<8x128xf32>
    %cst_250 = arith.constant 1.000000e+00 : f32
    %715 = vector.broadcast %cst_250 : f32 to vector<8x128xf32>
    %716 = arith.addf %715, %714 : vector<8x128xf32>
    %717 = arith.divf %715, %716 : vector<8x128xf32>
    %718 = vector.extract_strided_slice %717 {offsets = [0, 0], sizes = [8, 32], strides = [1, 1]} : vector<8x128xf32> to vector<8x32xf32>
    %719 = vector.extract_strided_slice %717 {offsets = [0, 32], sizes = [8, 32], strides = [1, 1]} : vector<8x128xf32> to vector<8x32xf32>
    %720 = vector.extract_strided_slice %717 {offsets = [0, 64], sizes = [8, 32], strides = [1, 1]} : vector<8x128xf32> to vector<8x32xf32>
    %cst_251 = arith.constant 2.000000e+00 : f32
    %721 = vector.broadcast %cst_251 : f32 to vector<8x32xf32>
    %722 = arith.mulf %721, %720 : vector<8x32xf32>
    %cst_252 = arith.constant 1.000000e+00 : f32
    %723 = vector.broadcast %cst_252 : f32 to vector<8x32xf32>
    %724 = arith.subf %722, %723 : vector<8x32xf32>
    %725 = vector.extract_strided_slice %717 {offsets = [0, 96], sizes = [8, 32], strides = [1, 1]} : vector<8x128xf32> to vector<8x32xf32>
    %726 = arith.mulf %719, %680 : vector<8x32xf32>
    %727 = arith.mulf %718, %724 : vector<8x32xf32>
    %728 = arith.addf %726, %727 : vector<8x32xf32>
    %729 = math.tanh %728 : vector<8x32xf32>
    %730 = arith.mulf %725, %729 : vector<8x32xf32>
    %c48 = arith.constant 48 : index
    %c0_253 = arith.constant 0 : index
    %731 = vector.load %arg19[%c48, %c0_253] : memref<64x32xf32, #tpu.memory_space<vmem>>, vector<8x32xf32>
    tpu.vector_store %arg19[%c48, %c0_253], %730 {strides = array<i32>} : memref<64x32xf32, #tpu.memory_space<vmem>>, vector<8x32xf32>,
    %c0_254 = arith.constant 0 : index
    %c0_255 = arith.constant 0 : index
    %732 = vector.load %arg11[%c0_254, %c0_255] : memref<32x128xf32, #tpu.memory_space<vmem>>, vector<32x128xf32>
    %cst_256 = arith.constant dense<0.000000e+00> : vector<8x128xf32>
    %733 = tpu.matmul %706, %732, %cst_256 {dimension_numbers = #tpu.dot_dimension_numbers<[1], [0], [0], [1], [0, 0, 1, 1], [], []>} : vector<8x32xf32>, vector<32x128xf32>, vector<8x128xf32> -> vector<8x128xf32>
    %c0_257 = arith.constant 0 : index
    %c0_258 = arith.constant 0 : index
    %734 = vector.load %arg12[%c0_257, %c0_258] : memref<1x128xf32, #tpu.memory_space<vmem>>, vector<1x128xf32>
    %735 = vector.broadcast %734 : vector<1x128xf32> to vector<8x128xf32>
    %736 = arith.addf %733, %735 : vector<8x128xf32>
    %737 = arith.negf %736 : vector<8x128xf32>
    %738 = math.exp %737 : vector<8x128xf32>
    %cst_259 = arith.constant 1.000000e+00 : f32
    %739 = vector.broadcast %cst_259 : f32 to vector<8x128xf32>
    %740 = arith.addf %739, %738 : vector<8x128xf32>
    %741 = arith.divf %739, %740 : vector<8x128xf32>
    %742 = vector.extract_strided_slice %741 {offsets = [0, 0], sizes = [8, 32], strides = [1, 1]} : vector<8x128xf32> to vector<8x32xf32>
    %743 = vector.extract_strided_slice %741 {offsets = [0, 32], sizes = [8, 32], strides = [1, 1]} : vector<8x128xf32> to vector<8x32xf32>
    %744 = vector.extract_strided_slice %741 {offsets = [0, 64], sizes = [8, 32], strides = [1, 1]} : vector<8x128xf32> to vector<8x32xf32>
    %cst_260 = arith.constant 2.000000e+00 : f32
    %745 = vector.broadcast %cst_260 : f32 to vector<8x32xf32>
    %746 = arith.mulf %745, %744 : vector<8x32xf32>
    %cst_261 = arith.constant 1.000000e+00 : f32
    %747 = vector.broadcast %cst_261 : f32 to vector<8x32xf32>
    %748 = arith.subf %746, %747 : vector<8x32xf32>
    %749 = vector.extract_strided_slice %741 {offsets = [0, 96], sizes = [8, 32], strides = [1, 1]} : vector<8x128xf32> to vector<8x32xf32>
    %750 = arith.mulf %743, %704 : vector<8x32xf32>
    %751 = arith.mulf %742, %748 : vector<8x32xf32>
    %752 = arith.addf %750, %751 : vector<8x32xf32>
    %753 = math.tanh %752 : vector<8x32xf32>
    %754 = arith.mulf %749, %753 : vector<8x32xf32>
    %755 = tpu.concatenate %754, %730 in 1 : vector<8x32xf32>, vector<8x32xf32> -> vector<8x64xf32>
    %c0_262 = arith.constant 0 : index
    %c0_263 = arith.constant 0 : index
    %756 = vector.load %arg13[%c0_262, %c0_263] : memref<64x128xf32, #tpu.memory_space<vmem>>, vector<64x128xf32>
    %cst_264 = arith.constant dense<0.000000e+00> : vector<8x128xf32>
    %757 = tpu.matmul %755, %756, %cst_264 {dimension_numbers = #tpu.dot_dimension_numbers<[1], [0], [0], [1], [0, 0, 1, 1], [], []>} : vector<8x64xf32>, vector<64x128xf32>, vector<8x128xf32> -> vector<8x128xf32>
    %c0_265 = arith.constant 0 : index
    %c0_266 = arith.constant 0 : index
    %758 = vector.load %arg14[%c0_265, %c0_266] : memref<1x128xf32, #tpu.memory_space<vmem>>, vector<1x128xf32>
    %759 = vector.broadcast %758 : vector<1x128xf32> to vector<8x128xf32>
    %760 = arith.addf %757, %759 : vector<8x128xf32>
    %761 = arith.negf %760 : vector<8x128xf32>
    %762 = math.exp %761 : vector<8x128xf32>
    %cst_267 = arith.constant 1.000000e+00 : f32
    %763 = vector.broadcast %cst_267 : f32 to vector<8x128xf32>
    %764 = arith.addf %763, %762 : vector<8x128xf32>
    %765 = arith.divf %763, %764 : vector<8x128xf32>
    %766 = vector.extract_strided_slice %765 {offsets = [0, 0], sizes = [8, 32], strides = [1, 1]} : vector<8x128xf32> to vector<8x32xf32>
    %767 = vector.extract_strided_slice %765 {offsets = [0, 32], sizes = [8, 32], strides = [1, 1]} : vector<8x128xf32> to vector<8x32xf32>
    %768 = vector.extract_strided_slice %765 {offsets = [0, 64], sizes = [8, 32], strides = [1, 1]} : vector<8x128xf32> to vector<8x32xf32>
    %cst_268 = arith.constant 2.000000e+00 : f32
    %769 = vector.broadcast %cst_268 : f32 to vector<8x32xf32>
    %770 = arith.mulf %769, %768 : vector<8x32xf32>
    %cst_269 = arith.constant 1.000000e+00 : f32
    %771 = vector.broadcast %cst_269 : f32 to vector<8x32xf32>
    %772 = arith.subf %770, %771 : vector<8x32xf32>
    %773 = vector.extract_strided_slice %765 {offsets = [0, 96], sizes = [8, 32], strides = [1, 1]} : vector<8x128xf32> to vector<8x32xf32>
    %774 = arith.mulf %767, %728 : vector<8x32xf32>
    %775 = arith.mulf %766, %772 : vector<8x32xf32>
    %776 = arith.addf %774, %775 : vector<8x32xf32>
    %777 = math.tanh %776 : vector<8x32xf32>
    %778 = arith.mulf %773, %777 : vector<8x32xf32>
    %c56 = arith.constant 56 : index
    %c0_270 = arith.constant 0 : index
    %779 = vector.load %arg19[%c56, %c0_270] : memref<64x32xf32, #tpu.memory_space<vmem>>, vector<8x32xf32>
    tpu.vector_store %arg19[%c56, %c0_270], %778 {strides = array<i32>} : memref<64x32xf32, #tpu.memory_space<vmem>>, vector<8x32xf32>,
    %c0_271 = arith.constant 0 : index
    %c0_272 = arith.constant 0 : index
    %780 = vector.load %arg19[%c0_271, %c0_272] : memref<64x32xf32, #tpu.memory_space<vmem>>, vector<64x32xf32>
    %c0_273 = arith.constant 0 : index
    %c0_274 = arith.constant 0 : index
    %781 = vector.load %arg15[%c0_273, %c0_274] : memref<32x4xf32, #tpu.memory_space<vmem>>, vector<32x4xf32>
    %cst_275 = arith.constant dense<0.000000e+00> : vector<64x4xf32>
    %782 = tpu.matmul %780, %781, %cst_275 {dimension_numbers = #tpu.dot_dimension_numbers<[1], [0], [0], [1], [0, 0, 1, 1], [], []>} : vector<64x32xf32>, vector<32x4xf32>, vector<64x4xf32> -> vector<64x4xf32>
    %c0_276 = arith.constant 0 : index
    %c0_277 = arith.constant 0 : index
    %783 = vector.load %arg16[%c0_276, %c0_277] : memref<1x4xf32, #tpu.memory_space<vmem>>, vector<1x4xf32>
    %784 = vector.broadcast %783 : vector<1x4xf32> to vector<64x4xf32>
    %785 = arith.addf %782, %784 : vector<64x4xf32>
    %c0_278 = arith.constant 0 : index
    %c0_279 = arith.constant 0 : index
    %786 = vector.load %arg17[%c0_278, %c0_279] : memref<64x4xf32, #tpu.memory_space<vmem>>, vector<64x4xf32>
    tpu.vector_store %arg17[%c0_278, %c0_279], %785 {strides = array<i32>} : memref<64x4xf32, #tpu.memory_space<vmem>>, vector<64x4xf32>,
    return
  }
}

</mosaic_0001>

<llo_original>
// kernel: vae_forward.1
$region0: #{vae_forward.1}
  #allocation0 [shape = 'u32[]', space=smem, size = 0x4, offset = 0x4, fixed_abs, tag = 'smem constant byte address 0x4 - core index']
  #allocation1 [shape = 'u32[144,128]{1,0:T(1,128)}', space=vmem, size = 0x12000, scoped, tag = 'internal scratch']
  #allocation2 [shape = 'f32[64,32]{1,0:T(8,128)}', space=vmem, size = 0x8000, scoped, tag = 'scratch operand']
  %s0 = inlined_call_operand.vmem [shape: f32[64,4], index: 0, kind: input, shape index: {}]
  %s1 = inlined_call_operand.hbm [shape: f32[8,20], index: 1, kind: input, shape index: {}]
  %s2 = inlined_call_operand.hbm [shape: f32[4,128], index: 2, kind: input, shape index: {}]
  %s3 = inlined_call_operand.hbm [shape: f32[32,128], index: 3, kind: input, shape index: {}]
  %s4 = inlined_call_operand.vmem [shape: f32[1,128], index: 4, kind: input, shape index: {}]
  %s5 = inlined_call_operand.vmem [shape: f32[64,128], index: 5, kind: input, shape index: {}]
  %s6 = inlined_call_operand.vmem [shape: f32[1,128], index: 6, kind: input, shape index: {}]
  %s7 = inlined_call_operand.vmem [shape: f32[32,40], index: 7, kind: input, shape index: {}]
  %s8 = inlined_call_operand.hbm [shape: f32[1,40], index: 8, kind: input, shape index: {}]
  %s9 = inlined_call_operand.hbm [shape: f32[20,32], index: 9, kind: input, shape index: {}]
  %s10 = inlined_call_operand.vmem [shape: f32[1,32], index: 10, kind: input, shape index: {}]
  %s11 = inlined_call_operand.hbm [shape: f32[32,128], index: 11, kind: input, shape index: {}]
  %s12 = inlined_call_operand.vmem [shape: f32[1,128], index: 12, kind: input, shape index: {}]
  %s13 = inlined_call_operand.vmem [shape: f32[64,128], index: 13, kind: input, shape index: {}]
  %s14 = inlined_call_operand.vmem [shape: f32[1,128], index: 14, kind: input, shape index: {}]
  %s15 = inlined_call_operand.vmem [shape: f32[32,4], index: 15, kind: input, shape index: {}]
  %s16 = inlined_call_operand.vmem [shape: f32[1,4], index: 16, kind: input, shape index: {}]
  %s17 = inlined_call_operand.vmem [shape: f32[64,4], index: 17, kind: output, shape index: {0}]
  %s18 = inlined_call_operand.vmem [shape: f32[8,64], index: 18, kind: output, shape index: {1}]
  %19 = xla_tuple %s17, %s18
  %s20 = sld [smem:[#allocation0]]
  $region110: #{vae_forward.1} parent=0
    _
  %s22 = ssub.s32 1, %s20
  %s23 = scalar_select 0, %s22, %s20
  $region1: #{vae_forward.1} parent=0
    #allocation3 [shape = 'u8[4096]{0}', space=vmem, size = 0x1000, scoped, tag = 'input window, operand 1, single buffered']
    #allocation4 [shape = 's32[1]{0}', space=sflag, size = 0x4, scoped, tag = 'scoped memory for vae_forward.1']
    #allocation5 [shape = 'u8[2048]{0}', space=vmem, size = 0x800, scoped, tag = 'input window, operand 2, single buffered']
    #allocation6 [shape = 's32[1]{0}', space=sflag, size = 0x4, scoped, tag = 'scoped memory for vae_forward.1']
    #allocation7 [shape = 'u8[16384]{0}', space=vmem, size = 0x4000, scoped, tag = 'input window, operand 3, single buffered']
    #allocation8 [shape = 'u8[512]{0}', space=vmem, size = 0x400, scoped, tag = 'input window, operand 8, single buffered']
    #allocation9 [shape = 's32[1]{0}', space=sflag, size = 0x4, scoped, tag = 'scoped memory for vae_forward.1']
    #allocation10 [shape = 'u8[12288]{0}', space=vmem, size = 0x3000, scoped, tag = 'input window, operand 9, single buffered']
    #allocation11 [shape = 'u8[16384]{0}', space=vmem, size = 0x4000, scoped, tag = 'input window, operand 11, single buffered']
    #allocation12 [shape = 's32[1]{0}', space=sflag, size = 0x4, scoped, tag = 'scoped memory for vae_forward.1']
    %24 = vsyncpa [#allocation4], 0
    %25 = vsyncpa [#allocation6], 0
    %26 = vsyncpa [#allocation9], 0
    %27 = vsyncpa [#allocation12], 0
    // Predicated region
    $region2: #{vae_forward.1} parent=1 // pred_check
      _
    $region3: #{vae_forward.1} parent=1 // pred_check_branch
      %29 = sbr.rel (0) target = $region5
    $region4: #{vae_forward.1} parent=1 // pred_region
      _
    $region5: #{vae_forward.1} parent=1 // pred_fallthru
      _
    // Predicated region
    $region6: #{vae_forward.1} parent=1 // pred_check
      _
    $region7: #{vae_forward.1} parent=1 // pred_check_branch
      %31 = sbr.rel (0) target = $region9
    $region8: #{vae_forward.1} parent=1 // pred_region
      %s33 = ssub.s32 128, 128
      %34 = vsyncadd [#allocation4], %s33
      %s36 = sshll.u32 [#allocation3], 4
      %s37 = int_to_ptr.vmem [resolvable:$true] %s36
      %39 = dma.hbm_to_vmem [thread:$0]  %s1, 128, %s37, [#allocation4]
    $region9: #{vae_forward.1} parent=1 // pred_fallthru
      _
    // Predicated region
    $region10: #{vae_forward.1} parent=1 // pred_check
      _
    $region11: #{vae_forward.1} parent=1 // pred_check_branch
      %41 = sbr.rel (0) target = $region13
    $region12: #{vae_forward.1} parent=1 // pred_region
      %s43 = ssub.s32 64, 64
      %44 = vsyncadd [#allocation6], %s43
      %s46 = sshll.u32 [#allocation5], 4
      %s47 = int_to_ptr.vmem [resolvable:$true] %s46
      %49 = dma.hbm_to_vmem [thread:$0]  %s2, 64, %s47, [#allocation6]
    $region13: #{vae_forward.1} parent=1 // pred_fallthru
      _
    // Predicated region
    $region14: #{vae_forward.1} parent=1 // pred_check
      _
    $region15: #{vae_forward.1} parent=1 // pred_check_branch
      %51 = sbr.rel (0) target = $region17
    $region16: #{vae_forward.1} parent=1 // pred_region
      %s53 = ssub.s32 512, 512
      %54 = vsyncadd [#allocation6], %s53
      %s55 = sshll.u32 [#allocation7], 4
      %s56 = int_to_ptr.vmem [resolvable:$true] %s55
      %61 = dma.hbm_to_vmem [thread:$0]  %s3, 512, %s56, [#allocation6], 128, 128, 8
    $region17: #{vae_forward.1} parent=1 // pred_fallthru
      _
    // Predicated region
    $region18: #{vae_forward.1} parent=1 // pred_check
      _
    $region19: #{vae_forward.1} parent=1 // pred_check_branch
      %63 = sbr.rel (0) target = $region21
    $region20: #{vae_forward.1} parent=1 // pred_region
      _
    $region21: #{vae_forward.1} parent=1 // pred_fallthru
      _
    // Predicated region
    $region22: #{vae_forward.1} parent=1 // pred_check
      _
    $region23: #{vae_forward.1} parent=1 // pred_check_branch
      %65 = sbr.rel (0) target = $region25
    $region24: #{vae_forward.1} parent=1 // pred_region
      _
    $region25: #{vae_forward.1} parent=1 // pred_fallthru
      _
    // Predicated region
    $region26: #{vae_forward.1} parent=1 // pred_check
      _
    $region27: #{vae_forward.1} parent=1 // pred_check_branch
      %67 = sbr.rel (0) target = $region29
    $region28: #{vae_forward.1} parent=1 // pred_region
      _
    $region29: #{vae_forward.1} parent=1 // pred_fallthru
      _
    // Predicated region
    $region30: #{vae_forward.1} parent=1 // pred_check
      _
    $region31: #{vae_forward.1} parent=1 // pred_check_branch
      %69 = sbr.rel (0) target = $region33
    $region32: #{vae_forward.1} parent=1 // pred_region
      _
    $region33: #{vae_forward.1} parent=1 // pred_fallthru
      _
    // Predicated region
    $region34: #{vae_forward.1} parent=1 // pred_check
      _
    $region35: #{vae_forward.1} parent=1 // pred_check_branch
      %71 = sbr.rel (0) target = $region37
    $region36: #{vae_forward.1} parent=1 // pred_region
      %s73 = ssub.s32 16, 16
      %74 = vsyncadd [#allocation9], %s73
      %s76 = sshll.u32 [#allocation8], 4
      %s77 = int_to_ptr.vmem [resolvable:$true] %s76
      %79 = dma.hbm_to_vmem [thread:$0]  %s8, 16, %s77, [#allocation9]
    $region37: #{vae_forward.1} parent=1 // pred_fallthru
      _
    // Predicated region
    $region38: #{vae_forward.1} parent=1 // pred_check
      _
    $region39: #{vae_forward.1} parent=1 // pred_check_branch
      %81 = sbr.rel (0) target = $region41
    $region40: #{vae_forward.1} parent=1 // pred_region
      %s83 = ssub.s32 384, 384
      %84 = vsyncadd [#allocation9], %s83
      %s85 = sshll.u32 [#allocation10], 4
      %s86 = int_to_ptr.vmem [resolvable:$true] %s85
      %91 = dma.hbm_to_vmem [thread:$0]  %s9, 384, %s86, [#allocation9], 128, 128, 8
    $region41: #{vae_forward.1} parent=1 // pred_fallthru
      _
    // Predicated region
    $region42: #{vae_forward.1} parent=1 // pred_check
      _
    $region43: #{vae_forward.1} parent=1 // pred_check_branch
      %93 = sbr.rel (0) target = $region45
    $region44: #{vae_forward.1} parent=1 // pred_region
      _
    $region45: #{vae_forward.1} parent=1 // pred_fallthru
      _
    // Predicated region
    $region46: #{vae_forward.1} parent=1 // pred_check
      _
    $region47: #{vae_forward.1} parent=1 // pred_check_branch
      %95 = sbr.rel (0) target = $region49
    $region48: #{vae_forward.1} parent=1 // pred_region
      %s97 = ssub.s32 512, 512
      %98 = vsyncadd [#allocation12], %s97
      %s99 = sshll.u32 [#allocation11], 4
      %s100 = int_to_ptr.vmem [resolvable:$true] %s99
      %105 = dma.hbm_to_vmem [thread:$0]  %s11, 512, %s100, [#allocation12], 128, 128, 8
    $region49: #{vae_forward.1} parent=1 // pred_fallthru
      _
    // Predicated region
    $region50: #{vae_forward.1} parent=1 // pred_check
      _
    $region51: #{vae_forward.1} parent=1 // pred_check_branch
      %107 = sbr.rel (0) target = $region53
    $region52: #{vae_forward.1} parent=1 // pred_region
      _
    $region53: #{vae_forward.1} parent=1 // pred_fallthru
      _
    // Predicated region
    $region54: #{vae_forward.1} parent=1 // pred_check
      _
    $region55: #{vae_forward.1} parent=1 // pred_check_branch
      %109 = sbr.rel (0) target = $region57
    $region56: #{vae_forward.1} parent=1 // pred_region
      _
    $region57: #{vae_forward.1} parent=1 // pred_fallthru
      _
    // Predicated region
    $region58: #{vae_forward.1} parent=1 // pred_check
      _
    $region59: #{vae_forward.1} parent=1 // pred_check_branch
      %111 = sbr.rel (0) target = $region61
    $region60: #{vae_forward.1} parent=1 // pred_region
      _
    $region61: #{vae_forward.1} parent=1 // pred_fallthru
      _
    // Predicated region
    $region62: #{vae_forward.1} parent=1 // pred_check
      _
    $region63: #{vae_forward.1} parent=1 // pred_check_branch
      %113 = sbr.rel (0) target = $region65
    $region64: #{vae_forward.1} parent=1 // pred_region
      _
    $region65: #{vae_forward.1} parent=1 // pred_fallthru
      _
    // Predicated region
    $region66: #{vae_forward.1} parent=1 // pred_check
      _
    $region67: #{vae_forward.1} parent=1 // pred_check_branch
      %115 = sbr.rel (0) target = $region69
    $region68: #{vae_forward.1} parent=1 // pred_region
      _
    $region69: #{vae_forward.1} parent=1 // pred_fallthru
      _
    // Predicated region
    $region70: #{vae_forward.1} parent=1 // pred_check
      _
    $region71: #{vae_forward.1} parent=1 // pred_check_branch
      %117 = sbr.rel (0) target = $region73
    $region72: #{vae_forward.1} parent=1 // pred_region
      %118 = dma.done [#allocation4], 128
    $region73: #{vae_forward.1} parent=1 // pred_fallthru
      _
    // Predicated region
    $region74: #{vae_forward.1} parent=1 // pred_check
      _
    $region75: #{vae_forward.1} parent=1 // pred_check_branch
      %120 = sbr.rel (0) target = $region77
    $region76: #{vae_forward.1} parent=1 // pred_region
      %121 = dma.done [#allocation6], 64
    $region77: #{vae_forward.1} parent=1 // pred_fallthru
      _
    // Predicated region
    $region78: #{vae_forward.1} parent=1 // pred_check
      _
    $region79: #{vae_forward.1} parent=1 // pred_check_branch
      %123 = sbr.rel (0) target = $region81
    $region80: #{vae_forward.1} parent=1 // pred_region
      %124 = dma.done [#allocation6], 512
    $region81: #{vae_forward.1} parent=1 // pred_fallthru
      _
    // Predicated region
    $region82: #{vae_forward.1} parent=1 // pred_check
      _
    $region83: #{vae_forward.1} parent=1 // pred_check_branch
      %126 = sbr.rel (0) target = $region85
    $region84: #{vae_forward.1} parent=1 // pred_region
      %127 = dma.done [#allocation9], 16
    $region85: #{vae_forward.1} parent=1 // pred_fallthru
      _
    // Predicated region
    $region86: #{vae_forward.1} parent=1 // pred_check
      _
    $region87: #{vae_forward.1} parent=1 // pred_check_branch
      %129 = sbr.rel (0) target = $region89
    $region88: #{vae_forward.1} parent=1 // pred_region
      %130 = dma.done [#allocation9], 384
    $region89: #{vae_forward.1} parent=1 // pred_fallthru
      _
    // Predicated region
    $region90: #{vae_forward.1} parent=1 // pred_check
      _
    $region91: #{vae_forward.1} parent=1 // pred_check_branch
      %132 = sbr.rel (0) target = $region93
    $region92: #{vae_forward.1} parent=1 // pred_region
      %133 = dma.done [#allocation12], 512
    $region93: #{vae_forward.1} parent=1 // pred_fallthru
      _
    %v134 = vld [vmem:[%s0] sm:$0xff]
    %v135 = vld [vmem:[%s0 + $0x8] sm:$0xff]
    %v136 = vld [vmem:[%s0 + $0x10] sm:$0xff]
    %v137 = vld [vmem:[%s0 + $0x18] sm:$0xff]
    %v138 = vld [vmem:[%s0 + $0x20] sm:$0xff]
    %v139 = vld [vmem:[%s0 + $0x28] sm:$0xff]
    %v140 = vld [vmem:[%s0 + $0x30] sm:$0xff]
    %v141 = vld [vmem:[%s0 + $0x38] sm:$0xff]
    %v142 = vld [vmem:[#allocation5] sm:$0xf]
    %v143 = vld [vmem:[%s4] sm:$0x1]
    %v145 = vlaneseq
    %v146 = vshrl.u32 %v145, 7
    %v147 = vsub.s32 0, %v146
    %v148 = vrot.slane %v143, %v147
    %vm150 = vcmask 31744
    %v152 = vsel %vm150, %v134, 0
    %v155 = vsel %vm150, %v135, 0
    %v158 = vsel %vm150, %v136, 0
    %v161 = vsel %vm150, %v137, 0
    %v164 = vsel %vm150, %v138, 0
    %v167 = vsel %vm150, %v139, 0
    %v170 = vsel %vm150, %v140, 0
    %v173 = vsel %vm150, %v141, 0
    %vm175 = vcmask 1043456
    %v177 = vsel %vm175, %v142, 0
    %179 = vmatprep.subr.mxu0 0.0
    %180 = vmatpush1.msra.mxu0 %v177
    %181 = vmatprep.subr.mxu0 0.0
    %182 = vmatpush1.msra.mxu0 0.0
    %183 = vmatprep.subr.mxu0 0.0
    %184 = vmatpush1.msra.mxu0 0.0
    %185 = vmatprep.subr.mxu0 0.0
    %186 = vmatpush1.msra.mxu0 0.0
    %187 = vmatprep.subr.mxu0 0.0
    %188 = vmatpush1.msra.mxu0 0.0
    %189 = vmatprep.subr.mxu0 0.0
    %190 = vmatpush1.msra.mxu0 0.0
    %191 = vmatprep.subr.mxu0 0.0
    %192 = vmatpush1.msra.mxu0 0.0
    %193 = vmatprep.subr.mxu0 0.0
    %194 = vmatpush1.msra.mxu0 0.0
    %195 = vmatprep.subr.mxu0 0.0
    %196 = vmatpush1.msra.mxu0 0.0
    %197 = vmatprep.subr.mxu0 0.0
    %198 = vmatpush1.msra.mxu0 0.0
    %199 = vmatprep.subr.mxu0 0.0
    %200 = vmatpush1.msra.mxu0 0.0
    %201 = vmatprep.subr.mxu0 0.0
    %202 = vmatpush1.msra.mxu0 0.0
    %203 = vmatprep.subr.mxu0 0.0
    %204 = vmatpush1.msra.mxu0 0.0
    %205 = vmatprep.subr.mxu0 0.0
    %206 = vmatpush1.msra.mxu0 0.0
    %207 = vmatprep.subr.mxu0 0.0
    %208 = vmatpush1.msra.mxu0 0.0
    %209 = vmatprep.subr.mxu0 0.0
    %210 = vmatpush1.msra.mxu0 0.0
    %211 = vmatprep.subr.mxu0 0.0
    %212 = vmatpush1.msra.mxu0 0.0
    %213 = vmatprep.subr.mxu0 0.0
    %214 = vmatpush1.msra.mxu0 0.0
    %215 = vmatprep.subr.mxu0 0.0
    %216 = vmatpush1.msra.mxu0 0.0
    %217 = vmatprep.subr.mxu0 0.0
    %218 = vmatpush1.msra.mxu0 0.0
    %219 = vmatprep.subr.mxu0 0.0
    %220 = vmatpush1.msra.mxu0 0.0
    %221 = vmatprep.subr.mxu0 0.0
    %222 = vmatpush1.msra.mxu0 0.0
    %223 = vmatprep.subr.mxu0 0.0
    %224 = vmatpush1.msra.mxu0 0.0
    %225 = vmatprep.subr.mxu0 0.0
    %226 = vmatpush1.msra.mxu0 0.0
    %227 = vmatprep.subr.mxu0 0.0
    %228 = vmatpush1.msra.mxu0 0.0
    %229 = vmatprep.subr.mxu0 0.0
    %230 = vmatpush1.msra.mxu0 0.0
    %231 = vmatprep.subr.mxu0 0.0
    %232 = vmatpush1.msra.mxu0 0.0
    %233 = vmatprep.subr.mxu0 0.0
    %234 = vmatpush1.msra.mxu0 0.0
    %235 = vmatprep.subr.mxu0 0.0
    %236 = vmatpush1.msra.mxu0 0.0
    %237 = vmatprep.subr.mxu0 0.0
    %238 = vmatpush1.msra.mxu0 0.0
    %239 = vmatprep.subr.mxu0 0.0
    %240 = vmatpush1.msra.mxu0 0.0
    %241 = vmatprep.subr.mxu0 0.0
    %242 = vmatpush1.msra.mxu0 0.0
    %243 = vmatprep.mubr.f32.mxu0 0.0
    %244 = vmatmul.mubr.f32.gmra.mrb[0].mxu0 %v152
    %v245 = vpop.f32.mrb[0].mxu0
    %v246 = vadd.f32 %v148, %v245
    %v247 = vpop.f32.mrb[0].mxu0
    %248 = vmatprep.mubr.f32.mxu0 0.0
    %249 = vmatmul.mubr.f32.gmra.mrb[0].mxu0 %v155
    %v250 = vpop.f32.mrb[0].mxu0
    %v251 = vadd.f32 %v148, %v250
    %v252 = vpop.f32.mrb[0].mxu0
    %253 = vmatprep.mubr.f32.mxu0 0.0
    %254 = vmatmul.mubr.f32.gmra.mrb[0].mxu0 %v158
    %v255 = vpop.f32.mrb[0].mxu0
    %v256 = vadd.f32 %v148, %v255
    %v257 = vpop.f32.mrb[0].mxu0
    %258 = vmatprep.mubr.f32.mxu0 0.0
    %259 = vmatmul.mubr.f32.gmra.mrb[0].mxu0 %v161
    %v260 = vpop.f32.mrb[0].mxu0
    %v261 = vadd.f32 %v148, %v260
    %v262 = vpop.f32.mrb[0].mxu0
    %263 = vmatprep.mubr.f32.mxu0 0.0
    %264 = vmatmul.mubr.f32.gmra.mrb[0].mxu0 %v164
    %v265 = vpop.f32.mrb[0].mxu0
    %v266 = vadd.f32 %v148, %v265
    %v267 = vpop.f32.mrb[0].mxu0
    %268 = vmatprep.mubr.f32.mxu0 0.0
    %269 = vmatmul.mubr.f32.gmra.mrb[0].mxu0 %v167
    %v270 = vpop.f32.mrb[0].mxu0
    %v271 = vadd.f32 %v148, %v270
    %v272 = vpop.f32.mrb[0].mxu0
    %273 = vmatprep.mubr.f32.mxu0 0.0
    %274 = vmatmul.mubr.f32.gmra.mrb[0].mxu0 %v170
    %v275 = vpop.f32.mrb[0].mxu0
    %v276 = vadd.f32 %v148, %v275
    %v277 = vpop.f32.mrb[0].mxu0
    %278 = vmatprep.mubr.f32.mxu0 0.0
    %279 = vmatmul.mubr.f32.gmra.mrb[0].mxu0 %v173
    %v280 = vpop.f32.mrb[0].mxu0
    %v281 = vadd.f32 %v148, %v280
    %v282 = vpop.f32.mrb[0].mxu0
    %283 = vdwg.mxu0
    %v284 = vld [vmem:[#allocation7] sm:$0xff]
    %v285 = vld [vmem:[#allocation7 + $0x8] sm:$0xff]
    %v286 = vld [vmem:[#allocation7 + $0x10] sm:$0xff]
    %v287 = vld [vmem:[#allocation7 + $0x18] sm:$0xff]
    %vm288 = vcmask 261120
    %v290 = vsel %vm288, 0.0, 0
    %292 = vmatprep.subr.mxu0 0.0
    %293 = vmatpush1.msra.mxu0 %v284
    %294 = vmatprep.subr.mxu0 0.0
    %295 = vmatpush1.msra.mxu0 %v285
    %296 = vmatprep.subr.mxu0 0.0
    %297 = vmatpush1.msra.mxu0 %v286
    %298 = vmatprep.subr.mxu0 0.0
    %299 = vmatpush1.msra.mxu0 %v287
    %300 = vmatprep.subr.mxu0 0.0
    %301 = vmatpush1.msra.mxu0 0.0
    %302 = vmatprep.subr.mxu0 0.0
    %303 = vmatpush1.msra.mxu0 0.0
    %304 = vmatprep.subr.mxu0 0.0
    %305 = vmatpush1.msra.mxu0 0.0
    %306 = vmatprep.subr.mxu0 0.0
    %307 = vmatpush1.msra.mxu0 0.0
    %308 = vmatprep.subr.mxu0 0.0
    %309 = vmatpush1.msra.mxu0 0.0
    %310 = vmatprep.subr.mxu0 0.0
    %311 = vmatpush1.msra.mxu0 0.0
    %312 = vmatprep.subr.mxu0 0.0
    %313 = vmatpush1.msra.mxu0 0.0
    %314 = vmatprep.subr.mxu0 0.0
    %315 = vmatpush1.msra.mxu0 0.0
    %316 = vmatprep.subr.mxu0 0.0
    %317 = vmatpush1.msra.mxu0 0.0
    %318 = vmatprep.subr.mxu0 0.0
    %319 = vmatpush1.msra.mxu0 0.0
    %320 = vmatprep.subr.mxu0 0.0
    %321 = vmatpush1.msra.mxu0 0.0
    %322 = vmatprep.subr.mxu0 0.0
    %323 = vmatpush1.msra.mxu0 0.0
    %324 = vmatprep.subr.mxu0 0.0
    %325 = vmatpush1.msra.mxu0 0.0
    %326 = vmatprep.subr.mxu0 0.0
    %327 = vmatpush1.msra.mxu0 0.0
    %328 = vmatprep.subr.mxu0 0.0
    %329 = vmatpush1.msra.mxu0 0.0
    %330 = vmatprep.subr.mxu0 0.0
    %331 = vmatpush1.msra.mxu0 0.0
    %332 = vmatprep.subr.mxu0 0.0
    %333 = vmatpush1.msra.mxu0 0.0
    %334 = vmatprep.subr.mxu0 0.0
    %335 = vmatpush1.msra.mxu0 0.0
    %336 = vmatprep.subr.mxu0 0.0
    %337 = vmatpush1.msra.mxu0 0.0
    %338 = vmatprep.subr.mxu0 0.0
    %339 = vmatpush1.msra.mxu0 0.0
    %340 = vmatprep.subr.mxu0 0.0
    %341 = vmatpush1.msra.mxu0 0.0
    %342 = vmatprep.subr.mxu0 0.0
    %343 = vmatpush1.msra.mxu0 0.0
    %344 = vmatprep.subr.mxu0 0.0
    %345 = vmatpush1.msra.mxu0 0.0
    %346 = vmatprep.subr.mxu0 0.0
    %347 = vmatpush1.msra.mxu0 0.0
    %348 = vmatprep.subr.mxu0 0.0
    %349 = vmatpush1.msra.mxu0 0.0
    %350 = vmatprep.subr.mxu0 0.0
    %351 = vmatpush1.msra.mxu0 0.0
    %352 = vmatprep.subr.mxu0 0.0
    %353 = vmatpush1.msra.mxu0 0.0
    %354 = vmatprep.subr.mxu0 0.0
    %355 = vmatpush1.msra.mxu0 0.0
    %356 = vmatprep.mubr.f32.mxu0 0.0
    %357 = vmatmul.mubr.f32.gmra.mrb[0].mxu0 %v290
    %v358 = vpop.f32.mrb[0].mxu0
    %v359 = vadd.f32 0.0, %v358
    %v360 = vpop.f32.mrb[0].mxu0
    %361 = vdwg.mxu0
    %v362 = vadd.f32 %v246, %v359
    %v363 = vxor.u32 %v362, 2147483648
    %v364 = vmul.f32 %v363, 1.442695
    %v365 = vpow.pop %v364
    %v366 = vadd.f32 %v365, 1.0
    %v367 = vrcp.pop %v366
    %v368 = vmul.f32 1.0, %v367
    %v369 = vmul.f32 %v368, 2.0
    %v370 = vsub.f32 %v369, 1.0
    %v371 = vmul.f32 %v368, 0.0
    %373 = vrot.lane.b32.xlu0 %v370, 64
    %v374 = vpop.permute.xlu0 %373
    %v376 = vmul.f32 %v368, %v374
    %378 = vrot.lane.b32.xlu0 %v376, 32
    %v379 = vpop.permute.xlu0 %378
    %v381 = vadd.f32 %v371, %v379
    %v382 = vtanh.pop %v381
    %384 = vrot.lane.b32.xlu0 %v382, 64
    %v385 = vpop.permute.xlu0 %384
    %v387 = vmul.f32 %v368, %v385
    %389 = vrot.lane.b32.xlu0 %v387, 32
    %v390 = vpop.permute.xlu0 %389
    %v392 = vsel %vm288, %v390, 0.0
    %v393 = vld [vmem:[%s5] sm:$0xff]
    %v394 = vld [vmem:[%s5 + $0x8] sm:$0xff]
    %v395 = vld [vmem:[%s5 + $0x10] sm:$0xff]
    %v396 = vld [vmem:[%s5 + $0x18] sm:$0xff]
    %v397 = vld [vmem:[%s5 + $0x20] sm:$0xff]
    %v398 = vld [vmem:[%s5 + $0x28] sm:$0xff]
    %v399 = vld [vmem:[%s5 + $0x30] sm:$0xff]
    %v400 = vld [vmem:[%s5 + $0x38] sm:$0xff]
    %v401 = vld [vmem:[%s6] sm:$0x1]
    %v403 = vlaneseq
    %v404 = vshrl.u32 %v403, 7
    %v405 = vsub.s32 0, %v404
    %v406 = vrot.slane %v401, %v405
    %vm408 = vcmask 523264
    %v410 = vsel %vm408, %v392, 0
    %412 = vmatprep.subr.mxu0 0.0
    %413 = vmatpush1.msra.mxu0 %v393
    %414 = vmatprep.subr.mxu0 0.0
    %415 = vmatpush1.msra.mxu0 %v394
    %416 = vmatprep.subr.mxu0 0.0
    %417 = vmatpush1.msra.mxu0 %v395
    %418 = vmatprep.subr.mxu0 0.0
    %419 = vmatpush1.msra.mxu0 %v396
    %420 = vmatprep.subr.mxu0 0.0
    %421 = vmatpush1.msra.mxu0 %v397
    %422 = vmatprep.subr.mxu0 0.0
    %423 = vmatpush1.msra.mxu0 %v398
    %424 = vmatprep.subr.mxu0 0.0
    %425 = vmatpush1.msra.mxu0 %v399
    %426 = vmatprep.subr.mxu0 0.0
    %427 = vmatpush1.msra.mxu0 %v400
    %428 = vmatprep.subr.mxu0 0.0
    %429 = vmatpush1.msra.mxu0 0.0
    %430 = vmatprep.subr.mxu0 0.0
    %431 = vmatpush1.msra.mxu0 0.0
    %432 = vmatprep.subr.mxu0 0.0
    %433 = vmatpush1.msra.mxu0 0.0
    %434 = vmatprep.subr.mxu0 0.0
    %435 = vmatpush1.msra.mxu0 0.0
    %436 = vmatprep.subr.mxu0 0.0
    %437 = vmatpush1.msra.mxu0 0.0
    %438 = vmatprep.subr.mxu0 0.0
    %439 = vmatpush1.msra.mxu0 0.0
    %440 = vmatprep.subr.mxu0 0.0
    %441 = vmatpush1.msra.mxu0 0.0
    %442 = vmatprep.subr.mxu0 0.0
    %443 = vmatpush1.msra.mxu0 0.0
    %444 = vmatprep.subr.mxu0 0.0
    %445 = vmatpush1.msra.mxu0 0.0
    %446 = vmatprep.subr.mxu0 0.0
    %447 = vmatpush1.msra.mxu0 0.0
    %448 = vmatprep.subr.mxu0 0.0
    %449 = vmatpush1.msra.mxu0 0.0
    %450 = vmatprep.subr.mxu0 0.0
    %451 = vmatpush1.msra.mxu0 0.0
    %452 = vmatprep.subr.mxu0 0.0
    %453 = vmatpush1.msra.mxu0 0.0
    %454 = vmatprep.subr.mxu0 0.0
    %455 = vmatpush1.msra.mxu0 0.0
    %456 = vmatprep.subr.mxu0 0.0
    %457 = vmatpush1.msra.mxu0 0.0
    %458 = vmatprep.subr.mxu0 0.0
    %459 = vmatpush1.msra.mxu0 0.0
    %460 = vmatprep.subr.mxu0 0.0
    %461 = vmatpush1.msra.mxu0 0.0
    %462 = vmatprep.subr.mxu0 0.0
    %463 = vmatpush1.msra.mxu0 0.0
    %464 = vmatprep.subr.mxu0 0.0
    %465 = vmatpush1.msra.mxu0 0.0
    %466 = vmatprep.subr.mxu0 0.0
    %467 = vmatpush1.msra.mxu0 0.0
    %468 = vmatprep.subr.mxu0 0.0
    %469 = vmatpush1.msra.mxu0 0.0
    %470 = vmatprep.subr.mxu0 0.0
    %471 = vmatpush1.msra.mxu0 0.0
    %472 = vmatprep.subr.mxu0 0.0
    %473 = vmatpush1.msra.mxu0 0.0
    %474 = vmatprep.subr.mxu0 0.0
    %475 = vmatpush1.msra.mxu0 0.0
    %476 = vmatprep.mubr.f32.mxu0 0.0
    %477 = vmatmul.mubr.f32.gmra.mrb[0].mxu0 %v410
    %v478 = vpop.f32.mrb[0].mxu0
    %v479 = vadd.f32 %v406, %v478
    %v480 = vpop.f32.mrb[0].mxu0
    %481 = vdwg.mxu0
    %v482 = vxor.u32 %v479, 2147483648
    %v483 = vmul.f32 %v482, 1.442695
    %v484 = vpow.pop %v483
    %v485 = vadd.f32 %v484, 1.0
    %v486 = vrcp.pop %v485
    %v487 = vmul.f32 1.0, %v486
    %v488 = vmul.f32 %v487, 2.0
    %v489 = vsub.f32 %v488, 1.0
    %v490 = vmul.f32 %v487, 0.0
    %492 = vrot.lane.b32.xlu0 %v489, 64
    %v493 = vpop.permute.xlu0 %492
    %v495 = vmul.f32 %v487, %v493
    %497 = vrot.lane.b32.xlu0 %v495, 32
    %v498 = vpop.permute.xlu0 %497
    %v500 = vadd.f32 %v490, %v498
    %v501 = vtanh.pop %v500
    %503 = vrot.lane.b32.xlu0 %v501, 64
    %v504 = vpop.permute.xlu0 %503
    %v506 = vmul.f32 %v487, %v504
    %v507 = vsel %vm288, %v390, 0
    %509 = vmatprep.subr.mxu0 0.0
    %510 = vmatpush1.msra.mxu0 %v284
    %511 = vmatprep.subr.mxu0 0.0
    %512 = vmatpush1.msra.mxu0 %v285
    %513 = vmatprep.subr.mxu0 0.0
    %514 = vmatpush1.msra.mxu0 %v286
    %515 = vmatprep.subr.mxu0 0.0
    %516 = vmatpush1.msra.mxu0 %v287
    %517 = vmatprep.subr.mxu0 0.0
    %518 = vmatpush1.msra.mxu0 0.0
    %519 = vmatprep.subr.mxu0 0.0
    %520 = vmatpush1.msra.mxu0 0.0
    %521 = vmatprep.subr.mxu0 0.0
    %522 = vmatpush1.msra.mxu0 0.0
    %523 = vmatprep.subr.mxu0 0.0
    %524 = vmatpush1.msra.mxu0 0.0
    %525 = vmatprep.subr.mxu0 0.0
    %526 = vmatpush1.msra.mxu0 0.0
    %527 = vmatprep.subr.mxu0 0.0
    %528 = vmatpush1.msra.mxu0 0.0
    %529 = vmatprep.subr.mxu0 0.0
    %530 = vmatpush1.msra.mxu0 0.0
    %531 = vmatprep.subr.mxu0 0.0
    %532 = vmatpush1.msra.mxu0 0.0
    %533 = vmatprep.subr.mxu0 0.0
    %534 = vmatpush1.msra.mxu0 0.0
    %535 = vmatprep.subr.mxu0 0.0
    %536 = vmatpush1.msra.mxu0 0.0
    %537 = vmatprep.subr.mxu0 0.0
    %538 = vmatpush1.msra.mxu0 0.0
    %539 = vmatprep.subr.mxu0 0.0
    %540 = vmatpush1.msra.mxu0 0.0
    %541 = vmatprep.subr.mxu0 0.0
    %542 = vmatpush1.msra.mxu0 0.0
    %543 = vmatprep.subr.mxu0 0.0
    %544 = vmatpush1.msra.mxu0 0.0
    %545 = vmatprep.subr.mxu0 0.0
    %546 = vmatpush1.msra.mxu0 0.0
    %547 = vmatprep.subr.mxu0 0.0
    %548 = vmatpush1.msra.mxu0 0.0
    %549 = vmatprep.subr.mxu0 0.0
    %550 = vmatpush1.msra.mxu0 0.0
    %551 = vmatprep.subr.mxu0 0.0
    %552 = vmatpush1.msra.mxu0 0.0
    %553 = vmatprep.subr.mxu0 0.0
    %554 = vmatpush1.msra.mxu0 0.0
    %555 = vmatprep.subr.mxu0 0.0
    %556 = vmatpush1.msra.mxu0 0.0
    %557 = vmatprep.subr.mxu0 0.0
    %558 = vmatpush1.msra.mxu0 0.0
    %559 = vmatprep.subr.mxu0 0.0
    %560 = vmatpush1.msra.mxu0 0.0
    %561 = vmatprep.subr.mxu0 0.0
    %562 = vmatpush1.msra.mxu0 0.0
    %563 = vmatprep.subr.mxu0 0.0
    %564 = vmatpush1.msra.mxu0 0.0
    %565 = vmatprep.subr.mxu0 0.0
    %566 = vmatpush1.msra.mxu0 0.0
    %567 = vmatprep.subr.mxu0 0.0
    %568 = vmatpush1.msra.mxu0 0.0
    %569 = vmatprep.subr.mxu0 0.0
    %570 = vmatpush1.msra.mxu0 0.0
    %571 = vmatprep.subr.mxu0 0.0
    %572 = vmatpush1.msra.mxu0 0.0
    %573 = vmatprep.mubr.f32.mxu0 0.0
    %574 = vmatmul.mubr.f32.gmra.mrb[0].mxu0 %v507
    %v575 = vpop.f32.mrb[0].mxu0
    %v576 = vadd.f32 0.0, %v575
    %v577 = vpop.f32.mrb[0].mxu0
    %578 = vdwg.mxu0
    %v579 = vadd.f32 %v251, %v576
    %v580 = vxor.u32 %v579, 2147483648
    %v581 = vmul.f32 %v580, 1.442695
    %v582 = vpow.pop %v581
    %v583 = vadd.f32 %v582, 1.0
    %v584 = vrcp.pop %v583
    %v585 = vmul.f32 1.0, %v584
    %v586 = vmul.f32 %v585, 2.0
    %v587 = vsub.f32 %v586, 1.0
    %v588 = vmul.f32 %v585, %v381
    %590 = vrot.lane.b32.xlu0 %v587, 64
    %v591 = vpop.permute.xlu0 %590
    %v593 = vmul.f32 %v585, %v591
    %595 = vrot.lane.b32.xlu0 %v593, 32
    %v596 = vpop.permute.xlu0 %595
    %v598 = vadd.f32 %v588, %v596
    %v599 = vtanh.pop %v598
    %601 = vrot.lane.b32.xlu0 %v599, 64
    %v602 = vpop.permute.xlu0 %601
    %v604 = vmul.f32 %v585, %v602
    %606 = vrot.lane.b32.xlu0 %v604, 32
    %v607 = vpop.permute.xlu0 %606
    %610 = vrot.lane.b32.xlu0 %v506, 64
    %v611 = vpop.permute.xlu0 %610
    %v613 = vsel %vm288, %v607, %v611
    %v615 = vsel %vm408, %v613, 0
    %617 = vmatprep.subr.mxu0 0.0
    %618 = vmatpush1.msra.mxu0 %v393
    %619 = vmatprep.subr.mxu0 0.0
    %620 = vmatpush1.msra.mxu0 %v394
    %621 = vmatprep.subr.mxu0 0.0
    %622 = vmatpush1.msra.mxu0 %v395
    %623 = vmatprep.subr.mxu0 0.0
    %624 = vmatpush1.msra.mxu0 %v396
    %625 = vmatprep.subr.mxu0 0.0
    %626 = vmatpush1.msra.mxu0 %v397
    %627 = vmatprep.subr.mxu0 0.0
    %628 = vmatpush1.msra.mxu0 %v398
    %629 = vmatprep.subr.mxu0 0.0
    %630 = vmatpush1.msra.mxu0 %v399
    %631 = vmatprep.subr.mxu0 0.0
    %632 = vmatpush1.msra.mxu0 %v400
    %633 = vmatprep.subr.mxu0 0.0
    %634 = vmatpush1.msra.mxu0 0.0
    %635 = vmatprep.subr.mxu0 0.0
    %636 = vmatpush1.msra.mxu0 0.0
    %637 = vmatprep.subr.mxu0 0.0
    %638 = vmatpush1.msra.mxu0 0.0
    %639 = vmatprep.subr.mxu0 0.0
    %640 = vmatpush1.msra.mxu0 0.0
    %641 = vmatprep.subr.mxu0 0.0
    %642 = vmatpush1.msra.mxu0 0.0
    %643 = vmatprep.subr.mxu0 0.0
    %644 = vmatpush1.msra.mxu0 0.0
    %645 = vmatprep.subr.mxu0 0.0
    %646 = vmatpush1.msra.mxu0 0.0
    %647 = vmatprep.subr.mxu0 0.0
    %648 = vmatpush1.msra.mxu0 0.0
    %649 = vmatprep.subr.mxu0 0.0
    %650 = vmatpush1.msra.mxu0 0.0
    %651 = vmatprep.subr.mxu0 0.0
    %652 = vmatpush1.msra.mxu0 0.0
    %653 = vmatprep.subr.mxu0 0.0
    %654 = vmatpush1.msra.mxu0 0.0
    %655 = vmatprep.subr.mxu0 0.0
    %656 = vmatpush1.msra.mxu0 0.0
    %657 = vmatprep.subr.mxu0 0.0
    %658 = vmatpush1.msra.mxu0 0.0
    %659 = vmatprep.subr.mxu0 0.0
    %660 = vmatpush1.msra.mxu0 0.0
    %661 = vmatprep.subr.mxu0 0.0
    %662 = vmatpush1.msra.mxu0 0.0
    %663 = vmatprep.subr.mxu0 0.0
    %664 = vmatpush1.msra.mxu0 0.0
    %665 = vmatprep.subr.mxu0 0.0
    %666 = vmatpush1.msra.mxu0 0.0
    %667 = vmatprep.subr.mxu0 0.0
    %668 = vmatpush1.msra.mxu0 0.0
    %669 = vmatprep.subr.mxu0 0.0
    %670 = vmatpush1.msra.mxu0 0.0
    %671 = vmatprep.subr.mxu0 0.0
    %672 = vmatpush1.msra.mxu0 0.0
    %673 = vmatprep.subr.mxu0 0.0
    %674 = vmatpush1.msra.mxu0 0.0
    %675 = vmatprep.subr.mxu0 0.0
    %676 = vmatpush1.msra.mxu0 0.0
    %677 = vmatprep.subr.mxu0 0.0
    %678 = vmatpush1.msra.mxu0 0.0
    %679 = vmatprep.subr.mxu0 0.0
    %680 = vmatpush1.msra.mxu0 0.0
    %681 = vmatprep.mubr.f32.mxu0 0.0
    %682 = vmatmul.mubr.f32.gmra.mrb[0].mxu0 %v615
    %v683 = vpop.f32.mrb[0].mxu0
    %v684 = vadd.f32 %v406, %v683
    %v685 = vpop.f32.mrb[0].mxu0
    %686 = vdwg.mxu0
    %v687 = vxor.u32 %v684, 2147483648
    %v688 = vmul.f32 %v687, 1.442695
    %v689 = vpow.pop %v688
    %v690 = vadd.f32 %v689, 1.0
    %v691 = vrcp.pop %v690
    %v692 = vmul.f32 1.0, %v691
    %v693 = vmul.f32 %v692, 2.0
    %v694 = vsub.f32 %v693, 1.0
    %v695 = vmul.f32 %v692, %v500
    %697 = vrot.lane.b32.xlu0 %v694, 64
    %v698 = vpop.permute.xlu0 %697
    %v700 = vmul.f32 %v692, %v698
    %702 = vrot.lane.b32.xlu0 %v700, 32
    %v703 = vpop.permute.xlu0 %702
    %v705 = vadd.f32 %v695, %v703
    %v706 = vtanh.pop %v705
    %708 = vrot.lane.b32.xlu0 %v706, 64
    %v709 = vpop.permute.xlu0 %708
    %v711 = vmul.f32 %v692, %v709
    %v712 = vsel %vm288, %v607, 0
    %714 = vmatprep.subr.mxu0 0.0
    %715 = vmatpush1.msra.mxu0 %v284
    %716 = vmatprep.subr.mxu0 0.0
    %717 = vmatpush1.msra.mxu0 %v285
    %718 = vmatprep.subr.mxu0 0.0
    %719 = vmatpush1.msra.mxu0 %v286
    %720 = vmatprep.subr.mxu0 0.0
    %721 = vmatpush1.msra.mxu0 %v287
    %722 = vmatprep.subr.mxu0 0.0
    %723 = vmatpush1.msra.mxu0 0.0
    %724 = vmatprep.subr.mxu0 0.0
    %725 = vmatpush1.msra.mxu0 0.0
    %726 = vmatprep.subr.mxu0 0.0
    %727 = vmatpush1.msra.mxu0 0.0
    %728 = vmatprep.subr.mxu0 0.0
    %729 = vmatpush1.msra.mxu0 0.0
    %730 = vmatprep.subr.mxu0 0.0
    %731 = vmatpush1.msra.mxu0 0.0
    %732 = vmatprep.subr.mxu0 0.0
    %733 = vmatpush1.msra.mxu0 0.0
    %734 = vmatprep.subr.mxu0 0.0
    %735 = vmatpush1.msra.mxu0 0.0
    %736 = vmatprep.subr.mxu0 0.0
    %737 = vmatpush1.msra.mxu0 0.0
    %738 = vmatprep.subr.mxu0 0.0
    %739 = vmatpush1.msra.mxu0 0.0
    %740 = vmatprep.subr.mxu0 0.0
    %741 = vmatpush1.msra.mxu0 0.0
    %742 = vmatprep.subr.mxu0 0.0
    %743 = vmatpush1.msra.mxu0 0.0
    %744 = vmatprep.subr.mxu0 0.0
    %745 = vmatpush1.msra.mxu0 0.0
    %746 = vmatprep.subr.mxu0 0.0
    %747 = vmatpush1.msra.mxu0 0.0
    %748 = vmatprep.subr.mxu0 0.0
    %749 = vmatpush1.msra.mxu0 0.0
    %750 = vmatprep.subr.mxu0 0.0
    %751 = vmatpush1.msra.mxu0 0.0
    %752 = vmatprep.subr.mxu0 0.0
    %753 = vmatpush1.msra.mxu0 0.0
    %754 = vmatprep.subr.mxu0 0.0
    %755 = vmatpush1.msra.mxu0 0.0
    %756 = vmatprep.subr.mxu0 0.0
    %757 = vmatpush1.msra.mxu0 0.0
    %758 = vmatprep.subr.mxu0 0.0
    %759 = vmatpush1.msra.mxu0 0.0
    %760 = vmatprep.subr.mxu0 0.0
    %761 = vmatpush1.msra.mxu0 0.0
    %762 = vmatprep.subr.mxu0 0.0
    %763 = vmatpush1.msra.mxu0 0.0
    %764 = vmatprep.subr.mxu0 0.0
    %765 = vmatpush1.msra.mxu0 0.0
    %766 = vmatprep.subr.mxu0 0.0
    %767 = vmatpush1.msra.mxu0 0.0
    %768 = vmatprep.subr.mxu0 0.0
    %769 = vmatpush1.msra.mxu0 0.0
    %770 = vmatprep.subr.mxu0 0.0
    %771 = vmatpush1.msra.mxu0 0.0
    %772 = vmatprep.subr.mxu0 0.0
    %773 = vmatpush1.msra.mxu0 0.0
    %774 = vmatprep.subr.mxu0 0.0
    %775 = vmatpush1.msra.mxu0 0.0
    %776 = vmatprep.subr.mxu0 0.0
    %777 = vmatpush1.msra.mxu0 0.0
    %778 = vmatprep.mubr.f32.mxu0 0.0
    %779 = vmatmul.mubr.f32.gmra.mrb[0].mxu0 %v712
    %v780 = vpop.f32.mrb[0].mxu0
    %v781 = vadd.f32 0.0, %v780
    %v782 = vpop.f32.mrb[0].mxu0
    %783 = vdwg.mxu0
    %v784 = vadd.f32 %v256, %v781
    %v785 = vxor.u32 %v784, 2147483648
    %v786 = vmul.f32 %v785, 1.442695
    %v787 = vpow.pop %v786
    %v788 = vadd.f32 %v787, 1.0
    %v789 = vrcp.pop %v788
    %v790 = vmul.f32 1.0, %v789
    %v791 = vmul.f32 %v790, 2.0
    %v792 = vsub.f32 %v791, 1.0
    %v793 = vmul.f32 %v790, %v598
    %795 = vrot.lane.b32.xlu0 %v792, 64
    %v796 = vpop.permute.xlu0 %795
    %v798 = vmul.f32 %v790, %v796
    %800 = vrot.lane.b32.xlu0 %v798, 32
    %v801 = vpop.permute.xlu0 %800
    %v803 = vadd.f32 %v793, %v801
    %v804 = vtanh.pop %v803
    %806 = vrot.lane.b32.xlu0 %v804, 64
    %v807 = vpop.permute.xlu0 %806
    %v809 = vmul.f32 %v790, %v807
    %811 = vrot.lane.b32.xlu0 %v809, 32
    %v812 = vpop.permute.xlu0 %811
    %815 = vrot.lane.b32.xlu0 %v711, 64
    %v816 = vpop.permute.xlu0 %815
    %v818 = vsel %vm288, %v812, %v816
    %v820 = vsel %vm408, %v818, 0
    %822 = vmatprep.subr.mxu0 0.0
    %823 = vmatpush1.msra.mxu0 %v393
    %824 = vmatprep.subr.mxu0 0.0
    %825 = vmatpush1.msra.mxu0 %v394
    %826 = vmatprep.subr.mxu0 0.0
    %827 = vmatpush1.msra.mxu0 %v395
    %828 = vmatprep.subr.mxu0 0.0
    %829 = vmatpush1.msra.mxu0 %v396
    %830 = vmatprep.subr.mxu0 0.0
    %831 = vmatpush1.msra.mxu0 %v397
    %832 = vmatprep.subr.mxu0 0.0
    %833 = vmatpush1.msra.mxu0 %v398
    %834 = vmatprep.subr.mxu0 0.0
    %835 = vmatpush1.msra.mxu0 %v399
    %836 = vmatprep.subr.mxu0 0.0
    %837 = vmatpush1.msra.mxu0 %v400
    %838 = vmatprep.subr.mxu0 0.0
    %839 = vmatpush1.msra.mxu0 0.0
    %840 = vmatprep.subr.mxu0 0.0
    %841 = vmatpush1.msra.mxu0 0.0
    %842 = vmatprep.subr.mxu0 0.0
    %843 = vmatpush1.msra.mxu0 0.0
    %844 = vmatprep.subr.mxu0 0.0
    %845 = vmatpush1.msra.mxu0 0.0
    %846 = vmatprep.subr.mxu0 0.0
    %847 = vmatpush1.msra.mxu0 0.0
    %848 = vmatprep.subr.mxu0 0.0
    %849 = vmatpush1.msra.mxu0 0.0
    %850 = vmatprep.subr.mxu0 0.0
    %851 = vmatpush1.msra.mxu0 0.0
    %852 = vmatprep.subr.mxu0 0.0
    %853 = vmatpush1.msra.mxu0 0.0
    %854 = vmatprep.subr.mxu0 0.0
    %855 = vmatpush1.msra.mxu0 0.0
    %856 = vmatprep.subr.mxu0 0.0
    %857 = vmatpush1.msra.mxu0 0.0
    %858 = vmatprep.subr.mxu0 0.0
    %859 = vmatpush1.msra.mxu0 0.0
    %860 = vmatprep.subr.mxu0 0.0
    %861 = vmatpush1.msra.mxu0 0.0
    %862 = vmatprep.subr.mxu0 0.0
    %863 = vmatpush1.msra.mxu0 0.0
    %864 = vmatprep.subr.mxu0 0.0
    %865 = vmatpush1.msra.mxu0 0.0
    %866 = vmatprep.subr.mxu0 0.0
    %867 = vmatpush1.msra.mxu0 0.0
    %868 = vmatprep.subr.mxu0 0.0
    %869 = vmatpush1.msra.mxu0 0.0
    %870 = vmatprep.subr.mxu0 0.0
    %871 = vmatpush1.msra.mxu0 0.0
    %872 = vmatprep.subr.mxu0 0.0
    %873 = vmatpush1.msra.mxu0 0.0
    %874 = vmatprep.subr.mxu0 0.0
    %875 = vmatpush1.msra.mxu0 0.0
    %876 = vmatprep.subr.mxu0 0.0
    %877 = vmatpush1.msra.mxu0 0.0
    %878 = vmatprep.subr.mxu0 0.0
    %879 = vmatpush1.msra.mxu0 0.0
    %880 = vmatprep.subr.mxu0 0.0
    %881 = vmatpush1.msra.mxu0 0.0
    %882 = vmatprep.subr.mxu0 0.0
    %883 = vmatpush1.msra.mxu0 0.0
    %884 = vmatprep.subr.mxu0 0.0
    %885 = vmatpush1.msra.mxu0 0.0
    %886 = vmatprep.mubr.f32.mxu0 0.0
    %887 = vmatmul.mubr.f32.gmra.mrb[0].mxu0 %v820
    %v888 = vpop.f32.mrb[0].mxu0
    %v889 = vadd.f32 %v406, %v888
    %v890 = vpop.f32.mrb[0].mxu0
    %891 = vdwg.mxu0
    %v892 = vxor.u32 %v889, 2147483648
    %v893 = vmul.f32 %v892, 1.442695
    %v894 = vpow.pop %v893
    %v895 = vadd.f32 %v894, 1.0
    %v896 = vrcp.pop %v895
    %v897 = vmul.f32 1.0, %v896
    %v898 = vmul.f32 %v897, 2.0
    %v899 = vsub.f32 %v898, 1.0
    %v900 = vmul.f32 %v897, %v705
    %902 = vrot.lane.b32.xlu0 %v899, 64
    %v903 = vpop.permute.xlu0 %902
    %v905 = vmul.f32 %v897, %v903
    %907 = vrot.lane.b32.xlu0 %v905, 32
    %v908 = vpop.permute.xlu0 %907
    %v910 = vadd.f32 %v900, %v908
    %v911 = vtanh.pop %v910
    %913 = vrot.lane.b32.xlu0 %v911, 64
    %v914 = vpop.permute.xlu0 %913
    %v916 = vmul.f32 %v897, %v914
    %v917 = vsel %vm288, %v812, 0
    %919 = vmatprep.subr.mxu0 0.0
    %920 = vmatpush1.msra.mxu0 %v284
    %921 = vmatprep.subr.mxu0 0.0
    %922 = vmatpush1.msra.mxu0 %v285
    %923 = vmatprep.subr.mxu0 0.0
    %924 = vmatpush1.msra.mxu0 %v286
    %925 = vmatprep.subr.mxu0 0.0
    %926 = vmatpush1.msra.mxu0 %v287
    %927 = vmatprep.subr.mxu0 0.0
    %928 = vmatpush1.msra.mxu0 0.0
    %929 = vmatprep.subr.mxu0 0.0
    %930 = vmatpush1.msra.mxu0 0.0
    %931 = vmatprep.subr.mxu0 0.0
    %932 = vmatpush1.msra.mxu0 0.0
    %933 = vmatprep.subr.mxu0 0.0
    %934 = vmatpush1.msra.mxu0 0.0
    %935 = vmatprep.subr.mxu0 0.0
    %936 = vmatpush1.msra.mxu0 0.0
    %937 = vmatprep.subr.mxu0 0.0
    %938 = vmatpush1.msra.mxu0 0.0
    %939 = vmatprep.subr.mxu0 0.0
    %940 = vmatpush1.msra.mxu0 0.0
    %941 = vmatprep.subr.mxu0 0.0
    %942 = vmatpush1.msra.mxu0 0.0
    %943 = vmatprep.subr.mxu0 0.0
    %944 = vmatpush1.msra.mxu0 0.0
    %945 = vmatprep.subr.mxu0 0.0
    %946 = vmatpush1.msra.mxu0 0.0
    %947 = vmatprep.subr.mxu0 0.0
    %948 = vmatpush1.msra.mxu0 0.0
    %949 = vmatprep.subr.mxu0 0.0
    %950 = vmatpush1.msra.mxu0 0.0
    %951 = vmatprep.subr.mxu0 0.0
    %952 = vmatpush1.msra.mxu0 0.0
    %953 = vmatprep.subr.mxu0 0.0
    %954 = vmatpush1.msra.mxu0 0.0
    %955 = vmatprep.subr.mxu0 0.0
    %956 = vmatpush1.msra.mxu0 0.0
    %957 = vmatprep.subr.mxu0 0.0
    %958 = vmatpush1.msra.mxu0 0.0
    %959 = vmatprep.subr.mxu0 0.0
    %960 = vmatpush1.msra.mxu0 0.0
    %961 = vmatprep.subr.mxu0 0.0
    %962 = vmatpush1.msra.mxu0 0.0
    %963 = vmatprep.subr.mxu0 0.0
    %964 = vmatpush1.msra.mxu0 0.0
    %965 = vmatprep.subr.mxu0 0.0
    %966 = vmatpush1.msra.mxu0 0.0
    %967 = vmatprep.subr.mxu0 0.0
    %968 = vmatpush1.msra.mxu0 0.0
    %969 = vmatprep.subr.mxu0 0.0
    %970 = vmatpush1.msra.mxu0 0.0
    %971 = vmatprep.subr.mxu0 0.0
    %972 = vmatpush1.msra.mxu0 0.0
    %973 = vmatprep.subr.mxu0 0.0
    %974 = vmatpush1.msra.mxu0 0.0
    %975 = vmatprep.subr.mxu0 0.0
    %976 = vmatpush1.msra.mxu0 0.0
    %977 = vmatprep.subr.mxu0 0.0
    %978 = vmatpush1.msra.mxu0 0.0
    %979 = vmatprep.subr.mxu0 0.0
    %980 = vmatpush1.msra.mxu0 0.0
    %981 = vmatprep.subr.mxu0 0.0
    %982 = vmatpush1.msra.mxu0 0.0
    %983 = vmatprep.mubr.f32.mxu0 0.0
    %984 = vmatmul.mubr.f32.gmra.mrb[0].mxu0 %v917
    %v985 = vpop.f32.mrb[0].mxu0
    %v986 = vadd.f32 0.0, %v985
    %v987 = vpop.f32.mrb[0].mxu0
    %988 = vdwg.mxu0
    %v989 = vadd.f32 %v261, %v986
    %v990 = vxor.u32 %v989, 2147483648
    %v991 = vmul.f32 %v990, 1.442695
    %v992 = vpow.pop %v991
    %v993 = vadd.f32 %v992, 1.0
    %v994 = vrcp.pop %v993
    %v995 = vmul.f32 1.0, %v994
    %v996 = vmul.f32 %v995, 2.0
    %v997 = vsub.f32 %v996, 1.0
    %v998 = vmul.f32 %v995, %v803
    %1000 = vrot.lane.b32.xlu0 %v997, 64
    %v1001 = vpop.permute.xlu0 %1000
    %v1003 = vmul.f32 %v995, %v1001
    %1005 = vrot.lane.b32.xlu0 %v1003, 32
    %v1006 = vpop.permute.xlu0 %1005
    %v1008 = vadd.f32 %v998, %v1006
    %v1009 = vtanh.pop %v1008
    %1011 = vrot.lane.b32.xlu0 %v1009, 64
    %v1012 = vpop.permute.xlu0 %1011
    %v1014 = vmul.f32 %v995, %v1012
    %1016 = vrot.lane.b32.xlu0 %v1014, 32
    %v1017 = vpop.permute.xlu0 %1016
    %1020 = vrot.lane.b32.xlu0 %v916, 64
    %v1021 = vpop.permute.xlu0 %1020
    %v1023 = vsel %vm288, %v1017, %v1021
    %v1025 = vsel %vm408, %v1023, 0
    %1027 = vmatprep.subr.mxu0 0.0
    %1028 = vmatpush1.msra.mxu0 %v393
    %1029 = vmatprep.subr.mxu0 0.0
    %1030 = vmatpush1.msra.mxu0 %v394
    %1031 = vmatprep.subr.mxu0 0.0
    %1032 = vmatpush1.msra.mxu0 %v395
    %1033 = vmatprep.subr.mxu0 0.0
    %1034 = vmatpush1.msra.mxu0 %v396
    %1035 = vmatprep.subr.mxu0 0.0
    %1036 = vmatpush1.msra.mxu0 %v397
    %1037 = vmatprep.subr.mxu0 0.0
    %1038 = vmatpush1.msra.mxu0 %v398
    %1039 = vmatprep.subr.mxu0 0.0
    %1040 = vmatpush1.msra.mxu0 %v399
    %1041 = vmatprep.subr.mxu0 0.0
    %1042 = vmatpush1.msra.mxu0 %v400
    %1043 = vmatprep.subr.mxu0 0.0
    %1044 = vmatpush1.msra.mxu0 0.0
    %1045 = vmatprep.subr.mxu0 0.0
    %1046 = vmatpush1.msra.mxu0 0.0
    %1047 = vmatprep.subr.mxu0 0.0
    %1048 = vmatpush1.msra.mxu0 0.0
    %1049 = vmatprep.subr.mxu0 0.0
    %1050 = vmatpush1.msra.mxu0 0.0
    %1051 = vmatprep.subr.mxu0 0.0
    %1052 = vmatpush1.msra.mxu0 0.0
    %1053 = vmatprep.subr.mxu0 0.0
    %1054 = vmatpush1.msra.mxu0 0.0
    %1055 = vmatprep.subr.mxu0 0.0
    %1056 = vmatpush1.msra.mxu0 0.0
    %1057 = vmatprep.subr.mxu0 0.0
    %1058 = vmatpush1.msra.mxu0 0.0
    %1059 = vmatprep.subr.mxu0 0.0
    %1060 = vmatpush1.msra.mxu0 0.0
    %1061 = vmatprep.subr.mxu0 0.0
    %1062 = vmatpush1.msra.mxu0 0.0
    %1063 = vmatprep.subr.mxu0 0.0
    %1064 = vmatpush1.msra.mxu0 0.0
    %1065 = vmatprep.subr.mxu0 0.0
    %1066 = vmatpush1.msra.mxu0 0.0
    %1067 = vmatprep.subr.mxu0 0.0
    %1068 = vmatpush1.msra.mxu0 0.0
    %1069 = vmatprep.subr.mxu0 0.0
    %1070 = vmatpush1.msra.mxu0 0.0
    %1071 = vmatprep.subr.mxu0 0.0
    %1072 = vmatpush1.msra.mxu0 0.0
    %1073 = vmatprep.subr.mxu0 0.0
    %1074 = vmatpush1.msra.mxu0 0.0
    %1075 = vmatprep.subr.mxu0 0.0
    %1076 = vmatpush1.msra.mxu0 0.0
    %1077 = vmatprep.subr.mxu0 0.0
    %1078 = vmatpush1.msra.mxu0 0.0
    %1079 = vmatprep.subr.mxu0 0.0
    %1080 = vmatpush1.msra.mxu0 0.0
    %1081 = vmatprep.subr.mxu0 0.0
    %1082 = vmatpush1.msra.mxu0 0.0
    %1083 = vmatprep.subr.mxu0 0.0
    %1084 = vmatpush1.msra.mxu0 0.0
    %1085 = vmatprep.subr.mxu0 0.0
    %1086 = vmatpush1.msra.mxu0 0.0
    %1087 = vmatprep.subr.mxu0 0.0
    %1088 = vmatpush1.msra.mxu0 0.0
    %1089 = vmatprep.subr.mxu0 0.0
    %1090 = vmatpush1.msra.mxu0 0.0
    %1091 = vmatprep.mubr.f32.mxu0 0.0
    %1092 = vmatmul.mubr.f32.gmra.mrb[0].mxu0 %v1025
    %v1093 = vpop.f32.mrb[0].mxu0
    %v1094 = vadd.f32 %v406, %v1093
    %v1095 = vpop.f32.mrb[0].mxu0
    %1096 = vdwg.mxu0
    %v1097 = vxor.u32 %v1094, 2147483648
    %v1098 = vmul.f32 %v1097, 1.442695
    %v1099 = vpow.pop %v1098
    %v1100 = vadd.f32 %v1099, 1.0
    %v1101 = vrcp.pop %v1100
    %v1102 = vmul.f32 1.0, %v1101
    %v1103 = vmul.f32 %v1102, 2.0
    %v1104 = vsub.f32 %v1103, 1.0
    %v1105 = vmul.f32 %v1102, %v910
    %1107 = vrot.lane.b32.xlu0 %v1104, 64
    %v1108 = vpop.permute.xlu0 %1107
    %v1110 = vmul.f32 %v1102, %v1108
    %1112 = vrot.lane.b32.xlu0 %v1110, 32
    %v1113 = vpop.permute.xlu0 %1112
    %v1115 = vadd.f32 %v1105, %v1113
    %v1116 = vtanh.pop %v1115
    %1118 = vrot.lane.b32.xlu0 %v1116, 64
    %v1119 = vpop.permute.xlu0 %1118
    %v1121 = vmul.f32 %v1102, %v1119
    %v1122 = vsel %vm288, %v1017, 0
    %1124 = vmatprep.subr.mxu0 0.0
    %1125 = vmatpush1.msra.mxu0 %v284
    %1126 = vmatprep.subr.mxu0 0.0
    %1127 = vmatpush1.msra.mxu0 %v285
    %1128 = vmatprep.subr.mxu0 0.0
    %1129 = vmatpush1.msra.mxu0 %v286
    %1130 = vmatprep.subr.mxu0 0.0
    %1131 = vmatpush1.msra.mxu0 %v287
    %1132 = vmatprep.subr.mxu0 0.0
    %1133 = vmatpush1.msra.mxu0 0.0
    %1134 = vmatprep.subr.mxu0 0.0
    %1135 = vmatpush1.msra.mxu0 0.0
    %1136 = vmatprep.subr.mxu0 0.0
    %1137 = vmatpush1.msra.mxu0 0.0
    %1138 = vmatprep.subr.mxu0 0.0
    %1139 = vmatpush1.msra.mxu0 0.0
    %1140 = vmatprep.subr.mxu0 0.0
    %1141 = vmatpush1.msra.mxu0 0.0
    %1142 = vmatprep.subr.mxu0 0.0
    %1143 = vmatpush1.msra.mxu0 0.0
    %1144 = vmatprep.subr.mxu0 0.0
    %1145 = vmatpush1.msra.mxu0 0.0
    %1146 = vmatprep.subr.mxu0 0.0
    %1147 = vmatpush1.msra.mxu0 0.0
    %1148 = vmatprep.subr.mxu0 0.0
    %1149 = vmatpush1.msra.mxu0 0.0
    %1150 = vmatprep.subr.mxu0 0.0
    %1151 = vmatpush1.msra.mxu0 0.0
    %1152 = vmatprep.subr.mxu0 0.0
    %1153 = vmatpush1.msra.mxu0 0.0
    %1154 = vmatprep.subr.mxu0 0.0
    %1155 = vmatpush1.msra.mxu0 0.0
    %1156 = vmatprep.subr.mxu0 0.0
    %1157 = vmatpush1.msra.mxu0 0.0
    %1158 = vmatprep.subr.mxu0 0.0
    %1159 = vmatpush1.msra.mxu0 0.0
    %1160 = vmatprep.subr.mxu0 0.0
    %1161 = vmatpush1.msra.mxu0 0.0
    %1162 = vmatprep.subr.mxu0 0.0
    %1163 = vmatpush1.msra.mxu0 0.0
    %1164 = vmatprep.subr.mxu0 0.0
    %1165 = vmatpush1.msra.mxu0 0.0
    %1166 = vmatprep.subr.mxu0 0.0
    %1167 = vmatpush1.msra.mxu0 0.0
    %1168 = vmatprep.subr.mxu0 0.0
    %1169 = vmatpush1.msra.mxu0 0.0
    %1170 = vmatprep.subr.mxu0 0.0
    %1171 = vmatpush1.msra.mxu0 0.0
    %1172 = vmatprep.subr.mxu0 0.0
    %1173 = vmatpush1.msra.mxu0 0.0
    %1174 = vmatprep.subr.mxu0 0.0
    %1175 = vmatpush1.msra.mxu0 0.0
    %1176 = vmatprep.subr.mxu0 0.0
    %1177 = vmatpush1.msra.mxu0 0.0
    %1178 = vmatprep.subr.mxu0 0.0
    %1179 = vmatpush1.msra.mxu0 0.0
    %1180 = vmatprep.subr.mxu0 0.0
    %1181 = vmatpush1.msra.mxu0 0.0
    %1182 = vmatprep.subr.mxu0 0.0
    %1183 = vmatpush1.msra.mxu0 0.0
    %1184 = vmatprep.subr.mxu0 0.0
    %1185 = vmatpush1.msra.mxu0 0.0
    %1186 = vmatprep.subr.mxu0 0.0
    %1187 = vmatpush1.msra.mxu0 0.0
    %1188 = vmatprep.mubr.f32.mxu0 0.0
    %1189 = vmatmul.mubr.f32.gmra.mrb[0].mxu0 %v1122
    %v1190 = vpop.f32.mrb[0].mxu0
    %v1191 = vadd.f32 0.0, %v1190
    %v1192 = vpop.f32.mrb[0].mxu0
    %1193 = vdwg.mxu0
    %v1194 = vadd.f32 %v266, %v1191
    %v1195 = vxor.u32 %v1194, 2147483648
    %v1196 = vmul.f32 %v1195, 1.442695
    %v1197 = vpow.pop %v1196
    %v1198 = vadd.f32 %v1197, 1.0
    %v1199 = vrcp.pop %v1198
    %v1200 = vmul.f32 1.0, %v1199
    %v1201 = vmul.f32 %v1200, 2.0
    %v1202 = vsub.f32 %v1201, 1.0
    %v1203 = vmul.f32 %v1200, %v1008
    %1205 = vrot.lane.b32.xlu0 %v1202, 64
    %v1206 = vpop.permute.xlu0 %1205
    %v1208 = vmul.f32 %v1200, %v1206
    %1210 = vrot.lane.b32.xlu0 %v1208, 32
    %v1211 = vpop.permute.xlu0 %1210
    %v1213 = vadd.f32 %v1203, %v1211
    %v1214 = vtanh.pop %v1213
    %1216 = vrot.lane.b32.xlu0 %v1214, 64
    %v1217 = vpop.permute.xlu0 %1216
    %v1219 = vmul.f32 %v1200, %v1217
    %1221 = vrot.lane.b32.xlu0 %v1219, 32
    %v1222 = vpop.permute.xlu0 %1221
    %1225 = vrot.lane.b32.xlu0 %v1121, 64
    %v1226 = vpop.permute.xlu0 %1225
    %v1228 = vsel %vm288, %v1222, %v1226
    %v1230 = vsel %vm408, %v1228, 0
    %1232 = vmatprep.subr.mxu0 0.0
    %1233 = vmatpush1.msra.mxu0 %v393
    %1234 = vmatprep.subr.mxu0 0.0
    %1235 = vmatpush1.msra.mxu0 %v394
    %1236 = vmatprep.subr.mxu0 0.0
    %1237 = vmatpush1.msra.mxu0 %v395
    %1238 = vmatprep.subr.mxu0 0.0
    %1239 = vmatpush1.msra.mxu0 %v396
    %1240 = vmatprep.subr.mxu0 0.0
    %1241 = vmatpush1.msra.mxu0 %v397
    %1242 = vmatprep.subr.mxu0 0.0
    %1243 = vmatpush1.msra.mxu0 %v398
    %1244 = vmatprep.subr.mxu0 0.0
    %1245 = vmatpush1.msra.mxu0 %v399
    %1246 = vmatprep.subr.mxu0 0.0
    %1247 = vmatpush1.msra.mxu0 %v400
    %1248 = vmatprep.subr.mxu0 0.0
    %1249 = vmatpush1.msra.mxu0 0.0
    %1250 = vmatprep.subr.mxu0 0.0
    %1251 = vmatpush1.msra.mxu0 0.0
    %1252 = vmatprep.subr.mxu0 0.0
    %1253 = vmatpush1.msra.mxu0 0.0
    %1254 = vmatprep.subr.mxu0 0.0
    %1255 = vmatpush1.msra.mxu0 0.0
    %1256 = vmatprep.subr.mxu0 0.0
    %1257 = vmatpush1.msra.mxu0 0.0
    %1258 = vmatprep.subr.mxu0 0.0
    %1259 = vmatpush1.msra.mxu0 0.0
    %1260 = vmatprep.subr.mxu0 0.0
    %1261 = vmatpush1.msra.mxu0 0.0
    %1262 = vmatprep.subr.mxu0 0.0
    %1263 = vmatpush1.msra.mxu0 0.0
    %1264 = vmatprep.subr.mxu0 0.0
    %1265 = vmatpush1.msra.mxu0 0.0
    %1266 = vmatprep.subr.mxu0 0.0
    %1267 = vmatpush1.msra.mxu0 0.0
    %1268 = vmatprep.subr.mxu0 0.0
    %1269 = vmatpush1.msra.mxu0 0.0
    %1270 = vmatprep.subr.mxu0 0.0
    %1271 = vmatpush1.msra.mxu0 0.0
    %1272 = vmatprep.subr.mxu0 0.0
    %1273 = vmatpush1.msra.mxu0 0.0
    %1274 = vmatprep.subr.mxu0 0.0
    %1275 = vmatpush1.msra.mxu0 0.0
    %1276 = vmatprep.subr.mxu0 0.0
    %1277 = vmatpush1.msra.mxu0 0.0
    %1278 = vmatprep.subr.mxu0 0.0
    %1279 = vmatpush1.msra.mxu0 0.0
    %1280 = vmatprep.subr.mxu0 0.0
    %1281 = vmatpush1.msra.mxu0 0.0
    %1282 = vmatprep.subr.mxu0 0.0
    %1283 = vmatpush1.msra.mxu0 0.0
    %1284 = vmatprep.subr.mxu0 0.0
    %1285 = vmatpush1.msra.mxu0 0.0
    %1286 = vmatprep.subr.mxu0 0.0
    %1287 = vmatpush1.msra.mxu0 0.0
    %1288 = vmatprep.subr.mxu0 0.0
    %1289 = vmatpush1.msra.mxu0 0.0
    %1290 = vmatprep.subr.mxu0 0.0
    %1291 = vmatpush1.msra.mxu0 0.0
    %1292 = vmatprep.subr.mxu0 0.0
    %1293 = vmatpush1.msra.mxu0 0.0
    %1294 = vmatprep.subr.mxu0 0.0
    %1295 = vmatpush1.msra.mxu0 0.0
    %1296 = vmatprep.mubr.f32.mxu0 0.0
    %1297 = vmatmul.mubr.f32.gmra.mrb[0].mxu0 %v1230
    %v1298 = vpop.f32.mrb[0].mxu0
    %v1299 = vadd.f32 %v406, %v1298
    %v1300 = vpop.f32.mrb[0].mxu0
    %1301 = vdwg.mxu0
    %v1302 = vxor.u32 %v1299, 2147483648
    %v1303 = vmul.f32 %v1302, 1.442695
    %v1304 = vpow.pop %v1303
    %v1305 = vadd.f32 %v1304, 1.0
    %v1306 = vrcp.pop %v1305
    %v1307 = vmul.f32 1.0, %v1306
    %v1308 = vmul.f32 %v1307, 2.0
    %v1309 = vsub.f32 %v1308, 1.0
    %v1310 = vmul.f32 %v1307, %v1115
    %1312 = vrot.lane.b32.xlu0 %v1309, 64
    %v1313 = vpop.permute.xlu0 %1312
    %v1315 = vmul.f32 %v1307, %v1313
    %1317 = vrot.lane.b32.xlu0 %v1315, 32
    %v1318 = vpop.permute.xlu0 %1317
    %v1320 = vadd.f32 %v1310, %v1318
    %v1321 = vtanh.pop %v1320
    %1323 = vrot.lane.b32.xlu0 %v1321, 64
    %v1324 = vpop.permute.xlu0 %1323
    %v1326 = vmul.f32 %v1307, %v1324
    %v1327 = vsel %vm288, %v1222, 0
    %1329 = vmatprep.subr.mxu0 0.0
    %1330 = vmatpush1.msra.mxu0 %v284
    %1331 = vmatprep.subr.mxu0 0.0
    %1332 = vmatpush1.msra.mxu0 %v285
    %1333 = vmatprep.subr.mxu0 0.0
    %1334 = vmatpush1.msra.mxu0 %v286
    %1335 = vmatprep.subr.mxu0 0.0
    %1336 = vmatpush1.msra.mxu0 %v287
    %1337 = vmatprep.subr.mxu0 0.0
    %1338 = vmatpush1.msra.mxu0 0.0
    %1339 = vmatprep.subr.mxu0 0.0
    %1340 = vmatpush1.msra.mxu0 0.0
    %1341 = vmatprep.subr.mxu0 0.0
    %1342 = vmatpush1.msra.mxu0 0.0
    %1343 = vmatprep.subr.mxu0 0.0
    %1344 = vmatpush1.msra.mxu0 0.0
    %1345 = vmatprep.subr.mxu0 0.0
    %1346 = vmatpush1.msra.mxu0 0.0
    %1347 = vmatprep.subr.mxu0 0.0
    %1348 = vmatpush1.msra.mxu0 0.0
    %1349 = vmatprep.subr.mxu0 0.0
    %1350 = vmatpush1.msra.mxu0 0.0
    %1351 = vmatprep.subr.mxu0 0.0
    %1352 = vmatpush1.msra.mxu0 0.0
    %1353 = vmatprep.subr.mxu0 0.0
    %1354 = vmatpush1.msra.mxu0 0.0
    %1355 = vmatprep.subr.mxu0 0.0
    %1356 = vmatpush1.msra.mxu0 0.0
    %1357 = vmatprep.subr.mxu0 0.0
    %1358 = vmatpush1.msra.mxu0 0.0
    %1359 = vmatprep.subr.mxu0 0.0
    %1360 = vmatpush1.msra.mxu0 0.0
    %1361 = vmatprep.subr.mxu0 0.0
    %1362 = vmatpush1.msra.mxu0 0.0
    %1363 = vmatprep.subr.mxu0 0.0
    %1364 = vmatpush1.msra.mxu0 0.0
    %1365 = vmatprep.subr.mxu0 0.0
    %1366 = vmatpush1.msra.mxu0 0.0
    %1367 = vmatprep.subr.mxu0 0.0
    %1368 = vmatpush1.msra.mxu0 0.0
    %1369 = vmatprep.subr.mxu0 0.0
    %1370 = vmatpush1.msra.mxu0 0.0
    %1371 = vmatprep.subr.mxu0 0.0
    %1372 = vmatpush1.msra.mxu0 0.0
    %1373 = vmatprep.subr.mxu0 0.0
    %1374 = vmatpush1.msra.mxu0 0.0
    %1375 = vmatprep.subr.mxu0 0.0
    %1376 = vmatpush1.msra.mxu0 0.0
    %1377 = vmatprep.subr.mxu0 0.0
    %1378 = vmatpush1.msra.mxu0 0.0
    %1379 = vmatprep.subr.mxu0 0.0
    %1380 = vmatpush1.msra.mxu0 0.0
    %1381 = vmatprep.subr.mxu0 0.0
    %1382 = vmatpush1.msra.mxu0 0.0
    %1383 = vmatprep.subr.mxu0 0.0
    %1384 = vmatpush1.msra.mxu0 0.0
    %1385 = vmatprep.subr.mxu0 0.0
    %1386 = vmatpush1.msra.mxu0 0.0
    %1387 = vmatprep.subr.mxu0 0.0
    %1388 = vmatpush1.msra.mxu0 0.0
    %1389 = vmatprep.subr.mxu0 0.0
    %1390 = vmatpush1.msra.mxu0 0.0
    %1391 = vmatprep.subr.mxu0 0.0
    %1392 = vmatpush1.msra.mxu0 0.0
    %1393 = vmatprep.mubr.f32.mxu0 0.0
    %1394 = vmatmul.mubr.f32.gmra.mrb[0].mxu0 %v1327
    %v1395 = vpop.f32.mrb[0].mxu0
    %v1396 = vadd.f32 0.0, %v1395
    %v1397 = vpop.f32.mrb[0].mxu0
    %1398 = vdwg.mxu0
    %v1399 = vadd.f32 %v271, %v1396
    %v1400 = vxor.u32 %v1399, 2147483648
    %v1401 = vmul.f32 %v1400, 1.442695
    %v1402 = vpow.pop %v1401
    %v1403 = vadd.f32 %v1402, 1.0
    %v1404 = vrcp.pop %v1403
    %v1405 = vmul.f32 1.0, %v1404
    %v1406 = vmul.f32 %v1405, 2.0
    %v1407 = vsub.f32 %v1406, 1.0
    %v1408 = vmul.f32 %v1405, %v1213
    %1410 = vrot.lane.b32.xlu0 %v1407, 64
    %v1411 = vpop.permute.xlu0 %1410
    %v1413 = vmul.f32 %v1405, %v1411
    %1415 = vrot.lane.b32.xlu0 %v1413, 32
    %v1416 = vpop.permute.xlu0 %1415
    %v1418 = vadd.f32 %v1408, %v1416
    %v1419 = vtanh.pop %v1418
    %1421 = vrot.lane.b32.xlu0 %v1419, 64
    %v1422 = vpop.permute.xlu0 %1421
    %v1424 = vmul.f32 %v1405, %v1422
    %1426 = vrot.lane.b32.xlu0 %v1424, 32
    %v1427 = vpop.permute.xlu0 %1426
    %1430 = vrot.lane.b32.xlu0 %v1326, 64
    %v1431 = vpop.permute.xlu0 %1430
    %v1433 = vsel %vm288, %v1427, %v1431
    %v1435 = vsel %vm408, %v1433, 0
    %1437 = vmatprep.subr.mxu0 0.0
    %1438 = vmatpush1.msra.mxu0 %v393
    %1439 = vmatprep.subr.mxu0 0.0
    %1440 = vmatpush1.msra.mxu0 %v394
    %1441 = vmatprep.subr.mxu0 0.0
    %1442 = vmatpush1.msra.mxu0 %v395
    %1443 = vmatprep.subr.mxu0 0.0
    %1444 = vmatpush1.msra.mxu0 %v396
    %1445 = vmatprep.subr.mxu0 0.0
    %1446 = vmatpush1.msra.mxu0 %v397
    %1447 = vmatprep.subr.mxu0 0.0
    %1448 = vmatpush1.msra.mxu0 %v398
    %1449 = vmatprep.subr.mxu0 0.0
    %1450 = vmatpush1.msra.mxu0 %v399
    %1451 = vmatprep.subr.mxu0 0.0
    %1452 = vmatpush1.msra.mxu0 %v400
    %1453 = vmatprep.subr.mxu0 0.0
    %1454 = vmatpush1.msra.mxu0 0.0
    %1455 = vmatprep.subr.mxu0 0.0
    %1456 = vmatpush1.msra.mxu0 0.0
    %1457 = vmatprep.subr.mxu0 0.0
    %1458 = vmatpush1.msra.mxu0 0.0
    %1459 = vmatprep.subr.mxu0 0.0
    %1460 = vmatpush1.msra.mxu0 0.0
    %1461 = vmatprep.subr.mxu0 0.0
    %1462 = vmatpush1.msra.mxu0 0.0
    %1463 = vmatprep.subr.mxu0 0.0
    %1464 = vmatpush1.msra.mxu0 0.0
    %1465 = vmatprep.subr.mxu0 0.0
    %1466 = vmatpush1.msra.mxu0 0.0
    %1467 = vmatprep.subr.mxu0 0.0
    %1468 = vmatpush1.msra.mxu0 0.0
    %1469 = vmatprep.subr.mxu0 0.0
    %1470 = vmatpush1.msra.mxu0 0.0
    %1471 = vmatprep.subr.mxu0 0.0
    %1472 = vmatpush1.msra.mxu0 0.0
    %1473 = vmatprep.subr.mxu0 0.0
    %1474 = vmatpush1.msra.mxu0 0.0
    %1475 = vmatprep.subr.mxu0 0.0
    %1476 = vmatpush1.msra.mxu0 0.0
    %1477 = vmatprep.subr.mxu0 0.0
    %1478 = vmatpush1.msra.mxu0 0.0
    %1479 = vmatprep.subr.mxu0 0.0
    %1480 = vmatpush1.msra.mxu0 0.0
    %1481 = vmatprep.subr.mxu0 0.0
    %1482 = vmatpush1.msra.mxu0 0.0
    %1483 = vmatprep.subr.mxu0 0.0
    %1484 = vmatpush1.msra.mxu0 0.0
    %1485 = vmatprep.subr.mxu0 0.0
    %1486 = vmatpush1.msra.mxu0 0.0
    %1487 = vmatprep.subr.mxu0 0.0
    %1488 = vmatpush1.msra.mxu0 0.0
    %1489 = vmatprep.subr.mxu0 0.0
    %1490 = vmatpush1.msra.mxu0 0.0
    %1491 = vmatprep.subr.mxu0 0.0
    %1492 = vmatpush1.msra.mxu0 0.0
    %1493 = vmatprep.subr.mxu0 0.0
    %1494 = vmatpush1.msra.mxu0 0.0
    %1495 = vmatprep.subr.mxu0 0.0
    %1496 = vmatpush1.msra.mxu0 0.0
    %1497 = vmatprep.subr.mxu0 0.0
    %1498 = vmatpush1.msra.mxu0 0.0
    %1499 = vmatprep.subr.mxu0 0.0
    %1500 = vmatpush1.msra.mxu0 0.0
    %1501 = vmatprep.mubr.f32.mxu0 0.0
    %1502 = vmatmul.mubr.f32.gmra.mrb[0].mxu0 %v1435
    %v1503 = vpop.f32.mrb[0].mxu0
    %v1504 = vadd.f32 %v406, %v1503
    %v1505 = vpop.f32.mrb[0].mxu0
    %1506 = vdwg.mxu0
    %v1507 = vxor.u32 %v1504, 2147483648
    %v1508 = vmul.f32 %v1507, 1.442695
    %v1509 = vpow.pop %v1508
    %v1510 = vadd.f32 %v1509, 1.0
    %v1511 = vrcp.pop %v1510
    %v1512 = vmul.f32 1.0, %v1511
    %v1513 = vmul.f32 %v1512, 2.0
    %v1514 = vsub.f32 %v1513, 1.0
    %v1515 = vmul.f32 %v1512, %v1320
    %1517 = vrot.lane.b32.xlu0 %v1514, 64
    %v1518 = vpop.permute.xlu0 %1517
    %v1520 = vmul.f32 %v1512, %v1518
    %1522 = vrot.lane.b32.xlu0 %v1520, 32
    %v1523 = vpop.permute.xlu0 %1522
    %v1525 = vadd.f32 %v1515, %v1523
    %v1526 = vtanh.pop %v1525
    %1528 = vrot.lane.b32.xlu0 %v1526, 64
    %v1529 = vpop.permute.xlu0 %1528
    %v1531 = vmul.f32 %v1512, %v1529
    %v1532 = vsel %vm288, %v1427, 0
    %1534 = vmatprep.subr.mxu0 0.0
    %1535 = vmatpush1.msra.mxu0 %v284
    %1536 = vmatprep.subr.mxu0 0.0
    %1537 = vmatpush1.msra.mxu0 %v285
    %1538 = vmatprep.subr.mxu0 0.0
    %1539 = vmatpush1.msra.mxu0 %v286
    %1540 = vmatprep.subr.mxu0 0.0
    %1541 = vmatpush1.msra.mxu0 %v287
    %1542 = vmatprep.subr.mxu0 0.0
    %1543 = vmatpush1.msra.mxu0 0.0
    %1544 = vmatprep.subr.mxu0 0.0
    %1545 = vmatpush1.msra.mxu0 0.0
    %1546 = vmatprep.subr.mxu0 0.0
    %1547 = vmatpush1.msra.mxu0 0.0
    %1548 = vmatprep.subr.mxu0 0.0
    %1549 = vmatpush1.msra.mxu0 0.0
    %1550 = vmatprep.subr.mxu0 0.0
    %1551 = vmatpush1.msra.mxu0 0.0
    %1552 = vmatprep.subr.mxu0 0.0
    %1553 = vmatpush1.msra.mxu0 0.0
    %1554 = vmatprep.subr.mxu0 0.0
    %1555 = vmatpush1.msra.mxu0 0.0
    %1556 = vmatprep.subr.mxu0 0.0
    %1557 = vmatpush1.msra.mxu0 0.0
    %1558 = vmatprep.subr.mxu0 0.0
    %1559 = vmatpush1.msra.mxu0 0.0
    %1560 = vmatprep.subr.mxu0 0.0
    %1561 = vmatpush1.msra.mxu0 0.0
    %1562 = vmatprep.subr.mxu0 0.0
    %1563 = vmatpush1.msra.mxu0 0.0
    %1564 = vmatprep.subr.mxu0 0.0
    %1565 = vmatpush1.msra.mxu0 0.0
    %1566 = vmatprep.subr.mxu0 0.0
    %1567 = vmatpush1.msra.mxu0 0.0
    %1568 = vmatprep.subr.mxu0 0.0
    %1569 = vmatpush1.msra.mxu0 0.0
    %1570 = vmatprep.subr.mxu0 0.0
    %1571 = vmatpush1.msra.mxu0 0.0
    %1572 = vmatprep.subr.mxu0 0.0
    %1573 = vmatpush1.msra.mxu0 0.0
    %1574 = vmatprep.subr.mxu0 0.0
    %1575 = vmatpush1.msra.mxu0 0.0
    %1576 = vmatprep.subr.mxu0 0.0
    %1577 = vmatpush1.msra.mxu0 0.0
    %1578 = vmatprep.subr.mxu0 0.0
    %1579 = vmatpush1.msra.mxu0 0.0
    %1580 = vmatprep.subr.mxu0 0.0
    %1581 = vmatpush1.msra.mxu0 0.0
    %1582 = vmatprep.subr.mxu0 0.0
    %1583 = vmatpush1.msra.mxu0 0.0
    %1584 = vmatprep.subr.mxu0 0.0
    %1585 = vmatpush1.msra.mxu0 0.0
    %1586 = vmatprep.subr.mxu0 0.0
    %1587 = vmatpush1.msra.mxu0 0.0
    %1588 = vmatprep.subr.mxu0 0.0
    %1589 = vmatpush1.msra.mxu0 0.0
    %1590 = vmatprep.subr.mxu0 0.0
    %1591 = vmatpush1.msra.mxu0 0.0
    %1592 = vmatprep.subr.mxu0 0.0
    %1593 = vmatpush1.msra.mxu0 0.0
    %1594 = vmatprep.subr.mxu0 0.0
    %1595 = vmatpush1.msra.mxu0 0.0
    %1596 = vmatprep.subr.mxu0 0.0
    %1597 = vmatpush1.msra.mxu0 0.0
    %1598 = vmatprep.mubr.f32.mxu0 0.0
    %1599 = vmatmul.mubr.f32.gmra.mrb[0].mxu0 %v1532
    %v1600 = vpop.f32.mrb[0].mxu0
    %v1601 = vadd.f32 0.0, %v1600
    %v1602 = vpop.f32.mrb[0].mxu0
    %1603 = vdwg.mxu0
    %v1604 = vadd.f32 %v276, %v1601
    %v1605 = vxor.u32 %v1604, 2147483648
    %v1606 = vmul.f32 %v1605, 1.442695
    %v1607 = vpow.pop %v1606
    %v1608 = vadd.f32 %v1607, 1.0
    %v1609 = vrcp.pop %v1608
    %v1610 = vmul.f32 1.0, %v1609
    %v1611 = vmul.f32 %v1610, 2.0
    %v1612 = vsub.f32 %v1611, 1.0
    %v1613 = vmul.f32 %v1610, %v1418
    %1615 = vrot.lane.b32.xlu0 %v1612, 64
    %v1616 = vpop.permute.xlu0 %1615
    %v1618 = vmul.f32 %v1610, %v1616
    %1620 = vrot.lane.b32.xlu0 %v1618, 32
    %v1621 = vpop.permute.xlu0 %1620
    %v1623 = vadd.f32 %v1613, %v1621
    %v1624 = vtanh.pop %v1623
    %1626 = vrot.lane.b32.xlu0 %v1624, 64
    %v1627 = vpop.permute.xlu0 %1626
    %v1629 = vmul.f32 %v1610, %v1627
    %1631 = vrot.lane.b32.xlu0 %v1629, 32
    %v1632 = vpop.permute.xlu0 %1631
    %1635 = vrot.lane.b32.xlu0 %v1531, 64
    %v1636 = vpop.permute.xlu0 %1635
    %v1638 = vsel %vm288, %v1632, %v1636
    %v1640 = vsel %vm408, %v1638, 0
    %1642 = vmatprep.subr.mxu0 0.0
    %1643 = vmatpush1.msra.mxu0 %v393
    %1644 = vmatprep.subr.mxu0 0.0
    %1645 = vmatpush1.msra.mxu0 %v394
    %1646 = vmatprep.subr.mxu0 0.0
    %1647 = vmatpush1.msra.mxu0 %v395
    %1648 = vmatprep.subr.mxu0 0.0
    %1649 = vmatpush1.msra.mxu0 %v396
    %1650 = vmatprep.subr.mxu0 0.0
    %1651 = vmatpush1.msra.mxu0 %v397
    %1652 = vmatprep.subr.mxu0 0.0
    %1653 = vmatpush1.msra.mxu0 %v398
    %1654 = vmatprep.subr.mxu0 0.0
    %1655 = vmatpush1.msra.mxu0 %v399
    %1656 = vmatprep.subr.mxu0 0.0
    %1657 = vmatpush1.msra.mxu0 %v400
    %1658 = vmatprep.subr.mxu0 0.0
    %1659 = vmatpush1.msra.mxu0 0.0
    %1660 = vmatprep.subr.mxu0 0.0
    %1661 = vmatpush1.msra.mxu0 0.0
    %1662 = vmatprep.subr.mxu0 0.0
    %1663 = vmatpush1.msra.mxu0 0.0
    %1664 = vmatprep.subr.mxu0 0.0
    %1665 = vmatpush1.msra.mxu0 0.0
    %1666 = vmatprep.subr.mxu0 0.0
    %1667 = vmatpush1.msra.mxu0 0.0
    %1668 = vmatprep.subr.mxu0 0.0
    %1669 = vmatpush1.msra.mxu0 0.0
    %1670 = vmatprep.subr.mxu0 0.0
    %1671 = vmatpush1.msra.mxu0 0.0
    %1672 = vmatprep.subr.mxu0 0.0
    %1673 = vmatpush1.msra.mxu0 0.0
    %1674 = vmatprep.subr.mxu0 0.0
    %1675 = vmatpush1.msra.mxu0 0.0
    %1676 = vmatprep.subr.mxu0 0.0
    %1677 = vmatpush1.msra.mxu0 0.0
    %1678 = vmatprep.subr.mxu0 0.0
    %1679 = vmatpush1.msra.mxu0 0.0
    %1680 = vmatprep.subr.mxu0 0.0
    %1681 = vmatpush1.msra.mxu0 0.0
    %1682 = vmatprep.subr.mxu0 0.0
    %1683 = vmatpush1.msra.mxu0 0.0
    %1684 = vmatprep.subr.mxu0 0.0
    %1685 = vmatpush1.msra.mxu0 0.0
    %1686 = vmatprep.subr.mxu0 0.0
    %1687 = vmatpush1.msra.mxu0 0.0
    %1688 = vmatprep.subr.mxu0 0.0
    %1689 = vmatpush1.msra.mxu0 0.0
    %1690 = vmatprep.subr.mxu0 0.0
    %1691 = vmatpush1.msra.mxu0 0.0
    %1692 = vmatprep.subr.mxu0 0.0
    %1693 = vmatpush1.msra.mxu0 0.0
    %1694 = vmatprep.subr.mxu0 0.0
    %1695 = vmatpush1.msra.mxu0 0.0
    %1696 = vmatprep.subr.mxu0 0.0
    %1697 = vmatpush1.msra.mxu0 0.0
    %1698 = vmatprep.subr.mxu0 0.0
    %1699 = vmatpush1.msra.mxu0 0.0
    %1700 = vmatprep.subr.mxu0 0.0
    %1701 = vmatpush1.msra.mxu0 0.0
    %1702 = vmatprep.subr.mxu0 0.0
    %1703 = vmatpush1.msra.mxu0 0.0
    %1704 = vmatprep.subr.mxu0 0.0
    %1705 = vmatpush1.msra.mxu0 0.0
    %1706 = vmatprep.mubr.f32.mxu0 0.0
    %1707 = vmatmul.mubr.f32.gmra.mrb[0].mxu0 %v1640
    %v1708 = vpop.f32.mrb[0].mxu0
    %v1709 = vadd.f32 %v406, %v1708
    %v1710 = vpop.f32.mrb[0].mxu0
    %1711 = vdwg.mxu0
    %v1712 = vxor.u32 %v1709, 2147483648
    %v1713 = vmul.f32 %v1712, 1.442695
    %v1714 = vpow.pop %v1713
    %v1715 = vadd.f32 %v1714, 1.0
    %v1716 = vrcp.pop %v1715
    %v1717 = vmul.f32 1.0, %v1716
    %v1718 = vmul.f32 %v1717, 2.0
    %v1719 = vsub.f32 %v1718, 1.0
    %v1720 = vmul.f32 %v1717, %v1525
    %1722 = vrot.lane.b32.xlu0 %v1719, 64
    %v1723 = vpop.permute.xlu0 %1722
    %v1725 = vmul.f32 %v1717, %v1723
    %1727 = vrot.lane.b32.xlu0 %v1725, 32
    %v1728 = vpop.permute.xlu0 %1727
    %v1730 = vadd.f32 %v1720, %v1728
    %v1731 = vtanh.pop %v1730
    %1733 = vrot.lane.b32.xlu0 %v1731, 64
    %v1734 = vpop.permute.xlu0 %1733
    %v1736 = vmul.f32 %v1717, %v1734
    %v1737 = vsel %vm288, %v1632, 0
    %1739 = vmatprep.subr.mxu0 0.0
    %1740 = vmatpush1.msra.mxu0 %v284
    %1741 = vmatprep.subr.mxu0 0.0
    %1742 = vmatpush1.msra.mxu0 %v285
    %1743 = vmatprep.subr.mxu0 0.0
    %1744 = vmatpush1.msra.mxu0 %v286
    %1745 = vmatprep.subr.mxu0 0.0
    %1746 = vmatpush1.msra.mxu0 %v287
    %1747 = vmatprep.subr.mxu0 0.0
    %1748 = vmatpush1.msra.mxu0 0.0
    %1749 = vmatprep.subr.mxu0 0.0
    %1750 = vmatpush1.msra.mxu0 0.0
    %1751 = vmatprep.subr.mxu0 0.0
    %1752 = vmatpush1.msra.mxu0 0.0
    %1753 = vmatprep.subr.mxu0 0.0
    %1754 = vmatpush1.msra.mxu0 0.0
    %1755 = vmatprep.subr.mxu0 0.0
    %1756 = vmatpush1.msra.mxu0 0.0
    %1757 = vmatprep.subr.mxu0 0.0
    %1758 = vmatpush1.msra.mxu0 0.0
    %1759 = vmatprep.subr.mxu0 0.0
    %1760 = vmatpush1.msra.mxu0 0.0
    %1761 = vmatprep.subr.mxu0 0.0
    %1762 = vmatpush1.msra.mxu0 0.0
    %1763 = vmatprep.subr.mxu0 0.0
    %1764 = vmatpush1.msra.mxu0 0.0
    %1765 = vmatprep.subr.mxu0 0.0
    %1766 = vmatpush1.msra.mxu0 0.0
    %1767 = vmatprep.subr.mxu0 0.0
    %1768 = vmatpush1.msra.mxu0 0.0
    %1769 = vmatprep.subr.mxu0 0.0
    %1770 = vmatpush1.msra.mxu0 0.0
    %1771 = vmatprep.subr.mxu0 0.0
    %1772 = vmatpush1.msra.mxu0 0.0
    %1773 = vmatprep.subr.mxu0 0.0
    %1774 = vmatpush1.msra.mxu0 0.0
    %1775 = vmatprep.subr.mxu0 0.0
    %1776 = vmatpush1.msra.mxu0 0.0
    %1777 = vmatprep.subr.mxu0 0.0
    %1778 = vmatpush1.msra.mxu0 0.0
    %1779 = vmatprep.subr.mxu0 0.0
    %1780 = vmatpush1.msra.mxu0 0.0
    %1781 = vmatprep.subr.mxu0 0.0
    %1782 = vmatpush1.msra.mxu0 0.0
    %1783 = vmatprep.subr.mxu0 0.0
    %1784 = vmatpush1.msra.mxu0 0.0
    %1785 = vmatprep.subr.mxu0 0.0
    %1786 = vmatpush1.msra.mxu0 0.0
    %1787 = vmatprep.subr.mxu0 0.0
    %1788 = vmatpush1.msra.mxu0 0.0
    %1789 = vmatprep.subr.mxu0 0.0
    %1790 = vmatpush1.msra.mxu0 0.0
    %1791 = vmatprep.subr.mxu0 0.0
    %1792 = vmatpush1.msra.mxu0 0.0
    %1793 = vmatprep.subr.mxu0 0.0
    %1794 = vmatpush1.msra.mxu0 0.0
    %1795 = vmatprep.subr.mxu0 0.0
    %1796 = vmatpush1.msra.mxu0 0.0
    %1797 = vmatprep.subr.mxu0 0.0
    %1798 = vmatpush1.msra.mxu0 0.0
    %1799 = vmatprep.subr.mxu0 0.0
    %1800 = vmatpush1.msra.mxu0 0.0
    %1801 = vmatprep.subr.mxu0 0.0
    %1802 = vmatpush1.msra.mxu0 0.0
    %1803 = vmatprep.mubr.f32.mxu0 0.0
    %1804 = vmatmul.mubr.f32.gmra.mrb[0].mxu0 %v1737
    %v1805 = vpop.f32.mrb[0].mxu0
    %v1806 = vadd.f32 0.0, %v1805
    %v1807 = vpop.f32.mrb[0].mxu0
    %1808 = vdwg.mxu0
    %v1809 = vadd.f32 %v281, %v1806
    %v1810 = vxor.u32 %v1809, 2147483648
    %v1811 = vmul.f32 %v1810, 1.442695
    %v1812 = vpow.pop %v1811
    %v1813 = vadd.f32 %v1812, 1.0
    %v1814 = vrcp.pop %v1813
    %v1815 = vmul.f32 1.0, %v1814
    %v1816 = vmul.f32 %v1815, 2.0
    %v1817 = vsub.f32 %v1816, 1.0
    %v1818 = vmul.f32 %v1815, %v1623
    %1820 = vrot.lane.b32.xlu0 %v1817, 64
    %v1821 = vpop.permute.xlu0 %1820
    %v1823 = vmul.f32 %v1815, %v1821
    %1825 = vrot.lane.b32.xlu0 %v1823, 32
    %v1826 = vpop.permute.xlu0 %1825
    %v1828 = vadd.f32 %v1818, %v1826
    %v1829 = vtanh.pop %v1828
    %1831 = vrot.lane.b32.xlu0 %v1829, 64
    %v1832 = vpop.permute.xlu0 %1831
    %v1834 = vmul.f32 %v1815, %v1832
    %1836 = vrot.lane.b32.xlu0 %v1834, 32
    %v1837 = vpop.permute.xlu0 %1836
    %1840 = vrot.lane.b32.xlu0 %v1736, 64
    %v1841 = vpop.permute.xlu0 %1840
    %v1843 = vsel %vm288, %v1837, %v1841
    %v1845 = vsel %vm408, %v1843, 0
    %1847 = vmatprep.subr.mxu0 0.0
    %1848 = vmatpush1.msra.mxu0 %v393
    %1849 = vmatprep.subr.mxu0 0.0
    %1850 = vmatpush1.msra.mxu0 %v394
    %1851 = vmatprep.subr.mxu0 0.0
    %1852 = vmatpush1.msra.mxu0 %v395
    %1853 = vmatprep.subr.mxu0 0.0
    %1854 = vmatpush1.msra.mxu0 %v396
    %1855 = vmatprep.subr.mxu0 0.0
    %1856 = vmatpush1.msra.mxu0 %v397
    %1857 = vmatprep.subr.mxu0 0.0
    %1858 = vmatpush1.msra.mxu0 %v398
    %1859 = vmatprep.subr.mxu0 0.0
    %1860 = vmatpush1.msra.mxu0 %v399
    %1861 = vmatprep.subr.mxu0 0.0
    %1862 = vmatpush1.msra.mxu0 %v400
    %1863 = vmatprep.subr.mxu0 0.0
    %1864 = vmatpush1.msra.mxu0 0.0
    %1865 = vmatprep.subr.mxu0 0.0
    %1866 = vmatpush1.msra.mxu0 0.0
    %1867 = vmatprep.subr.mxu0 0.0
    %1868 = vmatpush1.msra.mxu0 0.0
    %1869 = vmatprep.subr.mxu0 0.0
    %1870 = vmatpush1.msra.mxu0 0.0
    %1871 = vmatprep.subr.mxu0 0.0
    %1872 = vmatpush1.msra.mxu0 0.0
    %1873 = vmatprep.subr.mxu0 0.0
    %1874 = vmatpush1.msra.mxu0 0.0
    %1875 = vmatprep.subr.mxu0 0.0
    %1876 = vmatpush1.msra.mxu0 0.0
    %1877 = vmatprep.subr.mxu0 0.0
    %1878 = vmatpush1.msra.mxu0 0.0
    %1879 = vmatprep.subr.mxu0 0.0
    %1880 = vmatpush1.msra.mxu0 0.0
    %1881 = vmatprep.subr.mxu0 0.0
    %1882 = vmatpush1.msra.mxu0 0.0
    %1883 = vmatprep.subr.mxu0 0.0
    %1884 = vmatpush1.msra.mxu0 0.0
    %1885 = vmatprep.subr.mxu0 0.0
    %1886 = vmatpush1.msra.mxu0 0.0
    %1887 = vmatprep.subr.mxu0 0.0
    %1888 = vmatpush1.msra.mxu0 0.0
    %1889 = vmatprep.subr.mxu0 0.0
    %1890 = vmatpush1.msra.mxu0 0.0
    %1891 = vmatprep.subr.mxu0 0.0
    %1892 = vmatpush1.msra.mxu0 0.0
    %1893 = vmatprep.subr.mxu0 0.0
    %1894 = vmatpush1.msra.mxu0 0.0
    %1895 = vmatprep.subr.mxu0 0.0
    %1896 = vmatpush1.msra.mxu0 0.0
    %1897 = vmatprep.subr.mxu0 0.0
    %1898 = vmatpush1.msra.mxu0 0.0
    %1899 = vmatprep.subr.mxu0 0.0
    %1900 = vmatpush1.msra.mxu0 0.0
    %1901 = vmatprep.subr.mxu0 0.0
    %1902 = vmatpush1.msra.mxu0 0.0
    %1903 = vmatprep.subr.mxu0 0.0
    %1904 = vmatpush1.msra.mxu0 0.0
    %1905 = vmatprep.subr.mxu0 0.0
    %1906 = vmatpush1.msra.mxu0 0.0
    %1907 = vmatprep.subr.mxu0 0.0
    %1908 = vmatpush1.msra.mxu0 0.0
    %1909 = vmatprep.subr.mxu0 0.0
    %1910 = vmatpush1.msra.mxu0 0.0
    %1911 = vmatprep.mubr.f32.mxu0 0.0
    %1912 = vmatmul.mubr.f32.gmra.mrb[0].mxu0 %v1845
    %v1913 = vpop.f32.mrb[0].mxu0
    %v1914 = vadd.f32 %v406, %v1913
    %v1915 = vpop.f32.mrb[0].mxu0
    %1916 = vdwg.mxu0
    %v1917 = vxor.u32 %v1914, 2147483648
    %v1918 = vmul.f32 %v1917, 1.442695
    %v1919 = vpow.pop %v1918
    %v1920 = vadd.f32 %v1919, 1.0
    %v1921 = vrcp.pop %v1920
    %v1922 = vmul.f32 1.0, %v1921
    %v1923 = vmul.f32 %v1922, 2.0
    %v1924 = vsub.f32 %v1923, 1.0
    %v1925 = vmul.f32 %v1922, %v1730
    %1927 = vrot.lane.b32.xlu0 %v1924, 64
    %v1928 = vpop.permute.xlu0 %1927
    %v1930 = vmul.f32 %v1922, %v1928
    %1932 = vrot.lane.b32.xlu0 %v1930, 32
    %v1933 = vpop.permute.xlu0 %1932
    %v1935 = vadd.f32 %v1925, %v1933
    %v1936 = vtanh.pop %v1935
    %1938 = vrot.lane.b32.xlu0 %v1936, 64
    %v1939 = vpop.permute.xlu0 %1938
    %v1941 = vmul.f32 %v1922, %v1939
    %v1942 = vld [vmem:[%s7] sm:$0xff]
    %v1943 = vld [vmem:[%s7 + $0x8] sm:$0xff]
    %v1944 = vld [vmem:[%s7 + $0x10] sm:$0xff]
    %v1945 = vld [vmem:[%s7 + $0x18] sm:$0xff]
    %v1946 = vld [vmem:[#allocation8] sm:$0x1]
    %v1948 = vlaneseq
    %v1949 = vshrl.u32 %v1948, 7
    %v1950 = vsub.s32 0, %v1949
    %v1951 = vrot.slane %v1946, %v1950
    %1954 = vrot.lane.b32.xlu0 %v1941, 32
    %v1955 = vpop.permute.xlu0 %1954
    %v1956 = vsel %vm288, %v1955, 0
    %1958 = vmatprep.subr.mxu0 0.0
    %1959 = vmatpush1.msra.mxu0 %v1942
    %1960 = vmatprep.subr.mxu0 0.0
    %1961 = vmatpush1.msra.mxu0 %v1943
    %1962 = vmatprep.subr.mxu0 0.0
    %1963 = vmatpush1.msra.mxu0 %v1944
    %1964 = vmatprep.subr.mxu0 0.0
    %1965 = vmatpush1.msra.mxu0 %v1945
    %1966 = vmatprep.subr.mxu0 0.0
    %1967 = vmatpush1.msra.mxu0 0.0
    %1968 = vmatprep.subr.mxu0 0.0
    %1969 = vmatpush1.msra.mxu0 0.0
    %1970 = vmatprep.subr.mxu0 0.0
    %1971 = vmatpush1.msra.mxu0 0.0
    %1972 = vmatprep.subr.mxu0 0.0
    %1973 = vmatpush1.msra.mxu0 0.0
    %1974 = vmatprep.subr.mxu0 0.0
    %1975 = vmatpush1.msra.mxu0 0.0
    %1976 = vmatprep.subr.mxu0 0.0
    %1977 = vmatpush1.msra.mxu0 0.0
    %1978 = vmatprep.subr.mxu0 0.0
    %1979 = vmatpush1.msra.mxu0 0.0
    %1980 = vmatprep.subr.mxu0 0.0
    %1981 = vmatpush1.msra.mxu0 0.0
    %1982 = vmatprep.subr.mxu0 0.0
    %1983 = vmatpush1.msra.mxu0 0.0
    %1984 = vmatprep.subr.mxu0 0.0
    %1985 = vmatpush1.msra.mxu0 0.0
    %1986 = vmatprep.subr.mxu0 0.0
    %1987 = vmatpush1.msra.mxu0 0.0
    %1988 = vmatprep.subr.mxu0 0.0
    %1989 = vmatpush1.msra.mxu0 0.0
    %1990 = vmatprep.subr.mxu0 0.0
    %1991 = vmatpush1.msra.mxu0 0.0
    %1992 = vmatprep.subr.mxu0 0.0
    %1993 = vmatpush1.msra.mxu0 0.0
    %1994 = vmatprep.subr.mxu0 0.0
    %1995 = vmatpush1.msra.mxu0 0.0
    %1996 = vmatprep.subr.mxu0 0.0
    %1997 = vmatpush1.msra.mxu0 0.0
    %1998 = vmatprep.subr.mxu0 0.0
    %1999 = vmatpush1.msra.mxu0 0.0
    %2000 = vmatprep.subr.mxu0 0.0
    %2001 = vmatpush1.msra.mxu0 0.0
    %2002 = vmatprep.subr.mxu0 0.0
    %2003 = vmatpush1.msra.mxu0 0.0
    %2004 = vmatprep.subr.mxu0 0.0
    %2005 = vmatpush1.msra.mxu0 0.0
    %2006 = vmatprep.subr.mxu0 0.0
    %2007 = vmatpush1.msra.mxu0 0.0
    %2008 = vmatprep.subr.mxu0 0.0
    %2009 = vmatpush1.msra.mxu0 0.0
    %2010 = vmatprep.subr.mxu0 0.0
    %2011 = vmatpush1.msra.mxu0 0.0
    %2012 = vmatprep.subr.mxu0 0.0
    %2013 = vmatpush1.msra.mxu0 0.0
    %2014 = vmatprep.subr.mxu0 0.0
    %2015 = vmatpush1.msra.mxu0 0.0
    %2016 = vmatprep.subr.mxu0 0.0
    %2017 = vmatpush1.msra.mxu0 0.0
    %2018 = vmatprep.subr.mxu0 0.0
    %2019 = vmatpush1.msra.mxu0 0.0
    %2020 = vmatprep.subr.mxu0 0.0
    %2021 = vmatpush1.msra.mxu0 0.0
    %2022 = vmatprep.mubr.f32.mxu0 0.0
    %2023 = vmatmul.mubr.f32.gmra.mrb[0].mxu0 %v1956
    %v2024 = vpop.f32.mrb[0].mxu0
    %v2025 = vadd.f32 %v1951, %v2024
    %v2026 = vpop.f32.mrb[0].mxu0
    %2027 = vdwg.mxu0
    %v2028 = vmul.f32 %v2025, 0.5
    %v2029 = vmul.f32 %v2028, 1.442695
    %v2030 = vpow.pop %v2029
    %v2031 = vld [vmem:[#allocation3] sm:$0xff]
    %2033 = vrot.lane.b32.xlu0 %v2030, 108
    %v2034 = vpop.permute.xlu0 %2033
    %v2036 = vmul.f32 %v2031, %v2034
    %v2037 = vadd.f32 %v2036, %v2025
    %2039 = vrot.lane.b32.xlu0 %v2037, 40
    %v2040 = vpop.permute.xlu0 %2039
    %vm2042 = vcmask 326656
    %v2043 = vsel %vm2042, %v2025, %v2040
    %vm2044 = vcmask 490496
    %v2045 = vsel %vm2044, %v2043, 0.0
    %2046 = vst.msk [vmem:[%s18] sm:$0xff] %vm408, %v2045
    %v2047 = vld [vmem:[#allocation10] sm:$0xff]
    %v2048 = vld [vmem:[#allocation10 + $0x8] sm:$0xff]
    %v2049 = vld [vmem:[#allocation10 + $0x10] sm:$0xf]
    %v2050 = vld [vmem:[%s10] sm:$0x1]
    %v2052 = vlaneseq
    %v2053 = vshrl.u32 %v2052, 7
    %v2054 = vsub.s32 0, %v2053
    %v2055 = vrot.slane %v2050, %v2054
    %vm2057 = vcmask 162816
    %v2058 = vsel %vm2057, %v2037, 0
    %v2061 = vsel %vm175, %v2049, 0
    %2063 = vmatprep.subr.mxu0 0.0
    %2064 = vmatpush1.msra.mxu0 %v2047
    %2065 = vmatprep.subr.mxu0 0.0
    %2066 = vmatpush1.msra.mxu0 %v2048
    %2067 = vmatprep.subr.mxu0 0.0
    %2068 = vmatpush1.msra.mxu0 %v2061
    %2069 = vmatprep.subr.mxu0 0.0
    %2070 = vmatpush1.msra.mxu0 0.0
    %2071 = vmatprep.subr.mxu0 0.0
    %2072 = vmatpush1.msra.mxu0 0.0
    %2073 = vmatprep.subr.mxu0 0.0
    %2074 = vmatpush1.msra.mxu0 0.0
    %2075 = vmatprep.subr.mxu0 0.0
    %2076 = vmatpush1.msra.mxu0 0.0
    %2077 = vmatprep.subr.mxu0 0.0
    %2078 = vmatpush1.msra.mxu0 0.0
    %2079 = vmatprep.subr.mxu0 0.0
    %2080 = vmatpush1.msra.mxu0 0.0
    %2081 = vmatprep.subr.mxu0 0.0
    %2082 = vmatpush1.msra.mxu0 0.0
    %2083 = vmatprep.subr.mxu0 0.0
    %2084 = vmatpush1.msra.mxu0 0.0
    %2085 = vmatprep.subr.mxu0 0.0
    %2086 = vmatpush1.msra.mxu0 0.0
    %2087 = vmatprep.subr.mxu0 0.0
    %2088 = vmatpush1.msra.mxu0 0.0
    %2089 = vmatprep.subr.mxu0 0.0
    %2090 = vmatpush1.msra.mxu0 0.0
    %2091 = vmatprep.subr.mxu0 0.0
    %2092 = vmatpush1.msra.mxu0 0.0
    %2093 = vmatprep.subr.mxu0 0.0
    %2094 = vmatpush1.msra.mxu0 0.0
    %2095 = vmatprep.subr.mxu0 0.0
    %2096 = vmatpush1.msra.mxu0 0.0
    %2097 = vmatprep.subr.mxu0 0.0
    %2098 = vmatpush1.msra.mxu0 0.0
    %2099 = vmatprep.subr.mxu0 0.0
    %2100 = vmatpush1.msra.mxu0 0.0
    %2101 = vmatprep.subr.mxu0 0.0
    %2102 = vmatpush1.msra.mxu0 0.0
    %2103 = vmatprep.subr.mxu0 0.0
    %2104 = vmatpush1.msra.mxu0 0.0
    %2105 = vmatprep.subr.mxu0 0.0
    %2106 = vmatpush1.msra.mxu0 0.0
    %2107 = vmatprep.subr.mxu0 0.0
    %2108 = vmatpush1.msra.mxu0 0.0
    %2109 = vmatprep.subr.mxu0 0.0
    %2110 = vmatpush1.msra.mxu0 0.0
    %2111 = vmatprep.subr.mxu0 0.0
    %2112 = vmatpush1.msra.mxu0 0.0
    %2113 = vmatprep.subr.mxu0 0.0
    %2114 = vmatpush1.msra.mxu0 0.0
    %2115 = vmatprep.subr.mxu0 0.0
    %2116 = vmatpush1.msra.mxu0 0.0
    %2117 = vmatprep.subr.mxu0 0.0
    %2118 = vmatpush1.msra.mxu0 0.0
    %2119 = vmatprep.subr.mxu0 0.0
    %2120 = vmatpush1.msra.mxu0 0.0
    %2121 = vmatprep.subr.mxu0 0.0
    %2122 = vmatpush1.msra.mxu0 0.0
    %2123 = vmatprep.subr.mxu0 0.0
    %2124 = vmatpush1.msra.mxu0 0.0
    %2125 = vmatprep.subr.mxu0 0.0
    %2126 = vmatpush1.msra.mxu0 0.0
    %2127 = vmatprep.mubr.f32.mxu0 0.0
    %2128 = vmatmul.mubr.f32.gmra.mrb[0].mxu0 %v2058
    %v2129 = vpop.f32.mrb[0].mxu0
    %v2130 = vadd.f32 %v2055, %v2129
    %v2131 = vpop.f32.mrb[0].mxu0
    %2132 = vdwg.mxu0
    %v2133 = vld [vmem:[#allocation11] sm:$0xff]
    %v2134 = vld [vmem:[#allocation11 + $0x8] sm:$0xff]
    %v2135 = vld [vmem:[#allocation11 + $0x10] sm:$0xff]
    %v2136 = vld [vmem:[#allocation11 + $0x18] sm:$0xff]
    %v2137 = vld [vmem:[%s12] sm:$0x1]
    %v2139 = vlaneseq
    %v2140 = vshrl.u32 %v2139, 7
    %v2141 = vsub.s32 0, %v2140
    %v2142 = vrot.slane %v2137, %v2141
    %v2145 = vsel %vm288, %v2130, 0
    %2147 = vmatprep.subr.mxu0 0.0
    %2148 = vmatpush1.msra.mxu0 %v2133
    %2149 = vmatprep.subr.mxu0 0.0
    %2150 = vmatpush1.msra.mxu0 %v2134
    %2151 = vmatprep.subr.mxu0 0.0
    %2152 = vmatpush1.msra.mxu0 %v2135
    %2153 = vmatprep.subr.mxu0 0.0
    %2154 = vmatpush1.msra.mxu0 %v2136
    %2155 = vmatprep.subr.mxu0 0.0
    %2156 = vmatpush1.msra.mxu0 0.0
    %2157 = vmatprep.subr.mxu0 0.0
    %2158 = vmatpush1.msra.mxu0 0.0
    %2159 = vmatprep.subr.mxu0 0.0
    %2160 = vmatpush1.msra.mxu0 0.0
    %2161 = vmatprep.subr.mxu0 0.0
    %2162 = vmatpush1.msra.mxu0 0.0
    %2163 = vmatprep.subr.mxu0 0.0
    %2164 = vmatpush1.msra.mxu0 0.0
    %2165 = vmatprep.subr.mxu0 0.0
    %2166 = vmatpush1.msra.mxu0 0.0
    %2167 = vmatprep.subr.mxu0 0.0
    %2168 = vmatpush1.msra.mxu0 0.0
    %2169 = vmatprep.subr.mxu0 0.0
    %2170 = vmatpush1.msra.mxu0 0.0
    %2171 = vmatprep.subr.mxu0 0.0
    %2172 = vmatpush1.msra.mxu0 0.0
    %2173 = vmatprep.subr.mxu0 0.0
    %2174 = vmatpush1.msra.mxu0 0.0
    %2175 = vmatprep.subr.mxu0 0.0
    %2176 = vmatpush1.msra.mxu0 0.0
    %2177 = vmatprep.subr.mxu0 0.0
    %2178 = vmatpush1.msra.mxu0 0.0
    %2179 = vmatprep.subr.mxu0 0.0
    %2180 = vmatpush1.msra.mxu0 0.0
    %2181 = vmatprep.subr.mxu0 0.0
    %2182 = vmatpush1.msra.mxu0 0.0
    %2183 = vmatprep.subr.mxu0 0.0
    %2184 = vmatpush1.msra.mxu0 0.0
    %2185 = vmatprep.subr.mxu0 0.0
    %2186 = vmatpush1.msra.mxu0 0.0
    %2187 = vmatprep.subr.mxu0 0.0
    %2188 = vmatpush1.msra.mxu0 0.0
    %2189 = vmatprep.subr.mxu0 0.0
    %2190 = vmatpush1.msra.mxu0 0.0
    %2191 = vmatprep.subr.mxu0 0.0
    %2192 = vmatpush1.msra.mxu0 0.0
    %2193 = vmatprep.subr.mxu0 0.0
    %2194 = vmatpush1.msra.mxu0 0.0
    %2195 = vmatprep.subr.mxu0 0.0
    %2196 = vmatpush1.msra.mxu0 0.0
    %2197 = vmatprep.subr.mxu0 0.0
    %2198 = vmatpush1.msra.mxu0 0.0
    %2199 = vmatprep.subr.mxu0 0.0
    %2200 = vmatpush1.msra.mxu0 0.0
    %2201 = vmatprep.subr.mxu0 0.0
    %2202 = vmatpush1.msra.mxu0 0.0
    %2203 = vmatprep.subr.mxu0 0.0
    %2204 = vmatpush1.msra.mxu0 0.0
    %2205 = vmatprep.subr.mxu0 0.0
    %2206 = vmatpush1.msra.mxu0 0.0
    %2207 = vmatprep.subr.mxu0 0.0
    %2208 = vmatpush1.msra.mxu0 0.0
    %2209 = vmatprep.subr.mxu0 0.0
    %2210 = vmatpush1.msra.mxu0 0.0
    %2211 = vmatprep.mubr.f32.mxu0 0.0
    %2212 = vmatmul.mubr.f32.gmra.mrb[0].mxu0 %v2145
    %v2213 = vpop.f32.mrb[0].mxu0
    %v2214 = vadd.f32 %v2142, %v2213
    %v2215 = vpop.f32.mrb[0].mxu0
    %2216 = vdwg.mxu0
    %v2217 = vxor.u32 %v2214, 2147483648
    %v2218 = vmul.f32 %v2217, 1.442695
    %v2219 = vpow.pop %v2218
    %v2220 = vadd.f32 %v2219, 1.0
    %v2221 = vrcp.pop %v2220
    %v2222 = vmul.f32 1.0, %v2221
    %v2223 = vmul.f32 %v2222, 2.0
    %v2224 = vsub.f32 %v2223, 1.0
    %v2225 = vmul.f32 %v2222, 0.0
    %2227 = vrot.lane.b32.xlu0 %v2224, 64
    %v2228 = vpop.permute.xlu0 %2227
    %v2230 = vmul.f32 %v2222, %v2228
    %2232 = vrot.lane.b32.xlu0 %v2230, 32
    %v2233 = vpop.permute.xlu0 %2232
    %v2235 = vadd.f32 %v2225, %v2233
    %v2236 = vtanh.pop %v2235
    %2238 = vrot.lane.b32.xlu0 %v2236, 64
    %v2239 = vpop.permute.xlu0 %2238
    %v2241 = vmul.f32 %v2222, %v2239
    %2243 = vrot.lane.b32.xlu0 %v2241, 32
    %v2244 = vpop.permute.xlu0 %2243
    %2246 = vrot.lane.b32.xlu0 %v2130, 32
    %v2247 = vpop.permute.xlu0 %2246
    %v2249 = vsel %vm288, %v2244, %v2247
    %v2250 = vld [vmem:[%s13] sm:$0xff]
    %v2251 = vld [vmem:[%s13 + $0x8] sm:$0xff]
    %v2252 = vld [vmem:[%s13 + $0x10] sm:$0xff]
    %v2253 = vld [vmem:[%s13 + $0x18] sm:$0xff]
    %v2254 = vld [vmem:[%s13 + $0x20] sm:$0xff]
    %v2255 = vld [vmem:[%s13 + $0x28] sm:$0xff]
    %v2256 = vld [vmem:[%s13 + $0x30] sm:$0xff]
    %v2257 = vld [vmem:[%s13 + $0x38] sm:$0xff]
    %v2258 = vld [vmem:[%s14] sm:$0x1]
    %v2260 = vlaneseq
    %v2261 = vshrl.u32 %v2260, 7
    %v2262 = vsub.s32 0, %v2261
    %v2263 = vrot.slane %v2258, %v2262
    %v2266 = vsel %vm408, %v2249, 0
    %2268 = vmatprep.subr.mxu0 0.0
    %2269 = vmatpush1.msra.mxu0 %v2250
    %2270 = vmatprep.subr.mxu0 0.0
    %2271 = vmatpush1.msra.mxu0 %v2251
    %2272 = vmatprep.subr.mxu0 0.0
    %2273 = vmatpush1.msra.mxu0 %v2252
    %2274 = vmatprep.subr.mxu0 0.0
    %2275 = vmatpush1.msra.mxu0 %v2253
    %2276 = vmatprep.subr.mxu0 0.0
    %2277 = vmatpush1.msra.mxu0 %v2254
    %2278 = vmatprep.subr.mxu0 0.0
    %2279 = vmatpush1.msra.mxu0 %v2255
    %2280 = vmatprep.subr.mxu0 0.0
    %2281 = vmatpush1.msra.mxu0 %v2256
    %2282 = vmatprep.subr.mxu0 0.0
    %2283 = vmatpush1.msra.mxu0 %v2257
    %2284 = vmatprep.subr.mxu0 0.0
    %2285 = vmatpush1.msra.mxu0 0.0
    %2286 = vmatprep.subr.mxu0 0.0
    %2287 = vmatpush1.msra.mxu0 0.0
    %2288 = vmatprep.subr.mxu0 0.0
    %2289 = vmatpush1.msra.mxu0 0.0
    %2290 = vmatprep.subr.mxu0 0.0
    %2291 = vmatpush1.msra.mxu0 0.0
    %2292 = vmatprep.subr.mxu0 0.0
    %2293 = vmatpush1.msra.mxu0 0.0
    %2294 = vmatprep.subr.mxu0 0.0
    %2295 = vmatpush1.msra.mxu0 0.0
    %2296 = vmatprep.subr.mxu0 0.0
    %2297 = vmatpush1.msra.mxu0 0.0
    %2298 = vmatprep.subr.mxu0 0.0
    %2299 = vmatpush1.msra.mxu0 0.0
    %2300 = vmatprep.subr.mxu0 0.0
    %2301 = vmatpush1.msra.mxu0 0.0
    %2302 = vmatprep.subr.mxu0 0.0
    %2303 = vmatpush1.msra.mxu0 0.0
    %2304 = vmatprep.subr.mxu0 0.0
    %2305 = vmatpush1.msra.mxu0 0.0
    %2306 = vmatprep.subr.mxu0 0.0
    %2307 = vmatpush1.msra.mxu0 0.0
    %2308 = vmatprep.subr.mxu0 0.0
    %2309 = vmatpush1.msra.mxu0 0.0
    %2310 = vmatprep.subr.mxu0 0.0
    %2311 = vmatpush1.msra.mxu0 0.0
    %2312 = vmatprep.subr.mxu0 0.0
    %2313 = vmatpush1.msra.mxu0 0.0
    %2314 = vmatprep.subr.mxu0 0.0
    %2315 = vmatpush1.msra.mxu0 0.0
    %2316 = vmatprep.subr.mxu0 0.0
    %2317 = vmatpush1.msra.mxu0 0.0
    %2318 = vmatprep.subr.mxu0 0.0
    %2319 = vmatpush1.msra.mxu0 0.0
    %2320 = vmatprep.subr.mxu0 0.0
    %2321 = vmatpush1.msra.mxu0 0.0
    %2322 = vmatprep.subr.mxu0 0.0
    %2323 = vmatpush1.msra.mxu0 0.0
    %2324 = vmatprep.subr.mxu0 0.0
    %2325 = vmatpush1.msra.mxu0 0.0
    %2326 = vmatprep.subr.mxu0 0.0
    %2327 = vmatpush1.msra.mxu0 0.0
    %2328 = vmatprep.subr.mxu0 0.0
    %2329 = vmatpush1.msra.mxu0 0.0
    %2330 = vmatprep.subr.mxu0 0.0
    %2331 = vmatpush1.msra.mxu0 0.0
    %2332 = vmatprep.mubr.f32.mxu0 0.0
    %2333 = vmatmul.mubr.f32.gmra.mrb[0].mxu0 %v2266
    %v2334 = vpop.f32.mrb[0].mxu0
    %v2335 = vadd.f32 %v2263, %v2334
    %v2336 = vpop.f32.mrb[0].mxu0
    %2337 = vdwg.mxu0
    %v2338 = vxor.u32 %v2335, 2147483648
    %v2339 = vmul.f32 %v2338, 1.442695
    %v2340 = vpow.pop %v2339
    %v2341 = vadd.f32 %v2340, 1.0
    %v2342 = vrcp.pop %v2341
    %v2343 = vmul.f32 1.0, %v2342
    %v2344 = vmul.f32 %v2343, 2.0
    %v2345 = vsub.f32 %v2344, 1.0
    %v2346 = vmul.f32 %v2343, 0.0
    %2348 = vrot.lane.b32.xlu0 %v2345, 64
    %v2349 = vpop.permute.xlu0 %2348
    %v2351 = vmul.f32 %v2343, %v2349
    %2353 = vrot.lane.b32.xlu0 %v2351, 32
    %v2354 = vpop.permute.xlu0 %2353
    %v2356 = vadd.f32 %v2346, %v2354
    %v2357 = vtanh.pop %v2356
    %2359 = vrot.lane.b32.xlu0 %v2357, 64
    %v2360 = vpop.permute.xlu0 %2359
    %v2362 = vmul.f32 %v2343, %v2360
    %2364 = vrot.lane.b32.xlu0 %v2362, 32
    %v2365 = vpop.permute.xlu0 %2364
    %2367 = vst.msk [vmem:[#allocation2] sm:$0xff] %vm288, %v2365
    %v2368 = vld [vmem:[#allocation11] sm:$0xff]
    %v2369 = vld [vmem:[#allocation11 + $0x8] sm:$0xff]
    %v2370 = vld [vmem:[#allocation11 + $0x10] sm:$0xff]
    %v2371 = vld [vmem:[#allocation11 + $0x18] sm:$0xff]
    %v2372 = vld [vmem:[%s12] sm:$0x1]
    %v2374 = vlaneseq
    %v2375 = vshrl.u32 %v2374, 7
    %v2376 = vsub.s32 0, %v2375
    %v2377 = vrot.slane %v2372, %v2376
    %v2379 = vsel %vm288, %v2244, 0
    %2381 = vmatprep.subr.mxu0 0.0
    %2382 = vmatpush1.msra.mxu0 %v2368
    %2383 = vmatprep.subr.mxu0 0.0
    %2384 = vmatpush1.msra.mxu0 %v2369
    %2385 = vmatprep.subr.mxu0 0.0
    %2386 = vmatpush1.msra.mxu0 %v2370
    %2387 = vmatprep.subr.mxu0 0.0
    %2388 = vmatpush1.msra.mxu0 %v2371
    %2389 = vmatprep.subr.mxu0 0.0
    %2390 = vmatpush1.msra.mxu0 0.0
    %2391 = vmatprep.subr.mxu0 0.0
    %2392 = vmatpush1.msra.mxu0 0.0
    %2393 = vmatprep.subr.mxu0 0.0
    %2394 = vmatpush1.msra.mxu0 0.0
    %2395 = vmatprep.subr.mxu0 0.0
    %2396 = vmatpush1.msra.mxu0 0.0
    %2397 = vmatprep.subr.mxu0 0.0
    %2398 = vmatpush1.msra.mxu0 0.0
    %2399 = vmatprep.subr.mxu0 0.0
    %2400 = vmatpush1.msra.mxu0 0.0
    %2401 = vmatprep.subr.mxu0 0.0
    %2402 = vmatpush1.msra.mxu0 0.0
    %2403 = vmatprep.subr.mxu0 0.0
    %2404 = vmatpush1.msra.mxu0 0.0
    %2405 = vmatprep.subr.mxu0 0.0
    %2406 = vmatpush1.msra.mxu0 0.0
    %2407 = vmatprep.subr.mxu0 0.0
    %2408 = vmatpush1.msra.mxu0 0.0
    %2409 = vmatprep.subr.mxu0 0.0
    %2410 = vmatpush1.msra.mxu0 0.0
    %2411 = vmatprep.subr.mxu0 0.0
    %2412 = vmatpush1.msra.mxu0 0.0
    %2413 = vmatprep.subr.mxu0 0.0
    %2414 = vmatpush1.msra.mxu0 0.0
    %2415 = vmatprep.subr.mxu0 0.0
    %2416 = vmatpush1.msra.mxu0 0.0
    %2417 = vmatprep.subr.mxu0 0.0
    %2418 = vmatpush1.msra.mxu0 0.0
    %2419 = vmatprep.subr.mxu0 0.0
    %2420 = vmatpush1.msra.mxu0 0.0
    %2421 = vmatprep.subr.mxu0 0.0
    %2422 = vmatpush1.msra.mxu0 0.0
    %2423 = vmatprep.subr.mxu0 0.0
    %2424 = vmatpush1.msra.mxu0 0.0
    %2425 = vmatprep.subr.mxu0 0.0
    %2426 = vmatpush1.msra.mxu0 0.0
    %2427 = vmatprep.subr.mxu0 0.0
    %2428 = vmatpush1.msra.mxu0 0.0
    %2429 = vmatprep.subr.mxu0 0.0
    %2430 = vmatpush1.msra.mxu0 0.0
    %2431 = vmatprep.subr.mxu0 0.0
    %2432 = vmatpush1.msra.mxu0 0.0
    %2433 = vmatprep.subr.mxu0 0.0
    %2434 = vmatpush1.msra.mxu0 0.0
    %2435 = vmatprep.subr.mxu0 0.0
    %2436 = vmatpush1.msra.mxu0 0.0
    %2437 = vmatprep.subr.mxu0 0.0
    %2438 = vmatpush1.msra.mxu0 0.0
    %2439 = vmatprep.subr.mxu0 0.0
    %2440 = vmatpush1.msra.mxu0 0.0
    %2441 = vmatprep.subr.mxu0 0.0
    %2442 = vmatpush1.msra.mxu0 0.0
    %2443 = vmatprep.subr.mxu0 0.0
    %2444 = vmatpush1.msra.mxu0 0.0
    %2445 = vmatprep.mubr.f32.mxu0 0.0
    %2446 = vmatmul.mubr.f32.gmra.mrb[0].mxu0 %v2379
    %v2447 = vpop.f32.mrb[0].mxu0
    %v2448 = vadd.f32 %v2377, %v2447
    %v2449 = vpop.f32.mrb[0].mxu0
    %2450 = vdwg.mxu0
    %v2451 = vxor.u32 %v2448, 2147483648
    %v2452 = vmul.f32 %v2451, 1.442695
    %v2453 = vpow.pop %v2452
    %v2454 = vadd.f32 %v2453, 1.0
    %v2455 = vrcp.pop %v2454
    %v2456 = vmul.f32 1.0, %v2455
    %v2457 = vmul.f32 %v2456, 2.0
    %v2458 = vsub.f32 %v2457, 1.0
    %v2459 = vmul.f32 %v2456, %v2235
    %2461 = vrot.lane.b32.xlu0 %v2458, 64
    %v2462 = vpop.permute.xlu0 %2461
    %v2464 = vmul.f32 %v2456, %v2462
    %2466 = vrot.lane.b32.xlu0 %v2464, 32
    %v2467 = vpop.permute.xlu0 %2466
    %v2469 = vadd.f32 %v2459, %v2467
    %v2470 = vtanh.pop %v2469
    %2472 = vrot.lane.b32.xlu0 %v2470, 64
    %v2473 = vpop.permute.xlu0 %2472
    %v2475 = vmul.f32 %v2456, %v2473
    %2477 = vrot.lane.b32.xlu0 %v2475, 32
    %v2478 = vpop.permute.xlu0 %2477
    %2480 = vrot.lane.b32.xlu0 %v2362, 64
    %v2481 = vpop.permute.xlu0 %2480
    %v2483 = vsel %vm288, %v2478, %v2481
    %v2484 = vld [vmem:[%s13] sm:$0xff]
    %v2485 = vld [vmem:[%s13 + $0x8] sm:$0xff]
    %v2486 = vld [vmem:[%s13 + $0x10] sm:$0xff]
    %v2487 = vld [vmem:[%s13 + $0x18] sm:$0xff]
    %v2488 = vld [vmem:[%s13 + $0x20] sm:$0xff]
    %v2489 = vld [vmem:[%s13 + $0x28] sm:$0xff]
    %v2490 = vld [vmem:[%s13 + $0x30] sm:$0xff]
    %v2491 = vld [vmem:[%s13 + $0x38] sm:$0xff]
    %v2492 = vld [vmem:[%s14] sm:$0x1]
    %v2494 = vlaneseq
    %v2495 = vshrl.u32 %v2494, 7
    %v2496 = vsub.s32 0, %v2495
    %v2497 = vrot.slane %v2492, %v2496
    %v2500 = vsel %vm408, %v2483, 0
    %2502 = vmatprep.subr.mxu0 0.0
    %2503 = vmatpush1.msra.mxu0 %v2484
    %2504 = vmatprep.subr.mxu0 0.0
    %2505 = vmatpush1.msra.mxu0 %v2485
    %2506 = vmatprep.subr.mxu0 0.0
    %2507 = vmatpush1.msra.mxu0 %v2486
    %2508 = vmatprep.subr.mxu0 0.0
    %2509 = vmatpush1.msra.mxu0 %v2487
    %2510 = vmatprep.subr.mxu0 0.0
    %2511 = vmatpush1.msra.mxu0 %v2488
    %2512 = vmatprep.subr.mxu0 0.0
    %2513 = vmatpush1.msra.mxu0 %v2489
    %2514 = vmatprep.subr.mxu0 0.0
    %2515 = vmatpush1.msra.mxu0 %v2490
    %2516 = vmatprep.subr.mxu0 0.0
    %2517 = vmatpush1.msra.mxu0 %v2491
    %2518 = vmatprep.subr.mxu0 0.0
    %2519 = vmatpush1.msra.mxu0 0.0
    %2520 = vmatprep.subr.mxu0 0.0
    %2521 = vmatpush1.msra.mxu0 0.0
    %2522 = vmatprep.subr.mxu0 0.0
    %2523 = vmatpush1.msra.mxu0 0.0
    %2524 = vmatprep.subr.mxu0 0.0
    %2525 = vmatpush1.msra.mxu0 0.0
    %2526 = vmatprep.subr.mxu0 0.0
    %2527 = vmatpush1.msra.mxu0 0.0
    %2528 = vmatprep.subr.mxu0 0.0
    %2529 = vmatpush1.msra.mxu0 0.0
    %2530 = vmatprep.subr.mxu0 0.0
    %2531 = vmatpush1.msra.mxu0 0.0
    %2532 = vmatprep.subr.mxu0 0.0
    %2533 = vmatpush1.msra.mxu0 0.0
    %2534 = vmatprep.subr.mxu0 0.0
    %2535 = vmatpush1.msra.mxu0 0.0
    %2536 = vmatprep.subr.mxu0 0.0
    %2537 = vmatpush1.msra.mxu0 0.0
    %2538 = vmatprep.subr.mxu0 0.0
    %2539 = vmatpush1.msra.mxu0 0.0
    %2540 = vmatprep.subr.mxu0 0.0
    %2541 = vmatpush1.msra.mxu0 0.0
    %2542 = vmatprep.subr.mxu0 0.0
    %2543 = vmatpush1.msra.mxu0 0.0
    %2544 = vmatprep.subr.mxu0 0.0
    %2545 = vmatpush1.msra.mxu0 0.0
    %2546 = vmatprep.subr.mxu0 0.0
    %2547 = vmatpush1.msra.mxu0 0.0
    %2548 = vmatprep.subr.mxu0 0.0
    %2549 = vmatpush1.msra.mxu0 0.0
    %2550 = vmatprep.subr.mxu0 0.0
    %2551 = vmatpush1.msra.mxu0 0.0
    %2552 = vmatprep.subr.mxu0 0.0
    %2553 = vmatpush1.msra.mxu0 0.0
    %2554 = vmatprep.subr.mxu0 0.0
    %2555 = vmatpush1.msra.mxu0 0.0
    %2556 = vmatprep.subr.mxu0 0.0
    %2557 = vmatpush1.msra.mxu0 0.0
    %2558 = vmatprep.subr.mxu0 0.0
    %2559 = vmatpush1.msra.mxu0 0.0
    %2560 = vmatprep.subr.mxu0 0.0
    %2561 = vmatpush1.msra.mxu0 0.0
    %2562 = vmatprep.subr.mxu0 0.0
    %2563 = vmatpush1.msra.mxu0 0.0
    %2564 = vmatprep.subr.mxu0 0.0
    %2565 = vmatpush1.msra.mxu0 0.0
    %2566 = vmatprep.mubr.f32.mxu0 0.0
    %2567 = vmatmul.mubr.f32.gmra.mrb[0].mxu0 %v2500
    %v2568 = vpop.f32.mrb[0].mxu0
    %v2569 = vadd.f32 %v2497, %v2568
    %v2570 = vpop.f32.mrb[0].mxu0
    %2571 = vdwg.mxu0
    %v2572 = vxor.u32 %v2569, 2147483648
    %v2573 = vmul.f32 %v2572, 1.442695
    %v2574 = vpow.pop %v2573
    %v2575 = vadd.f32 %v2574, 1.0
    %v2576 = vrcp.pop %v2575
    %v2577 = vmul.f32 1.0, %v2576
    %v2578 = vmul.f32 %v2577, 2.0
    %v2579 = vsub.f32 %v2578, 1.0
    %v2580 = vmul.f32 %v2577, %v2356
    %2582 = vrot.lane.b32.xlu0 %v2579, 64
    %v2583 = vpop.permute.xlu0 %2582
    %v2585 = vmul.f32 %v2577, %v2583
    %2587 = vrot.lane.b32.xlu0 %v2585, 32
    %v2588 = vpop.permute.xlu0 %2587
    %v2590 = vadd.f32 %v2580, %v2588
    %v2591 = vtanh.pop %v2590
    %2593 = vrot.lane.b32.xlu0 %v2591, 64
    %v2594 = vpop.permute.xlu0 %2593
    %v2596 = vmul.f32 %v2577, %v2594
    %2598 = vrot.lane.b32.xlu0 %v2596, 32
    %v2599 = vpop.permute.xlu0 %2598
    %2601 = vst.msk [vmem:[#allocation2 + $0x8] sm:$0xff] %vm288, %v2599
    %v2602 = vld [vmem:[#allocation11] sm:$0xff]
    %v2603 = vld [vmem:[#allocation11 + $0x8] sm:$0xff]
    %v2604 = vld [vmem:[#allocation11 + $0x10] sm:$0xff]
    %v2605 = vld [vmem:[#allocation11 + $0x18] sm:$0xff]
    %v2606 = vld [vmem:[%s12] sm:$0x1]
    %v2608 = vlaneseq
    %v2609 = vshrl.u32 %v2608, 7
    %v2610 = vsub.s32 0, %v2609
    %v2611 = vrot.slane %v2606, %v2610
    %v2613 = vsel %vm288, %v2478, 0
    %2615 = vmatprep.subr.mxu0 0.0
    %2616 = vmatpush1.msra.mxu0 %v2602
    %2617 = vmatprep.subr.mxu0 0.0
    %2618 = vmatpush1.msra.mxu0 %v2603
    %2619 = vmatprep.subr.mxu0 0.0
    %2620 = vmatpush1.msra.mxu0 %v2604
    %2621 = vmatprep.subr.mxu0 0.0
    %2622 = vmatpush1.msra.mxu0 %v2605
    %2623 = vmatprep.subr.mxu0 0.0
    %2624 = vmatpush1.msra.mxu0 0.0
    %2625 = vmatprep.subr.mxu0 0.0
    %2626 = vmatpush1.msra.mxu0 0.0
    %2627 = vmatprep.subr.mxu0 0.0
    %2628 = vmatpush1.msra.mxu0 0.0
    %2629 = vmatprep.subr.mxu0 0.0
    %2630 = vmatpush1.msra.mxu0 0.0
    %2631 = vmatprep.subr.mxu0 0.0
    %2632 = vmatpush1.msra.mxu0 0.0
    %2633 = vmatprep.subr.mxu0 0.0
    %2634 = vmatpush1.msra.mxu0 0.0
    %2635 = vmatprep.subr.mxu0 0.0
    %2636 = vmatpush1.msra.mxu0 0.0
    %2637 = vmatprep.subr.mxu0 0.0
    %2638 = vmatpush1.msra.mxu0 0.0
    %2639 = vmatprep.subr.mxu0 0.0
    %2640 = vmatpush1.msra.mxu0 0.0
    %2641 = vmatprep.subr.mxu0 0.0
    %2642 = vmatpush1.msra.mxu0 0.0
    %2643 = vmatprep.subr.mxu0 0.0
    %2644 = vmatpush1.msra.mxu0 0.0
    %2645 = vmatprep.subr.mxu0 0.0
    %2646 = vmatpush1.msra.mxu0 0.0
    %2647 = vmatprep.subr.mxu0 0.0
    %2648 = vmatpush1.msra.mxu0 0.0
    %2649 = vmatprep.subr.mxu0 0.0
    %2650 = vmatpush1.msra.mxu0 0.0
    %2651 = vmatprep.subr.mxu0 0.0
    %2652 = vmatpush1.msra.mxu0 0.0
    %2653 = vmatprep.subr.mxu0 0.0
    %2654 = vmatpush1.msra.mxu0 0.0
    %2655 = vmatprep.subr.mxu0 0.0
    %2656 = vmatpush1.msra.mxu0 0.0
    %2657 = vmatprep.subr.mxu0 0.0
    %2658 = vmatpush1.msra.mxu0 0.0
    %2659 = vmatprep.subr.mxu0 0.0
    %2660 = vmatpush1.msra.mxu0 0.0
    %2661 = vmatprep.subr.mxu0 0.0
    %2662 = vmatpush1.msra.mxu0 0.0
    %2663 = vmatprep.subr.mxu0 0.0
    %2664 = vmatpush1.msra.mxu0 0.0
    %2665 = vmatprep.subr.mxu0 0.0
    %2666 = vmatpush1.msra.mxu0 0.0
    %2667 = vmatprep.subr.mxu0 0.0
    %2668 = vmatpush1.msra.mxu0 0.0
    %2669 = vmatprep.subr.mxu0 0.0
    %2670 = vmatpush1.msra.mxu0 0.0
    %2671 = vmatprep.subr.mxu0 0.0
    %2672 = vmatpush1.msra.mxu0 0.0
    %2673 = vmatprep.subr.mxu0 0.0
    %2674 = vmatpush1.msra.mxu0 0.0
    %2675 = vmatprep.subr.mxu0 0.0
    %2676 = vmatpush1.msra.mxu0 0.0
    %2677 = vmatprep.subr.mxu0 0.0
    %2678 = vmatpush1.msra.mxu0 0.0
    %2679 = vmatprep.mubr.f32.mxu0 0.0
    %2680 = vmatmul.mubr.f32.gmra.mrb[0].mxu0 %v2613
    %v2681 = vpop.f32.mrb[0].mxu0
    %v2682 = vadd.f32 %v2611, %v2681
    %v2683 = vpop.f32.mrb[0].mxu0
    %2684 = vdwg.mxu0
    %v2685 = vxor.u32 %v2682, 2147483648
    %v2686 = vmul.f32 %v2685, 1.442695
    %v2687 = vpow.pop %v2686
    %v2688 = vadd.f32 %v2687, 1.0
    %v2689 = vrcp.pop %v2688
    %v2690 = vmul.f32 1.0, %v2689
    %v2691 = vmul.f32 %v2690, 2.0
    %v2692 = vsub.f32 %v2691, 1.0
    %v2693 = vmul.f32 %v2690, %v2469
    %2695 = vrot.lane.b32.xlu0 %v2692, 64
    %v2696 = vpop.permute.xlu0 %2695
    %v2698 = vmul.f32 %v2690, %v2696
    %2700 = vrot.lane.b32.xlu0 %v2698, 32
    %v2701 = vpop.permute.xlu0 %2700
    %v2703 = vadd.f32 %v2693, %v2701
    %v2704 = vtanh.pop %v2703
    %2706 = vrot.lane.b32.xlu0 %v2704, 64
    %v2707 = vpop.permute.xlu0 %2706
    %v2709 = vmul.f32 %v2690, %v2707
    %2711 = vrot.lane.b32.xlu0 %v2709, 32
    %v2712 = vpop.permute.xlu0 %2711
    %2714 = vrot.lane.b32.xlu0 %v2596, 64
    %v2715 = vpop.permute.xlu0 %2714
    %v2717 = vsel %vm288, %v2712, %v2715
    %v2718 = vld [vmem:[%s13] sm:$0xff]
    %v2719 = vld [vmem:[%s13 + $0x8] sm:$0xff]
    %v2720 = vld [vmem:[%s13 + $0x10] sm:$0xff]
    %v2721 = vld [vmem:[%s13 + $0x18] sm:$0xff]
    %v2722 = vld [vmem:[%s13 + $0x20] sm:$0xff]
    %v2723 = vld [vmem:[%s13 + $0x28] sm:$0xff]
    %v2724 = vld [vmem:[%s13 + $0x30] sm:$0xff]
    %v2725 = vld [vmem:[%s13 + $0x38] sm:$0xff]
    %v2726 = vld [vmem:[%s14] sm:$0x1]
    %v2728 = vlaneseq
    %v2729 = vshrl.u32 %v2728, 7
    %v2730 = vsub.s32 0, %v2729
    %v2731 = vrot.slane %v2726, %v2730
    %v2734 = vsel %vm408, %v2717, 0
    %2736 = vmatprep.subr.mxu0 0.0
    %2737 = vmatpush1.msra.mxu0 %v2718
    %2738 = vmatprep.subr.mxu0 0.0
    %2739 = vmatpush1.msra.mxu0 %v2719
    %2740 = vmatprep.subr.mxu0 0.0
    %2741 = vmatpush1.msra.mxu0 %v2720
    %2742 = vmatprep.subr.mxu0 0.0
    %2743 = vmatpush1.msra.mxu0 %v2721
    %2744 = vmatprep.subr.mxu0 0.0
    %2745 = vmatpush1.msra.mxu0 %v2722
    %2746 = vmatprep.subr.mxu0 0.0
    %2747 = vmatpush1.msra.mxu0 %v2723
    %2748 = vmatprep.subr.mxu0 0.0
    %2749 = vmatpush1.msra.mxu0 %v2724
    %2750 = vmatprep.subr.mxu0 0.0
    %2751 = vmatpush1.msra.mxu0 %v2725
    %2752 = vmatprep.subr.mxu0 0.0
    %2753 = vmatpush1.msra.mxu0 0.0
    %2754 = vmatprep.subr.mxu0 0.0
    %2755 = vmatpush1.msra.mxu0 0.0
    %2756 = vmatprep.subr.mxu0 0.0
    %2757 = vmatpush1.msra.mxu0 0.0
    %2758 = vmatprep.subr.mxu0 0.0
    %2759 = vmatpush1.msra.mxu0 0.0
    %2760 = vmatprep.subr.mxu0 0.0
    %2761 = vmatpush1.msra.mxu0 0.0
    %2762 = vmatprep.subr.mxu0 0.0
    %2763 = vmatpush1.msra.mxu0 0.0
    %2764 = vmatprep.subr.mxu0 0.0
    %2765 = vmatpush1.msra.mxu0 0.0
    %2766 = vmatprep.subr.mxu0 0.0
    %2767 = vmatpush1.msra.mxu0 0.0
    %2768 = vmatprep.subr.mxu0 0.0
    %2769 = vmatpush1.msra.mxu0 0.0
    %2770 = vmatprep.subr.mxu0 0.0
    %2771 = vmatpush1.msra.mxu0 0.0
    %2772 = vmatprep.subr.mxu0 0.0
    %2773 = vmatpush1.msra.mxu0 0.0
    %2774 = vmatprep.subr.mxu0 0.0
    %2775 = vmatpush1.msra.mxu0 0.0
    %2776 = vmatprep.subr.mxu0 0.0
    %2777 = vmatpush1.msra.mxu0 0.0
    %2778 = vmatprep.subr.mxu0 0.0
    %2779 = vmatpush1.msra.mxu0 0.0
    %2780 = vmatprep.subr.mxu0 0.0
    %2781 = vmatpush1.msra.mxu0 0.0
    %2782 = vmatprep.subr.mxu0 0.0
    %2783 = vmatpush1.msra.mxu0 0.0
    %2784 = vmatprep.subr.mxu0 0.0
    %2785 = vmatpush1.msra.mxu0 0.0
    %2786 = vmatprep.subr.mxu0 0.0
    %2787 = vmatpush1.msra.mxu0 0.0
    %2788 = vmatprep.subr.mxu0 0.0
    %2789 = vmatpush1.msra.mxu0 0.0
    %2790 = vmatprep.subr.mxu0 0.0
    %2791 = vmatpush1.msra.mxu0 0.0
    %2792 = vmatprep.subr.mxu0 0.0
    %2793 = vmatpush1.msra.mxu0 0.0
    %2794 = vmatprep.subr.mxu0 0.0
    %2795 = vmatpush1.msra.mxu0 0.0
    %2796 = vmatprep.subr.mxu0 0.0
    %2797 = vmatpush1.msra.mxu0 0.0
    %2798 = vmatprep.subr.mxu0 0.0
    %2799 = vmatpush1.msra.mxu0 0.0
    %2800 = vmatprep.mubr.f32.mxu0 0.0
    %2801 = vmatmul.mubr.f32.gmra.mrb[0].mxu0 %v2734
    %v2802 = vpop.f32.mrb[0].mxu0
    %v2803 = vadd.f32 %v2731, %v2802
    %v2804 = vpop.f32.mrb[0].mxu0
    %2805 = vdwg.mxu0
    %v2806 = vxor.u32 %v2803, 2147483648
    %v2807 = vmul.f32 %v2806, 1.442695
    %v2808 = vpow.pop %v2807
    %v2809 = vadd.f32 %v2808, 1.0
    %v2810 = vrcp.pop %v2809
    %v2811 = vmul.f32 1.0, %v2810
    %v2812 = vmul.f32 %v2811, 2.0
    %v2813 = vsub.f32 %v2812, 1.0
    %v2814 = vmul.f32 %v2811, %v2590
    %2816 = vrot.lane.b32.xlu0 %v2813, 64
    %v2817 = vpop.permute.xlu0 %2816
    %v2819 = vmul.f32 %v2811, %v2817
    %2821 = vrot.lane.b32.xlu0 %v2819, 32
    %v2822 = vpop.permute.xlu0 %2821
    %v2824 = vadd.f32 %v2814, %v2822
    %v2825 = vtanh.pop %v2824
    %2827 = vrot.lane.b32.xlu0 %v2825, 64
    %v2828 = vpop.permute.xlu0 %2827
    %v2830 = vmul.f32 %v2811, %v2828
    %2832 = vrot.lane.b32.xlu0 %v2830, 32
    %v2833 = vpop.permute.xlu0 %2832
    %2835 = vst.msk [vmem:[#allocation2 + $0x10] sm:$0xff] %vm288, %v2833
    %v2836 = vld [vmem:[#allocation11] sm:$0xff]
    %v2837 = vld [vmem:[#allocation11 + $0x8] sm:$0xff]
    %v2838 = vld [vmem:[#allocation11 + $0x10] sm:$0xff]
    %v2839 = vld [vmem:[#allocation11 + $0x18] sm:$0xff]
    %v2840 = vld [vmem:[%s12] sm:$0x1]
    %v2842 = vlaneseq
    %v2843 = vshrl.u32 %v2842, 7
    %v2844 = vsub.s32 0, %v2843
    %v2845 = vrot.slane %v2840, %v2844
    %v2847 = vsel %vm288, %v2712, 0
    %2849 = vmatprep.subr.mxu0 0.0
    %2850 = vmatpush1.msra.mxu0 %v2836
    %2851 = vmatprep.subr.mxu0 0.0
    %2852 = vmatpush1.msra.mxu0 %v2837
    %2853 = vmatprep.subr.mxu0 0.0
    %2854 = vmatpush1.msra.mxu0 %v2838
    %2855 = vmatprep.subr.mxu0 0.0
    %2856 = vmatpush1.msra.mxu0 %v2839
    %2857 = vmatprep.subr.mxu0 0.0
    %2858 = vmatpush1.msra.mxu0 0.0
    %2859 = vmatprep.subr.mxu0 0.0
    %2860 = vmatpush1.msra.mxu0 0.0
    %2861 = vmatprep.subr.mxu0 0.0
    %2862 = vmatpush1.msra.mxu0 0.0
    %2863 = vmatprep.subr.mxu0 0.0
    %2864 = vmatpush1.msra.mxu0 0.0
    %2865 = vmatprep.subr.mxu0 0.0
    %2866 = vmatpush1.msra.mxu0 0.0
    %2867 = vmatprep.subr.mxu0 0.0
    %2868 = vmatpush1.msra.mxu0 0.0
    %2869 = vmatprep.subr.mxu0 0.0
    %2870 = vmatpush1.msra.mxu0 0.0
    %2871 = vmatprep.subr.mxu0 0.0
    %2872 = vmatpush1.msra.mxu0 0.0
    %2873 = vmatprep.subr.mxu0 0.0
    %2874 = vmatpush1.msra.mxu0 0.0
    %2875 = vmatprep.subr.mxu0 0.0
    %2876 = vmatpush1.msra.mxu0 0.0
    %2877 = vmatprep.subr.mxu0 0.0
    %2878 = vmatpush1.msra.mxu0 0.0
    %2879 = vmatprep.subr.mxu0 0.0
    %2880 = vmatpush1.msra.mxu0 0.0
    %2881 = vmatprep.subr.mxu0 0.0
    %2882 = vmatpush1.msra.mxu0 0.0
    %2883 = vmatprep.subr.mxu0 0.0
    %2884 = vmatpush1.msra.mxu0 0.0
    %2885 = vmatprep.subr.mxu0 0.0
    %2886 = vmatpush1.msra.mxu0 0.0
    %2887 = vmatprep.subr.mxu0 0.0
    %2888 = vmatpush1.msra.mxu0 0.0
    %2889 = vmatprep.subr.mxu0 0.0
    %2890 = vmatpush1.msra.mxu0 0.0
    %2891 = vmatprep.subr.mxu0 0.0
    %2892 = vmatpush1.msra.mxu0 0.0
    %2893 = vmatprep.subr.mxu0 0.0
    %2894 = vmatpush1.msra.mxu0 0.0
    %2895 = vmatprep.subr.mxu0 0.0
    %2896 = vmatpush1.msra.mxu0 0.0
    %2897 = vmatprep.subr.mxu0 0.0
    %2898 = vmatpush1.msra.mxu0 0.0
    %2899 = vmatprep.subr.mxu0 0.0
    %2900 = vmatpush1.msra.mxu0 0.0
    %2901 = vmatprep.subr.mxu0 0.0
    %2902 = vmatpush1.msra.mxu0 0.0
    %2903 = vmatprep.subr.mxu0 0.0
    %2904 = vmatpush1.msra.mxu0 0.0
    %2905 = vmatprep.subr.mxu0 0.0
    %2906 = vmatpush1.msra.mxu0 0.0
    %2907 = vmatprep.subr.mxu0 0.0
    %2908 = vmatpush1.msra.mxu0 0.0
    %2909 = vmatprep.subr.mxu0 0.0
    %2910 = vmatpush1.msra.mxu0 0.0
    %2911 = vmatprep.subr.mxu0 0.0
    %2912 = vmatpush1.msra.mxu0 0.0
    %2913 = vmatprep.mubr.f32.mxu0 0.0
    %2914 = vmatmul.mubr.f32.gmra.mrb[0].mxu0 %v2847
    %v2915 = vpop.f32.mrb[0].mxu0
    %v2916 = vadd.f32 %v2845, %v2915
    %v2917 = vpop.f32.mrb[0].mxu0
    %2918 = vdwg.mxu0
    %v2919 = vxor.u32 %v2916, 2147483648
    %v2920 = vmul.f32 %v2919, 1.442695
    %v2921 = vpow.pop %v2920
    %v2922 = vadd.f32 %v2921, 1.0
    %v2923 = vrcp.pop %v2922
    %v2924 = vmul.f32 1.0, %v2923
    %v2925 = vmul.f32 %v2924, 2.0
    %v2926 = vsub.f32 %v2925, 1.0
    %v2927 = vmul.f32 %v2924, %v2703
    %2929 = vrot.lane.b32.xlu0 %v2926, 64
    %v2930 = vpop.permute.xlu0 %2929
    %v2932 = vmul.f32 %v2924, %v2930
    %2934 = vrot.lane.b32.xlu0 %v2932, 32
    %v2935 = vpop.permute.xlu0 %2934
    %v2937 = vadd.f32 %v2927, %v2935
    %v2938 = vtanh.pop %v2937
    %2940 = vrot.lane.b32.xlu0 %v2938, 64
    %v2941 = vpop.permute.xlu0 %2940
    %v2943 = vmul.f32 %v2924, %v2941
    %2945 = vrot.lane.b32.xlu0 %v2943, 32
    %v2946 = vpop.permute.xlu0 %2945
    %2948 = vrot.lane.b32.xlu0 %v2830, 64
    %v2949 = vpop.permute.xlu0 %2948
    %v2951 = vsel %vm288, %v2946, %v2949
    %v2952 = vld [vmem:[%s13] sm:$0xff]
    %v2953 = vld [vmem:[%s13 + $0x8] sm:$0xff]
    %v2954 = vld [vmem:[%s13 + $0x10] sm:$0xff]
    %v2955 = vld [vmem:[%s13 + $0x18] sm:$0xff]
    %v2956 = vld [vmem:[%s13 + $0x20] sm:$0xff]
    %v2957 = vld [vmem:[%s13 + $0x28] sm:$0xff]
    %v2958 = vld [vmem:[%s13 + $0x30] sm:$0xff]
    %v2959 = vld [vmem:[%s13 + $0x38] sm:$0xff]
    %v2960 = vld [vmem:[%s14] sm:$0x1]
    %v2962 = vlaneseq
    %v2963 = vshrl.u32 %v2962, 7
    %v2964 = vsub.s32 0, %v2963
    %v2965 = vrot.slane %v2960, %v2964
    %v2968 = vsel %vm408, %v2951, 0
    %2970 = vmatprep.subr.mxu0 0.0
    %2971 = vmatpush1.msra.mxu0 %v2952
    %2972 = vmatprep.subr.mxu0 0.0
    %2973 = vmatpush1.msra.mxu0 %v2953
    %2974 = vmatprep.subr.mxu0 0.0
    %2975 = vmatpush1.msra.mxu0 %v2954
    %2976 = vmatprep.subr.mxu0 0.0
    %2977 = vmatpush1.msra.mxu0 %v2955
    %2978 = vmatprep.subr.mxu0 0.0
    %2979 = vmatpush1.msra.mxu0 %v2956
    %2980 = vmatprep.subr.mxu0 0.0
    %2981 = vmatpush1.msra.mxu0 %v2957
    %2982 = vmatprep.subr.mxu0 0.0
    %2983 = vmatpush1.msra.mxu0 %v2958
    %2984 = vmatprep.subr.mxu0 0.0
    %2985 = vmatpush1.msra.mxu0 %v2959
    %2986 = vmatprep.subr.mxu0 0.0
    %2987 = vmatpush1.msra.mxu0 0.0
    %2988 = vmatprep.subr.mxu0 0.0
    %2989 = vmatpush1.msra.mxu0 0.0
    %2990 = vmatprep.subr.mxu0 0.0
    %2991 = vmatpush1.msra.mxu0 0.0
    %2992 = vmatprep.subr.mxu0 0.0
    %2993 = vmatpush1.msra.mxu0 0.0
    %2994 = vmatprep.subr.mxu0 0.0
    %2995 = vmatpush1.msra.mxu0 0.0
    %2996 = vmatprep.subr.mxu0 0.0
    %2997 = vmatpush1.msra.mxu0 0.0
    %2998 = vmatprep.subr.mxu0 0.0
    %2999 = vmatpush1.msra.mxu0 0.0
    %3000 = vmatprep.subr.mxu0 0.0
    %3001 = vmatpush1.msra.mxu0 0.0
    %3002 = vmatprep.subr.mxu0 0.0
    %3003 = vmatpush1.msra.mxu0 0.0
    %3004 = vmatprep.subr.mxu0 0.0
    %3005 = vmatpush1.msra.mxu0 0.0
    %3006 = vmatprep.subr.mxu0 0.0
    %3007 = vmatpush1.msra.mxu0 0.0
    %3008 = vmatprep.subr.mxu0 0.0
    %3009 = vmatpush1.msra.mxu0 0.0
    %3010 = vmatprep.subr.mxu0 0.0
    %3011 = vmatpush1.msra.mxu0 0.0
    %3012 = vmatprep.subr.mxu0 0.0
    %3013 = vmatpush1.msra.mxu0 0.0
    %3014 = vmatprep.subr.mxu0 0.0
    %3015 = vmatpush1.msra.mxu0 0.0
    %3016 = vmatprep.subr.mxu0 0.0
    %3017 = vmatpush1.msra.mxu0 0.0
    %3018 = vmatprep.subr.mxu0 0.0
    %3019 = vmatpush1.msra.mxu0 0.0
    %3020 = vmatprep.subr.mxu0 0.0
    %3021 = vmatpush1.msra.mxu0 0.0
    %3022 = vmatprep.subr.mxu0 0.0
    %3023 = vmatpush1.msra.mxu0 0.0
    %3024 = vmatprep.subr.mxu0 0.0
    %3025 = vmatpush1.msra.mxu0 0.0
    %3026 = vmatprep.subr.mxu0 0.0
    %3027 = vmatpush1.msra.mxu0 0.0
    %3028 = vmatprep.subr.mxu0 0.0
    %3029 = vmatpush1.msra.mxu0 0.0
    %3030 = vmatprep.subr.mxu0 0.0
    %3031 = vmatpush1.msra.mxu0 0.0
    %3032 = vmatprep.subr.mxu0 0.0
    %3033 = vmatpush1.msra.mxu0 0.0
    %3034 = vmatprep.mubr.f32.mxu0 0.0
    %3035 = vmatmul.mubr.f32.gmra.mrb[0].mxu0 %v2968
    %v3036 = vpop.f32.mrb[0].mxu0
    %v3037 = vadd.f32 %v2965, %v3036
    %v3038 = vpop.f32.mrb[0].mxu0
    %3039 = vdwg.mxu0
    %v3040 = vxor.u32 %v3037, 2147483648
    %v3041 = vmul.f32 %v3040, 1.442695
    %v3042 = vpow.pop %v3041
    %v3043 = vadd.f32 %v3042, 1.0
    %v3044 = vrcp.pop %v3043
    %v3045 = vmul.f32 1.0, %v3044
    %v3046 = vmul.f32 %v3045, 2.0
    %v3047 = vsub.f32 %v3046, 1.0
    %v3048 = vmul.f32 %v3045, %v2824
    %3050 = vrot.lane.b32.xlu0 %v3047, 64
    %v3051 = vpop.permute.xlu0 %3050
    %v3053 = vmul.f32 %v3045, %v3051
    %3055 = vrot.lane.b32.xlu0 %v3053, 32
    %v3056 = vpop.permute.xlu0 %3055
    %v3058 = vadd.f32 %v3048, %v3056
    %v3059 = vtanh.pop %v3058
    %3061 = vrot.lane.b32.xlu0 %v3059, 64
    %v3062 = vpop.permute.xlu0 %3061
    %v3064 = vmul.f32 %v3045, %v3062
    %3066 = vrot.lane.b32.xlu0 %v3064, 32
    %v3067 = vpop.permute.xlu0 %3066
    %3069 = vst.msk [vmem:[#allocation2 + $0x18] sm:$0xff] %vm288, %v3067
    %v3070 = vld [vmem:[#allocation11] sm:$0xff]
    %v3071 = vld [vmem:[#allocation11 + $0x8] sm:$0xff]
    %v3072 = vld [vmem:[#allocation11 + $0x10] sm:$0xff]
    %v3073 = vld [vmem:[#allocation11 + $0x18] sm:$0xff]
    %v3074 = vld [vmem:[%s12] sm:$0x1]
    %v3076 = vlaneseq
    %v3077 = vshrl.u32 %v3076, 7
    %v3078 = vsub.s32 0, %v3077
    %v3079 = vrot.slane %v3074, %v3078
    %v3081 = vsel %vm288, %v2946, 0
    %3083 = vmatprep.subr.mxu0 0.0
    %3084 = vmatpush1.msra.mxu0 %v3070
    %3085 = vmatprep.subr.mxu0 0.0
    %3086 = vmatpush1.msra.mxu0 %v3071
    %3087 = vmatprep.subr.mxu0 0.0
    %3088 = vmatpush1.msra.mxu0 %v3072
    %3089 = vmatprep.subr.mxu0 0.0
    %3090 = vmatpush1.msra.mxu0 %v3073
    %3091 = vmatprep.subr.mxu0 0.0
    %3092 = vmatpush1.msra.mxu0 0.0
    %3093 = vmatprep.subr.mxu0 0.0
    %3094 = vmatpush1.msra.mxu0 0.0
    %3095 = vmatprep.subr.mxu0 0.0
    %3096 = vmatpush1.msra.mxu0 0.0
    %3097 = vmatprep.subr.mxu0 0.0
    %3098 = vmatpush1.msra.mxu0 0.0
    %3099 = vmatprep.subr.mxu0 0.0
    %3100 = vmatpush1.msra.mxu0 0.0
    %3101 = vmatprep.subr.mxu0 0.0
    %3102 = vmatpush1.msra.mxu0 0.0
    %3103 = vmatprep.subr.mxu0 0.0
    %3104 = vmatpush1.msra.mxu0 0.0
    %3105 = vmatprep.subr.mxu0 0.0
    %3106 = vmatpush1.msra.mxu0 0.0
    %3107 = vmatprep.subr.mxu0 0.0
    %3108 = vmatpush1.msra.mxu0 0.0
    %3109 = vmatprep.subr.mxu0 0.0
    %3110 = vmatpush1.msra.mxu0 0.0
    %3111 = vmatprep.subr.mxu0 0.0
    %3112 = vmatpush1.msra.mxu0 0.0
    %3113 = vmatprep.subr.mxu0 0.0
    %3114 = vmatpush1.msra.mxu0 0.0
    %3115 = vmatprep.subr.mxu0 0.0
    %3116 = vmatpush1.msra.mxu0 0.0
    %3117 = vmatprep.subr.mxu0 0.0
    %3118 = vmatpush1.msra.mxu0 0.0
    %3119 = vmatprep.subr.mxu0 0.0
    %3120 = vmatpush1.msra.mxu0 0.0
    %3121 = vmatprep.subr.mxu0 0.0
    %3122 = vmatpush1.msra.mxu0 0.0
    %3123 = vmatprep.subr.mxu0 0.0
    %3124 = vmatpush1.msra.mxu0 0.0
    %3125 = vmatprep.subr.mxu0 0.0
    %3126 = vmatpush1.msra.mxu0 0.0
    %3127 = vmatprep.subr.mxu0 0.0
    %3128 = vmatpush1.msra.mxu0 0.0
    %3129 = vmatprep.subr.mxu0 0.0
    %3130 = vmatpush1.msra.mxu0 0.0
    %3131 = vmatprep.subr.mxu0 0.0
    %3132 = vmatpush1.msra.mxu0 0.0
    %3133 = vmatprep.subr.mxu0 0.0
    %3134 = vmatpush1.msra.mxu0 0.0
    %3135 = vmatprep.subr.mxu0 0.0
    %3136 = vmatpush1.msra.mxu0 0.0
    %3137 = vmatprep.subr.mxu0 0.0
    %3138 = vmatpush1.msra.mxu0 0.0
    %3139 = vmatprep.subr.mxu0 0.0
    %3140 = vmatpush1.msra.mxu0 0.0
    %3141 = vmatprep.subr.mxu0 0.0
    %3142 = vmatpush1.msra.mxu0 0.0
    %3143 = vmatprep.subr.mxu0 0.0
    %3144 = vmatpush1.msra.mxu0 0.0
    %3145 = vmatprep.subr.mxu0 0.0
    %3146 = vmatpush1.msra.mxu0 0.0
    %3147 = vmatprep.mubr.f32.mxu0 0.0
    %3148 = vmatmul.mubr.f32.gmra.mrb[0].mxu0 %v3081
    %v3149 = vpop.f32.mrb[0].mxu0
    %v3150 = vadd.f32 %v3079, %v3149
    %v3151 = vpop.f32.mrb[0].mxu0
    %3152 = vdwg.mxu0
    %v3153 = vxor.u32 %v3150, 2147483648
    %v3154 = vmul.f32 %v3153, 1.442695
    %v3155 = vpow.pop %v3154
    %v3156 = vadd.f32 %v3155, 1.0
    %v3157 = vrcp.pop %v3156
    %v3158 = vmul.f32 1.0, %v3157
    %v3159 = vmul.f32 %v3158, 2.0
    %v3160 = vsub.f32 %v3159, 1.0
    %v3161 = vmul.f32 %v3158, %v2937
    %3163 = vrot.lane.b32.xlu0 %v3160, 64
    %v3164 = vpop.permute.xlu0 %3163
    %v3166 = vmul.f32 %v3158, %v3164
    %3168 = vrot.lane.b32.xlu0 %v3166, 32
    %v3169 = vpop.permute.xlu0 %3168
    %v3171 = vadd.f32 %v3161, %v3169
    %v3172 = vtanh.pop %v3171
    %3174 = vrot.lane.b32.xlu0 %v3172, 64
    %v3175 = vpop.permute.xlu0 %3174
    %v3177 = vmul.f32 %v3158, %v3175
    %3179 = vrot.lane.b32.xlu0 %v3177, 32
    %v3180 = vpop.permute.xlu0 %3179
    %3182 = vrot.lane.b32.xlu0 %v3064, 64
    %v3183 = vpop.permute.xlu0 %3182
    %v3185 = vsel %vm288, %v3180, %v3183
    %v3186 = vld [vmem:[%s13] sm:$0xff]
    %v3187 = vld [vmem:[%s13 + $0x8] sm:$0xff]
    %v3188 = vld [vmem:[%s13 + $0x10] sm:$0xff]
    %v3189 = vld [vmem:[%s13 + $0x18] sm:$0xff]
    %v3190 = vld [vmem:[%s13 + $0x20] sm:$0xff]
    %v3191 = vld [vmem:[%s13 + $0x28] sm:$0xff]
    %v3192 = vld [vmem:[%s13 + $0x30] sm:$0xff]
    %v3193 = vld [vmem:[%s13 + $0x38] sm:$0xff]
    %v3194 = vld [vmem:[%s14] sm:$0x1]
    %v3196 = vlaneseq
    %v3197 = vshrl.u32 %v3196, 7
    %v3198 = vsub.s32 0, %v3197
    %v3199 = vrot.slane %v3194, %v3198
    %v3202 = vsel %vm408, %v3185, 0
    %3204 = vmatprep.subr.mxu0 0.0
    %3205 = vmatpush1.msra.mxu0 %v3186
    %3206 = vmatprep.subr.mxu0 0.0
    %3207 = vmatpush1.msra.mxu0 %v3187
    %3208 = vmatprep.subr.mxu0 0.0
    %3209 = vmatpush1.msra.mxu0 %v3188
    %3210 = vmatprep.subr.mxu0 0.0
    %3211 = vmatpush1.msra.mxu0 %v3189
    %3212 = vmatprep.subr.mxu0 0.0
    %3213 = vmatpush1.msra.mxu0 %v3190
    %3214 = vmatprep.subr.mxu0 0.0
    %3215 = vmatpush1.msra.mxu0 %v3191
    %3216 = vmatprep.subr.mxu0 0.0
    %3217 = vmatpush1.msra.mxu0 %v3192
    %3218 = vmatprep.subr.mxu0 0.0
    %3219 = vmatpush1.msra.mxu0 %v3193
    %3220 = vmatprep.subr.mxu0 0.0
    %3221 = vmatpush1.msra.mxu0 0.0
    %3222 = vmatprep.subr.mxu0 0.0
    %3223 = vmatpush1.msra.mxu0 0.0
    %3224 = vmatprep.subr.mxu0 0.0
    %3225 = vmatpush1.msra.mxu0 0.0
    %3226 = vmatprep.subr.mxu0 0.0
    %3227 = vmatpush1.msra.mxu0 0.0
    %3228 = vmatprep.subr.mxu0 0.0
    %3229 = vmatpush1.msra.mxu0 0.0
    %3230 = vmatprep.subr.mxu0 0.0
    %3231 = vmatpush1.msra.mxu0 0.0
    %3232 = vmatprep.subr.mxu0 0.0
    %3233 = vmatpush1.msra.mxu0 0.0
    %3234 = vmatprep.subr.mxu0 0.0
    %3235 = vmatpush1.msra.mxu0 0.0
    %3236 = vmatprep.subr.mxu0 0.0
    %3237 = vmatpush1.msra.mxu0 0.0
    %3238 = vmatprep.subr.mxu0 0.0
    %3239 = vmatpush1.msra.mxu0 0.0
    %3240 = vmatprep.subr.mxu0 0.0
    %3241 = vmatpush1.msra.mxu0 0.0
    %3242 = vmatprep.subr.mxu0 0.0
    %3243 = vmatpush1.msra.mxu0 0.0
    %3244 = vmatprep.subr.mxu0 0.0
    %3245 = vmatpush1.msra.mxu0 0.0
    %3246 = vmatprep.subr.mxu0 0.0
    %3247 = vmatpush1.msra.mxu0 0.0
    %3248 = vmatprep.subr.mxu0 0.0
    %3249 = vmatpush1.msra.mxu0 0.0
    %3250 = vmatprep.subr.mxu0 0.0
    %3251 = vmatpush1.msra.mxu0 0.0
    %3252 = vmatprep.subr.mxu0 0.0
    %3253 = vmatpush1.msra.mxu0 0.0
    %3254 = vmatprep.subr.mxu0 0.0
    %3255 = vmatpush1.msra.mxu0 0.0
    %3256 = vmatprep.subr.mxu0 0.0
    %3257 = vmatpush1.msra.mxu0 0.0
    %3258 = vmatprep.subr.mxu0 0.0
    %3259 = vmatpush1.msra.mxu0 0.0
    %3260 = vmatprep.subr.mxu0 0.0
    %3261 = vmatpush1.msra.mxu0 0.0
    %3262 = vmatprep.subr.mxu0 0.0
    %3263 = vmatpush1.msra.mxu0 0.0
    %3264 = vmatprep.subr.mxu0 0.0
    %3265 = vmatpush1.msra.mxu0 0.0
    %3266 = vmatprep.subr.mxu0 0.0
    %3267 = vmatpush1.msra.mxu0 0.0
    %3268 = vmatprep.mubr.f32.mxu0 0.0
    %3269 = vmatmul.mubr.f32.gmra.mrb[0].mxu0 %v3202
    %v3270 = vpop.f32.mrb[0].mxu0
    %v3271 = vadd.f32 %v3199, %v3270
    %v3272 = vpop.f32.mrb[0].mxu0
    %3273 = vdwg.mxu0
    %v3274 = vxor.u32 %v3271, 2147483648
    %v3275 = vmul.f32 %v3274, 1.442695
    %v3276 = vpow.pop %v3275
    %v3277 = vadd.f32 %v3276, 1.0
    %v3278 = vrcp.pop %v3277
    %v3279 = vmul.f32 1.0, %v3278
    %v3280 = vmul.f32 %v3279, 2.0
    %v3281 = vsub.f32 %v3280, 1.0
    %v3282 = vmul.f32 %v3279, %v3058
    %3284 = vrot.lane.b32.xlu0 %v3281, 64
    %v3285 = vpop.permute.xlu0 %3284
    %v3287 = vmul.f32 %v3279, %v3285
    %3289 = vrot.lane.b32.xlu0 %v3287, 32
    %v3290 = vpop.permute.xlu0 %3289
    %v3292 = vadd.f32 %v3282, %v3290
    %v3293 = vtanh.pop %v3292
    %3295 = vrot.lane.b32.xlu0 %v3293, 64
    %v3296 = vpop.permute.xlu0 %3295
    %v3298 = vmul.f32 %v3279, %v3296
    %3300 = vrot.lane.b32.xlu0 %v3298, 32
    %v3301 = vpop.permute.xlu0 %3300
    %3303 = vst.msk [vmem:[#allocation2 + $0x20] sm:$0xff] %vm288, %v3301
    %v3304 = vld [vmem:[#allocation11] sm:$0xff]
    %v3305 = vld [vmem:[#allocation11 + $0x8] sm:$0xff]
    %v3306 = vld [vmem:[#allocation11 + $0x10] sm:$0xff]
    %v3307 = vld [vmem:[#allocation11 + $0x18] sm:$0xff]
    %v3308 = vld [vmem:[%s12] sm:$0x1]
    %v3310 = vlaneseq
    %v3311 = vshrl.u32 %v3310, 7
    %v3312 = vsub.s32 0, %v3311
    %v3313 = vrot.slane %v3308, %v3312
    %v3315 = vsel %vm288, %v3180, 0
    %3317 = vmatprep.subr.mxu0 0.0
    %3318 = vmatpush1.msra.mxu0 %v3304
    %3319 = vmatprep.subr.mxu0 0.0
    %3320 = vmatpush1.msra.mxu0 %v3305
    %3321 = vmatprep.subr.mxu0 0.0
    %3322 = vmatpush1.msra.mxu0 %v3306
    %3323 = vmatprep.subr.mxu0 0.0
    %3324 = vmatpush1.msra.mxu0 %v3307
    %3325 = vmatprep.subr.mxu0 0.0
    %3326 = vmatpush1.msra.mxu0 0.0
    %3327 = vmatprep.subr.mxu0 0.0
    %3328 = vmatpush1.msra.mxu0 0.0
    %3329 = vmatprep.subr.mxu0 0.0
    %3330 = vmatpush1.msra.mxu0 0.0
    %3331 = vmatprep.subr.mxu0 0.0
    %3332 = vmatpush1.msra.mxu0 0.0
    %3333 = vmatprep.subr.mxu0 0.0
    %3334 = vmatpush1.msra.mxu0 0.0
    %3335 = vmatprep.subr.mxu0 0.0
    %3336 = vmatpush1.msra.mxu0 0.0
    %3337 = vmatprep.subr.mxu0 0.0
    %3338 = vmatpush1.msra.mxu0 0.0
    %3339 = vmatprep.subr.mxu0 0.0
    %3340 = vmatpush1.msra.mxu0 0.0
    %3341 = vmatprep.subr.mxu0 0.0
    %3342 = vmatpush1.msra.mxu0 0.0
    %3343 = vmatprep.subr.mxu0 0.0
    %3344 = vmatpush1.msra.mxu0 0.0
    %3345 = vmatprep.subr.mxu0 0.0
    %3346 = vmatpush1.msra.mxu0 0.0
    %3347 = vmatprep.subr.mxu0 0.0
    %3348 = vmatpush1.msra.mxu0 0.0
    %3349 = vmatprep.subr.mxu0 0.0
    %3350 = vmatpush1.msra.mxu0 0.0
    %3351 = vmatprep.subr.mxu0 0.0
    %3352 = vmatpush1.msra.mxu0 0.0
    %3353 = vmatprep.subr.mxu0 0.0
    %3354 = vmatpush1.msra.mxu0 0.0
    %3355 = vmatprep.subr.mxu0 0.0
    %3356 = vmatpush1.msra.mxu0 0.0
    %3357 = vmatprep.subr.mxu0 0.0
    %3358 = vmatpush1.msra.mxu0 0.0
    %3359 = vmatprep.subr.mxu0 0.0
    %3360 = vmatpush1.msra.mxu0 0.0
    %3361 = vmatprep.subr.mxu0 0.0
    %3362 = vmatpush1.msra.mxu0 0.0
    %3363 = vmatprep.subr.mxu0 0.0
    %3364 = vmatpush1.msra.mxu0 0.0
    %3365 = vmatprep.subr.mxu0 0.0
    %3366 = vmatpush1.msra.mxu0 0.0
    %3367 = vmatprep.subr.mxu0 0.0
    %3368 = vmatpush1.msra.mxu0 0.0
    %3369 = vmatprep.subr.mxu0 0.0
    %3370 = vmatpush1.msra.mxu0 0.0
    %3371 = vmatprep.subr.mxu0 0.0
    %3372 = vmatpush1.msra.mxu0 0.0
    %3373 = vmatprep.subr.mxu0 0.0
    %3374 = vmatpush1.msra.mxu0 0.0
    %3375 = vmatprep.subr.mxu0 0.0
    %3376 = vmatpush1.msra.mxu0 0.0
    %3377 = vmatprep.subr.mxu0 0.0
    %3378 = vmatpush1.msra.mxu0 0.0
    %3379 = vmatprep.subr.mxu0 0.0
    %3380 = vmatpush1.msra.mxu0 0.0
    %3381 = vmatprep.mubr.f32.mxu0 0.0
    %3382 = vmatmul.mubr.f32.gmra.mrb[0].mxu0 %v3315
    %v3383 = vpop.f32.mrb[0].mxu0
    %v3384 = vadd.f32 %v3313, %v3383
    %v3385 = vpop.f32.mrb[0].mxu0
    %3386 = vdwg.mxu0
    %v3387 = vxor.u32 %v3384, 2147483648
    %v3388 = vmul.f32 %v3387, 1.442695
    %v3389 = vpow.pop %v3388
    %v3390 = vadd.f32 %v3389, 1.0
    %v3391 = vrcp.pop %v3390
    %v3392 = vmul.f32 1.0, %v3391
    %v3393 = vmul.f32 %v3392, 2.0
    %v3394 = vsub.f32 %v3393, 1.0
    %v3395 = vmul.f32 %v3392, %v3171
    %3397 = vrot.lane.b32.xlu0 %v3394, 64
    %v3398 = vpop.permute.xlu0 %3397
    %v3400 = vmul.f32 %v3392, %v3398
    %3402 = vrot.lane.b32.xlu0 %v3400, 32
    %v3403 = vpop.permute.xlu0 %3402
    %v3405 = vadd.f32 %v3395, %v3403
    %v3406 = vtanh.pop %v3405
    %3408 = vrot.lane.b32.xlu0 %v3406, 64
    %v3409 = vpop.permute.xlu0 %3408
    %v3411 = vmul.f32 %v3392, %v3409
    %3413 = vrot.lane.b32.xlu0 %v3411, 32
    %v3414 = vpop.permute.xlu0 %3413
    %3416 = vrot.lane.b32.xlu0 %v3298, 64
    %v3417 = vpop.permute.xlu0 %3416
    %v3419 = vsel %vm288, %v3414, %v3417
    %v3420 = vld [vmem:[%s13] sm:$0xff]
    %v3421 = vld [vmem:[%s13 + $0x8] sm:$0xff]
    %v3422 = vld [vmem:[%s13 + $0x10] sm:$0xff]
    %v3423 = vld [vmem:[%s13 + $0x18] sm:$0xff]
    %v3424 = vld [vmem:[%s13 + $0x20] sm:$0xff]
    %v3425 = vld [vmem:[%s13 + $0x28] sm:$0xff]
    %v3426 = vld [vmem:[%s13 + $0x30] sm:$0xff]
    %v3427 = vld [vmem:[%s13 + $0x38] sm:$0xff]
    %v3428 = vld [vmem:[%s14] sm:$0x1]
    %v3430 = vlaneseq
    %v3431 = vshrl.u32 %v3430, 7
    %v3432 = vsub.s32 0, %v3431
    %v3433 = vrot.slane %v3428, %v3432
    %v3436 = vsel %vm408, %v3419, 0
    %3438 = vmatprep.subr.mxu0 0.0
    %3439 = vmatpush1.msra.mxu0 %v3420
    %3440 = vmatprep.subr.mxu0 0.0
    %3441 = vmatpush1.msra.mxu0 %v3421
    %3442 = vmatprep.subr.mxu0 0.0
    %3443 = vmatpush1.msra.mxu0 %v3422
    %3444 = vmatprep.subr.mxu0 0.0
    %3445 = vmatpush1.msra.mxu0 %v3423
    %3446 = vmatprep.subr.mxu0 0.0
    %3447 = vmatpush1.msra.mxu0 %v3424
    %3448 = vmatprep.subr.mxu0 0.0
    %3449 = vmatpush1.msra.mxu0 %v3425
    %3450 = vmatprep.subr.mxu0 0.0
    %3451 = vmatpush1.msra.mxu0 %v3426
    %3452 = vmatprep.subr.mxu0 0.0
    %3453 = vmatpush1.msra.mxu0 %v3427
    %3454 = vmatprep.subr.mxu0 0.0
    %3455 = vmatpush1.msra.mxu0 0.0
    %3456 = vmatprep.subr.mxu0 0.0
    %3457 = vmatpush1.msra.mxu0 0.0
    %3458 = vmatprep.subr.mxu0 0.0
    %3459 = vmatpush1.msra.mxu0 0.0
    %3460 = vmatprep.subr.mxu0 0.0
    %3461 = vmatpush1.msra.mxu0 0.0
    %3462 = vmatprep.subr.mxu0 0.0
    %3463 = vmatpush1.msra.mxu0 0.0
    %3464 = vmatprep.subr.mxu0 0.0
    %3465 = vmatpush1.msra.mxu0 0.0
    %3466 = vmatprep.subr.mxu0 0.0
    %3467 = vmatpush1.msra.mxu0 0.0
    %3468 = vmatprep.subr.mxu0 0.0
    %3469 = vmatpush1.msra.mxu0 0.0
    %3470 = vmatprep.subr.mxu0 0.0
    %3471 = vmatpush1.msra.mxu0 0.0
    %3472 = vmatprep.subr.mxu0 0.0
    %3473 = vmatpush1.msra.mxu0 0.0
    %3474 = vmatprep.subr.mxu0 0.0
    %3475 = vmatpush1.msra.mxu0 0.0
    %3476 = vmatprep.subr.mxu0 0.0
    %3477 = vmatpush1.msra.mxu0 0.0
    %3478 = vmatprep.subr.mxu0 0.0
    %3479 = vmatpush1.msra.mxu0 0.0
    %3480 = vmatprep.subr.mxu0 0.0
    %3481 = vmatpush1.msra.mxu0 0.0
    %3482 = vmatprep.subr.mxu0 0.0
    %3483 = vmatpush1.msra.mxu0 0.0
    %3484 = vmatprep.subr.mxu0 0.0
    %3485 = vmatpush1.msra.mxu0 0.0
    %3486 = vmatprep.subr.mxu0 0.0
    %3487 = vmatpush1.msra.mxu0 0.0
    %3488 = vmatprep.subr.mxu0 0.0
    %3489 = vmatpush1.msra.mxu0 0.0
    %3490 = vmatprep.subr.mxu0 0.0
    %3491 = vmatpush1.msra.mxu0 0.0
    %3492 = vmatprep.subr.mxu0 0.0
    %3493 = vmatpush1.msra.mxu0 0.0
    %3494 = vmatprep.subr.mxu0 0.0
    %3495 = vmatpush1.msra.mxu0 0.0
    %3496 = vmatprep.subr.mxu0 0.0
    %3497 = vmatpush1.msra.mxu0 0.0
    %3498 = vmatprep.subr.mxu0 0.0
    %3499 = vmatpush1.msra.mxu0 0.0
    %3500 = vmatprep.subr.mxu0 0.0
    %3501 = vmatpush1.msra.mxu0 0.0
    %3502 = vmatprep.mubr.f32.mxu0 0.0
    %3503 = vmatmul.mubr.f32.gmra.mrb[0].mxu0 %v3436
    %v3504 = vpop.f32.mrb[0].mxu0
    %v3505 = vadd.f32 %v3433, %v3504
    %v3506 = vpop.f32.mrb[0].mxu0
    %3507 = vdwg.mxu0
    %v3508 = vxor.u32 %v3505, 2147483648
    %v3509 = vmul.f32 %v3508, 1.442695
    %v3510 = vpow.pop %v3509
    %v3511 = vadd.f32 %v3510, 1.0
    %v3512 = vrcp.pop %v3511
    %v3513 = vmul.f32 1.0, %v3512
    %v3514 = vmul.f32 %v3513, 2.0
    %v3515 = vsub.f32 %v3514, 1.0
    %v3516 = vmul.f32 %v3513, %v3292
    %3518 = vrot.lane.b32.xlu0 %v3515, 64
    %v3519 = vpop.permute.xlu0 %3518
    %v3521 = vmul.f32 %v3513, %v3519
    %3523 = vrot.lane.b32.xlu0 %v3521, 32
    %v3524 = vpop.permute.xlu0 %3523
    %v3526 = vadd.f32 %v3516, %v3524
    %v3527 = vtanh.pop %v3526
    %3529 = vrot.lane.b32.xlu0 %v3527, 64
    %v3530 = vpop.permute.xlu0 %3529
    %v3532 = vmul.f32 %v3513, %v3530
    %3534 = vrot.lane.b32.xlu0 %v3532, 32
    %v3535 = vpop.permute.xlu0 %3534
    %3537 = vst.msk [vmem:[#allocation2 + $0x28] sm:$0xff] %vm288, %v3535
    %v3538 = vld [vmem:[#allocation11] sm:$0xff]
    %v3539 = vld [vmem:[#allocation11 + $0x8] sm:$0xff]
    %v3540 = vld [vmem:[#allocation11 + $0x10] sm:$0xff]
    %v3541 = vld [vmem:[#allocation11 + $0x18] sm:$0xff]
    %v3542 = vld [vmem:[%s12] sm:$0x1]
    %v3544 = vlaneseq
    %v3545 = vshrl.u32 %v3544, 7
    %v3546 = vsub.s32 0, %v3545
    %v3547 = vrot.slane %v3542, %v3546
    %v3549 = vsel %vm288, %v3414, 0
    %3551 = vmatprep.subr.mxu0 0.0
    %3552 = vmatpush1.msra.mxu0 %v3538
    %3553 = vmatprep.subr.mxu0 0.0
    %3554 = vmatpush1.msra.mxu0 %v3539
    %3555 = vmatprep.subr.mxu0 0.0
    %3556 = vmatpush1.msra.mxu0 %v3540
    %3557 = vmatprep.subr.mxu0 0.0
    %3558 = vmatpush1.msra.mxu0 %v3541
    %3559 = vmatprep.subr.mxu0 0.0
    %3560 = vmatpush1.msra.mxu0 0.0
    %3561 = vmatprep.subr.mxu0 0.0
    %3562 = vmatpush1.msra.mxu0 0.0
    %3563 = vmatprep.subr.mxu0 0.0
    %3564 = vmatpush1.msra.mxu0 0.0
    %3565 = vmatprep.subr.mxu0 0.0
    %3566 = vmatpush1.msra.mxu0 0.0
    %3567 = vmatprep.subr.mxu0 0.0
    %3568 = vmatpush1.msra.mxu0 0.0
    %3569 = vmatprep.subr.mxu0 0.0
    %3570 = vmatpush1.msra.mxu0 0.0
    %3571 = vmatprep.subr.mxu0 0.0
    %3572 = vmatpush1.msra.mxu0 0.0
    %3573 = vmatprep.subr.mxu0 0.0
    %3574 = vmatpush1.msra.mxu0 0.0
    %3575 = vmatprep.subr.mxu0 0.0
    %3576 = vmatpush1.msra.mxu0 0.0
    %3577 = vmatprep.subr.mxu0 0.0
    %3578 = vmatpush1.msra.mxu0 0.0
    %3579 = vmatprep.subr.mxu0 0.0
    %3580 = vmatpush1.msra.mxu0 0.0
    %3581 = vmatprep.subr.mxu0 0.0
    %3582 = vmatpush1.msra.mxu0 0.0
    %3583 = vmatprep.subr.mxu0 0.0
    %3584 = vmatpush1.msra.mxu0 0.0
    %3585 = vmatprep.subr.mxu0 0.0
    %3586 = vmatpush1.msra.mxu0 0.0
    %3587 = vmatprep.subr.mxu0 0.0
    %3588 = vmatpush1.msra.mxu0 0.0
    %3589 = vmatprep.subr.mxu0 0.0
    %3590 = vmatpush1.msra.mxu0 0.0
    %3591 = vmatprep.subr.mxu0 0.0
    %3592 = vmatpush1.msra.mxu0 0.0
    %3593 = vmatprep.subr.mxu0 0.0
    %3594 = vmatpush1.msra.mxu0 0.0
    %3595 = vmatprep.subr.mxu0 0.0
    %3596 = vmatpush1.msra.mxu0 0.0
    %3597 = vmatprep.subr.mxu0 0.0
    %3598 = vmatpush1.msra.mxu0 0.0
    %3599 = vmatprep.subr.mxu0 0.0
    %3600 = vmatpush1.msra.mxu0 0.0
    %3601 = vmatprep.subr.mxu0 0.0
    %3602 = vmatpush1.msra.mxu0 0.0
    %3603 = vmatprep.subr.mxu0 0.0
    %3604 = vmatpush1.msra.mxu0 0.0
    %3605 = vmatprep.subr.mxu0 0.0
    %3606 = vmatpush1.msra.mxu0 0.0
    %3607 = vmatprep.subr.mxu0 0.0
    %3608 = vmatpush1.msra.mxu0 0.0
    %3609 = vmatprep.subr.mxu0 0.0
    %3610 = vmatpush1.msra.mxu0 0.0
    %3611 = vmatprep.subr.mxu0 0.0
    %3612 = vmatpush1.msra.mxu0 0.0
    %3613 = vmatprep.subr.mxu0 0.0
    %3614 = vmatpush1.msra.mxu0 0.0
    %3615 = vmatprep.mubr.f32.mxu0 0.0
    %3616 = vmatmul.mubr.f32.gmra.mrb[0].mxu0 %v3549
    %v3617 = vpop.f32.mrb[0].mxu0
    %v3618 = vadd.f32 %v3547, %v3617
    %v3619 = vpop.f32.mrb[0].mxu0
    %3620 = vdwg.mxu0
    %v3621 = vxor.u32 %v3618, 2147483648
    %v3622 = vmul.f32 %v3621, 1.442695
    %v3623 = vpow.pop %v3622
    %v3624 = vadd.f32 %v3623, 1.0
    %v3625 = vrcp.pop %v3624
    %v3626 = vmul.f32 1.0, %v3625
    %v3627 = vmul.f32 %v3626, 2.0
    %v3628 = vsub.f32 %v3627, 1.0
    %v3629 = vmul.f32 %v3626, %v3405
    %3631 = vrot.lane.b32.xlu0 %v3628, 64
    %v3632 = vpop.permute.xlu0 %3631
    %v3634 = vmul.f32 %v3626, %v3632
    %3636 = vrot.lane.b32.xlu0 %v3634, 32
    %v3637 = vpop.permute.xlu0 %3636
    %v3639 = vadd.f32 %v3629, %v3637
    %v3640 = vtanh.pop %v3639
    %3642 = vrot.lane.b32.xlu0 %v3640, 64
    %v3643 = vpop.permute.xlu0 %3642
    %v3645 = vmul.f32 %v3626, %v3643
    %3647 = vrot.lane.b32.xlu0 %v3645, 32
    %v3648 = vpop.permute.xlu0 %3647
    %3650 = vrot.lane.b32.xlu0 %v3532, 64
    %v3651 = vpop.permute.xlu0 %3650
    %v3653 = vsel %vm288, %v3648, %v3651
    %v3654 = vld [vmem:[%s13] sm:$0xff]
    %v3655 = vld [vmem:[%s13 + $0x8] sm:$0xff]
    %v3656 = vld [vmem:[%s13 + $0x10] sm:$0xff]
    %v3657 = vld [vmem:[%s13 + $0x18] sm:$0xff]
    %v3658 = vld [vmem:[%s13 + $0x20] sm:$0xff]
    %v3659 = vld [vmem:[%s13 + $0x28] sm:$0xff]
    %v3660 = vld [vmem:[%s13 + $0x30] sm:$0xff]
    %v3661 = vld [vmem:[%s13 + $0x38] sm:$0xff]
    %v3662 = vld [vmem:[%s14] sm:$0x1]
    %v3664 = vlaneseq
    %v3665 = vshrl.u32 %v3664, 7
    %v3666 = vsub.s32 0, %v3665
    %v3667 = vrot.slane %v3662, %v3666
    %v3670 = vsel %vm408, %v3653, 0
    %3672 = vmatprep.subr.mxu0 0.0
    %3673 = vmatpush1.msra.mxu0 %v3654
    %3674 = vmatprep.subr.mxu0 0.0
    %3675 = vmatpush1.msra.mxu0 %v3655
    %3676 = vmatprep.subr.mxu0 0.0
    %3677 = vmatpush1.msra.mxu0 %v3656
    %3678 = vmatprep.subr.mxu0 0.0
    %3679 = vmatpush1.msra.mxu0 %v3657
    %3680 = vmatprep.subr.mxu0 0.0
    %3681 = vmatpush1.msra.mxu0 %v3658
    %3682 = vmatprep.subr.mxu0 0.0
    %3683 = vmatpush1.msra.mxu0 %v3659
    %3684 = vmatprep.subr.mxu0 0.0
    %3685 = vmatpush1.msra.mxu0 %v3660
    %3686 = vmatprep.subr.mxu0 0.0
    %3687 = vmatpush1.msra.mxu0 %v3661
    %3688 = vmatprep.subr.mxu0 0.0
    %3689 = vmatpush1.msra.mxu0 0.0
    %3690 = vmatprep.subr.mxu0 0.0
    %3691 = vmatpush1.msra.mxu0 0.0
    %3692 = vmatprep.subr.mxu0 0.0
    %3693 = vmatpush1.msra.mxu0 0.0
    %3694 = vmatprep.subr.mxu0 0.0
    %3695 = vmatpush1.msra.mxu0 0.0
    %3696 = vmatprep.subr.mxu0 0.0
    %3697 = vmatpush1.msra.mxu0 0.0
    %3698 = vmatprep.subr.mxu0 0.0
    %3699 = vmatpush1.msra.mxu0 0.0
    %3700 = vmatprep.subr.mxu0 0.0
    %3701 = vmatpush1.msra.mxu0 0.0
    %3702 = vmatprep.subr.mxu0 0.0
    %3703 = vmatpush1.msra.mxu0 0.0
    %3704 = vmatprep.subr.mxu0 0.0
    %3705 = vmatpush1.msra.mxu0 0.0
    %3706 = vmatprep.subr.mxu0 0.0
    %3707 = vmatpush1.msra.mxu0 0.0
    %3708 = vmatprep.subr.mxu0 0.0
    %3709 = vmatpush1.msra.mxu0 0.0
    %3710 = vmatprep.subr.mxu0 0.0
    %3711 = vmatpush1.msra.mxu0 0.0
    %3712 = vmatprep.subr.mxu0 0.0
    %3713 = vmatpush1.msra.mxu0 0.0
    %3714 = vmatprep.subr.mxu0 0.0
    %3715 = vmatpush1.msra.mxu0 0.0
    %3716 = vmatprep.subr.mxu0 0.0
    %3717 = vmatpush1.msra.mxu0 0.0
    %3718 = vmatprep.subr.mxu0 0.0
    %3719 = vmatpush1.msra.mxu0 0.0
    %3720 = vmatprep.subr.mxu0 0.0
    %3721 = vmatpush1.msra.mxu0 0.0
    %3722 = vmatprep.subr.mxu0 0.0
    %3723 = vmatpush1.msra.mxu0 0.0
    %3724 = vmatprep.subr.mxu0 0.0
    %3725 = vmatpush1.msra.mxu0 0.0
    %3726 = vmatprep.subr.mxu0 0.0
    %3727 = vmatpush1.msra.mxu0 0.0
    %3728 = vmatprep.subr.mxu0 0.0
    %3729 = vmatpush1.msra.mxu0 0.0
    %3730 = vmatprep.subr.mxu0 0.0
    %3731 = vmatpush1.msra.mxu0 0.0
    %3732 = vmatprep.subr.mxu0 0.0
    %3733 = vmatpush1.msra.mxu0 0.0
    %3734 = vmatprep.subr.mxu0 0.0
    %3735 = vmatpush1.msra.mxu0 0.0
    %3736 = vmatprep.mubr.f32.mxu0 0.0
    %3737 = vmatmul.mubr.f32.gmra.mrb[0].mxu0 %v3670
    %v3738 = vpop.f32.mrb[0].mxu0
    %v3739 = vadd.f32 %v3667, %v3738
    %v3740 = vpop.f32.mrb[0].mxu0
    %3741 = vdwg.mxu0
    %v3742 = vxor.u32 %v3739, 2147483648
    %v3743 = vmul.f32 %v3742, 1.442695
    %v3744 = vpow.pop %v3743
    %v3745 = vadd.f32 %v3744, 1.0
    %v3746 = vrcp.pop %v3745
    %v3747 = vmul.f32 1.0, %v3746
    %v3748 = vmul.f32 %v3747, 2.0
    %v3749 = vsub.f32 %v3748, 1.0
    %v3750 = vmul.f32 %v3747, %v3526
    %3752 = vrot.lane.b32.xlu0 %v3749, 64
    %v3753 = vpop.permute.xlu0 %3752
    %v3755 = vmul.f32 %v3747, %v3753
    %3757 = vrot.lane.b32.xlu0 %v3755, 32
    %v3758 = vpop.permute.xlu0 %3757
    %v3760 = vadd.f32 %v3750, %v3758
    %v3761 = vtanh.pop %v3760
    %3763 = vrot.lane.b32.xlu0 %v3761, 64
    %v3764 = vpop.permute.xlu0 %3763
    %v3766 = vmul.f32 %v3747, %v3764
    %3768 = vrot.lane.b32.xlu0 %v3766, 32
    %v3769 = vpop.permute.xlu0 %3768
    %3771 = vst.msk [vmem:[#allocation2 + $0x30] sm:$0xff] %vm288, %v3769
    %v3772 = vld [vmem:[#allocation11] sm:$0xff]
    %v3773 = vld [vmem:[#allocation11 + $0x8] sm:$0xff]
    %v3774 = vld [vmem:[#allocation11 + $0x10] sm:$0xff]
    %v3775 = vld [vmem:[#allocation11 + $0x18] sm:$0xff]
    %v3776 = vld [vmem:[%s12] sm:$0x1]
    %v3778 = vlaneseq
    %v3779 = vshrl.u32 %v3778, 7
    %v3780 = vsub.s32 0, %v3779
    %v3781 = vrot.slane %v3776, %v3780
    %v3783 = vsel %vm288, %v3648, 0
    %3785 = vmatprep.subr.mxu0 0.0
    %3786 = vmatpush1.msra.mxu0 %v3772
    %3787 = vmatprep.subr.mxu0 0.0
    %3788 = vmatpush1.msra.mxu0 %v3773
    %3789 = vmatprep.subr.mxu0 0.0
    %3790 = vmatpush1.msra.mxu0 %v3774
    %3791 = vmatprep.subr.mxu0 0.0
    %3792 = vmatpush1.msra.mxu0 %v3775
    %3793 = vmatprep.subr.mxu0 0.0
    %3794 = vmatpush1.msra.mxu0 0.0
    %3795 = vmatprep.subr.mxu0 0.0
    %3796 = vmatpush1.msra.mxu0 0.0
    %3797 = vmatprep.subr.mxu0 0.0
    %3798 = vmatpush1.msra.mxu0 0.0
    %3799 = vmatprep.subr.mxu0 0.0
    %3800 = vmatpush1.msra.mxu0 0.0
    %3801 = vmatprep.subr.mxu0 0.0
    %3802 = vmatpush1.msra.mxu0 0.0
    %3803 = vmatprep.subr.mxu0 0.0
    %3804 = vmatpush1.msra.mxu0 0.0
    %3805 = vmatprep.subr.mxu0 0.0
    %3806 = vmatpush1.msra.mxu0 0.0
    %3807 = vmatprep.subr.mxu0 0.0
    %3808 = vmatpush1.msra.mxu0 0.0
    %3809 = vmatprep.subr.mxu0 0.0
    %3810 = vmatpush1.msra.mxu0 0.0
    %3811 = vmatprep.subr.mxu0 0.0
    %3812 = vmatpush1.msra.mxu0 0.0
    %3813 = vmatprep.subr.mxu0 0.0
    %3814 = vmatpush1.msra.mxu0 0.0
    %3815 = vmatprep.subr.mxu0 0.0
    %3816 = vmatpush1.msra.mxu0 0.0
    %3817 = vmatprep.subr.mxu0 0.0
    %3818 = vmatpush1.msra.mxu0 0.0
    %3819 = vmatprep.subr.mxu0 0.0
    %3820 = vmatpush1.msra.mxu0 0.0
    %3821 = vmatprep.subr.mxu0 0.0
    %3822 = vmatpush1.msra.mxu0 0.0
    %3823 = vmatprep.subr.mxu0 0.0
    %3824 = vmatpush1.msra.mxu0 0.0
    %3825 = vmatprep.subr.mxu0 0.0
    %3826 = vmatpush1.msra.mxu0 0.0
    %3827 = vmatprep.subr.mxu0 0.0
    %3828 = vmatpush1.msra.mxu0 0.0
    %3829 = vmatprep.subr.mxu0 0.0
    %3830 = vmatpush1.msra.mxu0 0.0
    %3831 = vmatprep.subr.mxu0 0.0
    %3832 = vmatpush1.msra.mxu0 0.0
    %3833 = vmatprep.subr.mxu0 0.0
    %3834 = vmatpush1.msra.mxu0 0.0
    %3835 = vmatprep.subr.mxu0 0.0
    %3836 = vmatpush1.msra.mxu0 0.0
    %3837 = vmatprep.subr.mxu0 0.0
    %3838 = vmatpush1.msra.mxu0 0.0
    %3839 = vmatprep.subr.mxu0 0.0
    %3840 = vmatpush1.msra.mxu0 0.0
    %3841 = vmatprep.subr.mxu0 0.0
    %3842 = vmatpush1.msra.mxu0 0.0
    %3843 = vmatprep.subr.mxu0 0.0
    %3844 = vmatpush1.msra.mxu0 0.0
    %3845 = vmatprep.subr.mxu0 0.0
    %3846 = vmatpush1.msra.mxu0 0.0
    %3847 = vmatprep.subr.mxu0 0.0
    %3848 = vmatpush1.msra.mxu0 0.0
    %3849 = vmatprep.mubr.f32.mxu0 0.0
    %3850 = vmatmul.mubr.f32.gmra.mrb[0].mxu0 %v3783
    %v3851 = vpop.f32.mrb[0].mxu0
    %v3852 = vadd.f32 %v3781, %v3851
    %v3853 = vpop.f32.mrb[0].mxu0
    %3854 = vdwg.mxu0
    %v3855 = vxor.u32 %v3852, 2147483648
    %v3856 = vmul.f32 %v3855, 1.442695
    %v3857 = vpow.pop %v3856
    %v3858 = vadd.f32 %v3857, 1.0
    %v3859 = vrcp.pop %v3858
    %v3860 = vmul.f32 1.0, %v3859
    %v3861 = vmul.f32 %v3860, 2.0
    %v3862 = vsub.f32 %v3861, 1.0
    %v3863 = vmul.f32 %v3860, %v3639
    %3865 = vrot.lane.b32.xlu0 %v3862, 64
    %v3866 = vpop.permute.xlu0 %3865
    %v3868 = vmul.f32 %v3860, %v3866
    %3870 = vrot.lane.b32.xlu0 %v3868, 32
    %v3871 = vpop.permute.xlu0 %3870
    %v3873 = vadd.f32 %v3863, %v3871
    %v3874 = vtanh.pop %v3873
    %3876 = vrot.lane.b32.xlu0 %v3874, 64
    %v3877 = vpop.permute.xlu0 %3876
    %v3879 = vmul.f32 %v3860, %v3877
    %3881 = vrot.lane.b32.xlu0 %v3879, 32
    %v3882 = vpop.permute.xlu0 %3881
    %3884 = vrot.lane.b32.xlu0 %v3766, 64
    %v3885 = vpop.permute.xlu0 %3884
    %v3887 = vsel %vm288, %v3882, %v3885
    %v3888 = vld [vmem:[%s13] sm:$0xff]
    %v3889 = vld [vmem:[%s13 + $0x8] sm:$0xff]
    %v3890 = vld [vmem:[%s13 + $0x10] sm:$0xff]
    %v3891 = vld [vmem:[%s13 + $0x18] sm:$0xff]
    %v3892 = vld [vmem:[%s13 + $0x20] sm:$0xff]
    %v3893 = vld [vmem:[%s13 + $0x28] sm:$0xff]
    %v3894 = vld [vmem:[%s13 + $0x30] sm:$0xff]
    %v3895 = vld [vmem:[%s13 + $0x38] sm:$0xff]
    %v3896 = vld [vmem:[%s14] sm:$0x1]
    %v3898 = vlaneseq
    %v3899 = vshrl.u32 %v3898, 7
    %v3900 = vsub.s32 0, %v3899
    %v3901 = vrot.slane %v3896, %v3900
    %v3904 = vsel %vm408, %v3887, 0
    %3906 = vmatprep.subr.mxu0 0.0
    %3907 = vmatpush1.msra.mxu0 %v3888
    %3908 = vmatprep.subr.mxu0 0.0
    %3909 = vmatpush1.msra.mxu0 %v3889
    %3910 = vmatprep.subr.mxu0 0.0
    %3911 = vmatpush1.msra.mxu0 %v3890
    %3912 = vmatprep.subr.mxu0 0.0
    %3913 = vmatpush1.msra.mxu0 %v3891
    %3914 = vmatprep.subr.mxu0 0.0
    %3915 = vmatpush1.msra.mxu0 %v3892
    %3916 = vmatprep.subr.mxu0 0.0
    %3917 = vmatpush1.msra.mxu0 %v3893
    %3918 = vmatprep.subr.mxu0 0.0
    %3919 = vmatpush1.msra.mxu0 %v3894
    %3920 = vmatprep.subr.mxu0 0.0
    %3921 = vmatpush1.msra.mxu0 %v3895
    %3922 = vmatprep.subr.mxu0 0.0
    %3923 = vmatpush1.msra.mxu0 0.0
    %3924 = vmatprep.subr.mxu0 0.0
    %3925 = vmatpush1.msra.mxu0 0.0
    %3926 = vmatprep.subr.mxu0 0.0
    %3927 = vmatpush1.msra.mxu0 0.0
    %3928 = vmatprep.subr.mxu0 0.0
    %3929 = vmatpush1.msra.mxu0 0.0
    %3930 = vmatprep.subr.mxu0 0.0
    %3931 = vmatpush1.msra.mxu0 0.0
    %3932 = vmatprep.subr.mxu0 0.0
    %3933 = vmatpush1.msra.mxu0 0.0
    %3934 = vmatprep.subr.mxu0 0.0
    %3935 = vmatpush1.msra.mxu0 0.0
    %3936 = vmatprep.subr.mxu0 0.0
    %3937 = vmatpush1.msra.mxu0 0.0
    %3938 = vmatprep.subr.mxu0 0.0
    %3939 = vmatpush1.msra.mxu0 0.0
    %3940 = vmatprep.subr.mxu0 0.0
    %3941 = vmatpush1.msra.mxu0 0.0
    %3942 = vmatprep.subr.mxu0 0.0
    %3943 = vmatpush1.msra.mxu0 0.0
    %3944 = vmatprep.subr.mxu0 0.0
    %3945 = vmatpush1.msra.mxu0 0.0
    %3946 = vmatprep.subr.mxu0 0.0
    %3947 = vmatpush1.msra.mxu0 0.0
    %3948 = vmatprep.subr.mxu0 0.0
    %3949 = vmatpush1.msra.mxu0 0.0
    %3950 = vmatprep.subr.mxu0 0.0
    %3951 = vmatpush1.msra.mxu0 0.0
    %3952 = vmatprep.subr.mxu0 0.0
    %3953 = vmatpush1.msra.mxu0 0.0
    %3954 = vmatprep.subr.mxu0 0.0
    %3955 = vmatpush1.msra.mxu0 0.0
    %3956 = vmatprep.subr.mxu0 0.0
    %3957 = vmatpush1.msra.mxu0 0.0
    %3958 = vmatprep.subr.mxu0 0.0
    %3959 = vmatpush1.msra.mxu0 0.0
    %3960 = vmatprep.subr.mxu0 0.0
    %3961 = vmatpush1.msra.mxu0 0.0
    %3962 = vmatprep.subr.mxu0 0.0
    %3963 = vmatpush1.msra.mxu0 0.0
    %3964 = vmatprep.subr.mxu0 0.0
    %3965 = vmatpush1.msra.mxu0 0.0
    %3966 = vmatprep.subr.mxu0 0.0
    %3967 = vmatpush1.msra.mxu0 0.0
    %3968 = vmatprep.subr.mxu0 0.0
    %3969 = vmatpush1.msra.mxu0 0.0
    %3970 = vmatprep.mubr.f32.mxu0 0.0
    %3971 = vmatmul.mubr.f32.gmra.mrb[0].mxu0 %v3904
    %v3972 = vpop.f32.mrb[0].mxu0
    %v3973 = vadd.f32 %v3901, %v3972
    %v3974 = vpop.f32.mrb[0].mxu0
    %3975 = vdwg.mxu0
    %v3976 = vxor.u32 %v3973, 2147483648
    %v3977 = vmul.f32 %v3976, 1.442695
    %v3978 = vpow.pop %v3977
    %v3979 = vadd.f32 %v3978, 1.0
    %v3980 = vrcp.pop %v3979
    %v3981 = vmul.f32 1.0, %v3980
    %v3982 = vmul.f32 %v3981, 2.0
    %v3983 = vsub.f32 %v3982, 1.0
    %v3984 = vmul.f32 %v3981, %v3760
    %3986 = vrot.lane.b32.xlu0 %v3983, 64
    %v3987 = vpop.permute.xlu0 %3986
    %v3989 = vmul.f32 %v3981, %v3987
    %3991 = vrot.lane.b32.xlu0 %v3989, 32
    %v3992 = vpop.permute.xlu0 %3991
    %v3994 = vadd.f32 %v3984, %v3992
    %v3995 = vtanh.pop %v3994
    %3997 = vrot.lane.b32.xlu0 %v3995, 64
    %v3998 = vpop.permute.xlu0 %3997
    %v4000 = vmul.f32 %v3981, %v3998
    %4002 = vrot.lane.b32.xlu0 %v4000, 32
    %v4003 = vpop.permute.xlu0 %4002
    %4005 = vst.msk [vmem:[#allocation2 + $0x38] sm:$0xff] %vm288, %v4003
    %v4006 = vld [vmem:[#allocation2] sm:$0xff]
    %v4007 = vld [vmem:[#allocation2 + $0x8] sm:$0xff]
    %v4008 = vld [vmem:[#allocation2 + $0x10] sm:$0xff]
    %v4009 = vld [vmem:[#allocation2 + $0x18] sm:$0xff]
    %v4010 = vld [vmem:[#allocation2 + $0x20] sm:$0xff]
    %v4011 = vld [vmem:[#allocation2 + $0x28] sm:$0xff]
    %v4012 = vld [vmem:[#allocation2 + $0x30] sm:$0xff]
    %v4013 = vld [vmem:[#allocation2 + $0x38] sm:$0xff]
    %v4014 = vld [vmem:[%s15] sm:$0xff]
    %v4015 = vld [vmem:[%s15 + $0x8] sm:$0xff]
    %v4016 = vld [vmem:[%s15 + $0x10] sm:$0xff]
    %v4017 = vld [vmem:[%s15 + $0x18] sm:$0xff]
    %v4018 = vld [vmem:[%s16] sm:$0x1]
    %v4020 = vlaneseq
    %v4021 = vshrl.u32 %v4020, 7
    %v4022 = vsub.s32 0, %v4021
    %v4023 = vrot.slane %v4018, %v4022
    %v4026 = vsel %vm288, %v4006, 0
    %v4029 = vsel %vm288, %v4007, 0
    %v4032 = vsel %vm288, %v4008, 0
    %v4035 = vsel %vm288, %v4009, 0
    %v4038 = vsel %vm288, %v4010, 0
    %v4041 = vsel %vm288, %v4011, 0
    %v4044 = vsel %vm288, %v4012, 0
    %v4047 = vsel %vm288, %v4013, 0
    %4049 = vmatprep.subr.mxu0 0.0
    %4050 = vmatpush1.msra.mxu0 %v4014
    %4051 = vmatprep.subr.mxu0 0.0
    %4052 = vmatpush1.msra.mxu0 %v4015
    %4053 = vmatprep.subr.mxu0 0.0
    %4054 = vmatpush1.msra.mxu0 %v4016
    %4055 = vmatprep.subr.mxu0 0.0
    %4056 = vmatpush1.msra.mxu0 %v4017
    %4057 = vmatprep.subr.mxu0 0.0
    %4058 = vmatpush1.msra.mxu0 0.0
    %4059 = vmatprep.subr.mxu0 0.0
    %4060 = vmatpush1.msra.mxu0 0.0
    %4061 = vmatprep.subr.mxu0 0.0
    %4062 = vmatpush1.msra.mxu0 0.0
    %4063 = vmatprep.subr.mxu0 0.0
    %4064 = vmatpush1.msra.mxu0 0.0
    %4065 = vmatprep.subr.mxu0 0.0
    %4066 = vmatpush1.msra.mxu0 0.0
    %4067 = vmatprep.subr.mxu0 0.0
    %4068 = vmatpush1.msra.mxu0 0.0
    %4069 = vmatprep.subr.mxu0 0.0
    %4070 = vmatpush1.msra.mxu0 0.0
    %4071 = vmatprep.subr.mxu0 0.0
    %4072 = vmatpush1.msra.mxu0 0.0
    %4073 = vmatprep.subr.mxu0 0.0
    %4074 = vmatpush1.msra.mxu0 0.0
    %4075 = vmatprep.subr.mxu0 0.0
    %4076 = vmatpush1.msra.mxu0 0.0
    %4077 = vmatprep.subr.mxu0 0.0
    %4078 = vmatpush1.msra.mxu0 0.0
    %4079 = vmatprep.subr.mxu0 0.0
    %4080 = vmatpush1.msra.mxu0 0.0
    %4081 = vmatprep.subr.mxu0 0.0
    %4082 = vmatpush1.msra.mxu0 0.0
    %4083 = vmatprep.subr.mxu0 0.0
    %4084 = vmatpush1.msra.mxu0 0.0
    %4085 = vmatprep.subr.mxu0 0.0
    %4086 = vmatpush1.msra.mxu0 0.0
    %4087 = vmatprep.subr.mxu0 0.0
    %4088 = vmatpush1.msra.mxu0 0.0
    %4089 = vmatprep.subr.mxu0 0.0
    %4090 = vmatpush1.msra.mxu0 0.0
    %4091 = vmatprep.subr.mxu0 0.0
    %4092 = vmatpush1.msra.mxu0 0.0
    %4093 = vmatprep.subr.mxu0 0.0
    %4094 = vmatpush1.msra.mxu0 0.0
    %4095 = vmatprep.subr.mxu0 0.0
    %4096 = vmatpush1.msra.mxu0 0.0
    %4097 = vmatprep.subr.mxu0 0.0
    %4098 = vmatpush1.msra.mxu0 0.0
    %4099 = vmatprep.subr.mxu0 0.0
    %4100 = vmatpush1.msra.mxu0 0.0
    %4101 = vmatprep.subr.mxu0 0.0
    %4102 = vmatpush1.msra.mxu0 0.0
    %4103 = vmatprep.subr.mxu0 0.0
    %4104 = vmatpush1.msra.mxu0 0.0
    %4105 = vmatprep.subr.mxu0 0.0
    %4106 = vmatpush1.msra.mxu0 0.0
    %4107 = vmatprep.subr.mxu0 0.0
    %4108 = vmatpush1.msra.mxu0 0.0
    %4109 = vmatprep.subr.mxu0 0.0
    %4110 = vmatpush1.msra.mxu0 0.0
    %4111 = vmatprep.subr.mxu0 0.0
    %4112 = vmatpush1.msra.mxu0 0.0
    %4113 = vmatprep.mubr.f32.mxu0 0.0
    %4114 = vmatmul.mubr.f32.gmra.mrb[0].mxu0 %v4026
    %v4115 = vpop.f32.mrb[0].mxu0
    %v4116 = vadd.f32 %v4023, %v4115
    %v4117 = vpop.f32.mrb[0].mxu0
    %4118 = vmatprep.mubr.f32.mxu0 0.0
    %4119 = vmatmul.mubr.f32.gmra.mrb[0].mxu0 %v4029
    %v4120 = vpop.f32.mrb[0].mxu0
    %v4121 = vadd.f32 %v4023, %v4120
    %v4122 = vpop.f32.mrb[0].mxu0
    %4123 = vmatprep.mubr.f32.mxu0 0.0
    %4124 = vmatmul.mubr.f32.gmra.mrb[0].mxu0 %v4032
    %v4125 = vpop.f32.mrb[0].mxu0
    %v4126 = vadd.f32 %v4023, %v4125
    %v4127 = vpop.f32.mrb[0].mxu0
    %4128 = vmatprep.mubr.f32.mxu0 0.0
    %4129 = vmatmul.mubr.f32.gmra.mrb[0].mxu0 %v4035
    %v4130 = vpop.f32.mrb[0].mxu0
    %v4131 = vadd.f32 %v4023, %v4130
    %v4132 = vpop.f32.mrb[0].mxu0
    %4133 = vmatprep.mubr.f32.mxu0 0.0
    %4134 = vmatmul.mubr.f32.gmra.mrb[0].mxu0 %v4038
    %v4135 = vpop.f32.mrb[0].mxu0
    %v4136 = vadd.f32 %v4023, %v4135
    %v4137 = vpop.f32.mrb[0].mxu0
    %4138 = vmatprep.mubr.f32.mxu0 0.0
    %4139 = vmatmul.mubr.f32.gmra.mrb[0].mxu0 %v4041
    %v4140 = vpop.f32.mrb[0].mxu0
    %v4141 = vadd.f32 %v4023, %v4140
    %v4142 = vpop.f32.mrb[0].mxu0
    %4143 = vmatprep.mubr.f32.mxu0 0.0
    %4144 = vmatmul.mubr.f32.gmra.mrb[0].mxu0 %v4044
    %v4145 = vpop.f32.mrb[0].mxu0
    %v4146 = vadd.f32 %v4023, %v4145
    %v4147 = vpop.f32.mrb[0].mxu0
    %4148 = vmatprep.mubr.f32.mxu0 0.0
    %4149 = vmatmul.mubr.f32.gmra.mrb[0].mxu0 %v4047
    %v4150 = vpop.f32.mrb[0].mxu0
    %v4151 = vadd.f32 %v4023, %v4150
    %v4152 = vpop.f32.mrb[0].mxu0
    %4153 = vdwg.mxu0
    %4154 = vst.msk [vmem:[%s17] sm:$0xff] %vm150, %v4116
    %4155 = vst.msk [vmem:[%s17 + $0x8] sm:$0xff] %vm150, %v4121
    %4156 = vst.msk [vmem:[%s17 + $0x10] sm:$0xff] %vm150, %v4126
    %4157 = vst.msk [vmem:[%s17 + $0x18] sm:$0xff] %vm150, %v4131
    %4158 = vst.msk [vmem:[%s17 + $0x20] sm:$0xff] %vm150, %v4136
    %4159 = vst.msk [vmem:[%s17 + $0x28] sm:$0xff] %vm150, %v4141
    %4160 = vst.msk [vmem:[%s17 + $0x30] sm:$0xff] %vm150, %v4146
    %4161 = vst.msk [vmem:[%s17 + $0x38] sm:$0xff] %vm150, %v4151
    // Predicated region
    $region94: #{vae_forward.1} parent=1 // pred_check
      _
    $region95: #{vae_forward.1} parent=1 // pred_check_branch
      %4163 = sbr.rel (0) target = $region97
    $region96: #{vae_forward.1} parent=1 // pred_region
      _
    $region97: #{vae_forward.1} parent=1 // pred_fallthru
      _
    // Predicated region
    $region98: #{vae_forward.1} parent=1 // pred_check
      _
    $region99: #{vae_forward.1} parent=1 // pred_check_branch
      %4165 = sbr.rel (0) target = $region101
    $region100: #{vae_forward.1} parent=1 // pred_region
      _
    $region101: #{vae_forward.1} parent=1 // pred_fallthru
      _
    // Predicated region
    $region102: #{vae_forward.1} parent=1 // pred_check
      _
    $region103: #{vae_forward.1} parent=1 // pred_check_branch
      %4167 = sbr.rel (0) target = $region105
    $region104: #{vae_forward.1} parent=1 // pred_region
      _
    $region105: #{vae_forward.1} parent=1 // pred_fallthru
      _
    // Predicated region
    $region106: #{vae_forward.1} parent=1 // pred_check
      _
    $region107: #{vae_forward.1} parent=1 // pred_check_branch
      %4169 = sbr.rel (0) target = $region109
    $region108: #{vae_forward.1} parent=1 // pred_region
      _
    $region109: #{vae_forward.1} parent=1 // pred_fallthru
      _
    %4170 = vsyncpa [#allocation4], 1
    %4171 = vsyncpa [#allocation6], 1
    %4172 = vsyncpa [#allocation9], 1
    %4173 = vsyncpa [#allocation12], 1

</llo_original>
